<compile_context>
chip_gen: v7x
topology: tpu7x:2x2x1
jax: 0.10.0
libtpu: 0.0.40
codegen_flags: <defaults>
</compile_context>

<pallas_src>
import math

import numpy as np
import jax
import jax.numpy as jnp
from jax.experimental import pallas as pl
from jax.experimental.pallas import tpu as pltpu


# ----------------------------------------------------------------------------
# PyTorch-exact interpolation weight matrices (host-side numpy, float64)
# ----------------------------------------------------------------------------
def _pt_scale(in_size, out_size, align_corners, scale):
    if align_corners:
        return (in_size - 1) / (out_size - 1) if out_size > 1 else 0.0
    if scale is not None and scale > 0:
        return 1.0 / scale
    return in_size / out_size


def nearest_matrix(in_size, out_size, scale=None):
    s = (1.0 / scale) if (scale is not None and scale > 0) else in_size / out_size
    dst = np.arange(out_size, dtype=np.float64)
    src = np.minimum(np.floor(dst * s).astype(np.int64), in_size - 1)
    M = np.zeros((out_size, in_size), dtype=np.float64)
    M[np.arange(out_size), src] = 1.0
    return M


def linear_matrix(in_size, out_size, align_corners, scale=None):
    s = _pt_scale(in_size, out_size, align_corners, scale)
    dst = np.arange(out_size, dtype=np.float64)
    if align_corners:
        src = s * dst
    else:
        src = s * (dst + 0.5) - 0.5
        src = np.where(src < 0.0, 0.0, src)
    i0 = np.floor(src).astype(np.int64)
    lam = src - i0
    i0 = np.clip(i0, 0, in_size - 1)
    i1 = np.minimum(i0 + 1, in_size - 1)
    M = np.zeros((out_size, in_size), dtype=np.float64)
    rows = np.arange(out_size)
    np.add.at(M, (rows, i0), 1.0 - lam)
    np.add.at(M, (rows, i1), lam)
    return M


def _cubic1(x, A):
    return ((A + 2.0) * x - (A + 3.0)) * x * x + 1.0


def _cubic2(x, A):
    return (((A * x - 5.0 * A) * x) + 8.0 * A) * x - 4.0 * A


def cubic_matrix(in_size, out_size, align_corners, scale=None):
    A = -0.75
    s = _pt_scale(in_size, out_size, align_corners, scale)
    dst = np.arange(out_size, dtype=np.float64)
    if align_corners:
        src = s * dst
    else:
        src = s * (dst + 0.5) - 0.5   # no clamping for cubic
    i = np.floor(src).astype(np.int64)
    t = src - i
    w = np.stack([_cubic2(t + 1.0, A), _cubic1(t, A),
                  _cubic1(1.0 - t, A), _cubic2(2.0 - t, A)], axis=1)
    M = np.zeros((out_size, in_size), dtype=np.float64)
    rows = np.arange(out_size)
    for k in range(4):
        idx = np.clip(i - 1 + k, 0, in_size - 1)
        np.add.at(M, (rows, idx), w[:, k])
    return M


def build_matrix(mode, in_size, out_size, align_corners, scale):
    if mode == "nearest":
        return nearest_matrix(in_size, out_size, scale)
    if mode in ("linear", "bilinear"):
        return linear_matrix(in_size, out_size, align_corners, scale)
    if mode == "bicubic":
        return cubic_matrix(in_size, out_size, align_corners, scale)
    raise ValueError(mode)


def resolve_size(in_size, size, scale, recompute):
    """PyTorch output-size / effective-scale semantics."""
    if size is not None:
        return int(size), None
    out = int(math.floor(float(in_size) * float(scale)))
    return out, (None if recompute else float(scale))


# ----------------------------------------------------------------------------
# The interpolation chains of Model.forward
# ----------------------------------------------------------------------------
OPS_X = [  # 3-D input (N, C, W)
    dict(size=16, mode="nearest"),
    dict(scale=2, mode="nearest"),
    dict(size=20, mode="nearest"),
    dict(scale=4, mode="nearest"),
    dict(size=16, mode="linear", ac=False),
    dict(scale=2, mode="linear", ac=False),
    dict(size=24, mode="linear", ac=True),
    dict(scale=3, mode="linear", ac=True),
    dict(scale=1.5, mode="nearest", recompute=True),
    dict(scale=1.2, mode="linear", ac=False, recompute=True),
    dict(scale=0.8, mode="linear", ac=True, recompute=True),
]

OPS_Y = [  # 4-D input (N, C, H, W)
    dict(size=(16, 16), mode="nearest"),
    dict(scale=(2, 2), mode="nearest"),
    dict(size=(20, 20), mode="nearest"),
    dict(scale=(4, 4), mode="nearest"),
    dict(size=(16, 24), mode="nearest"),
    dict(scale=(2, 3), mode="nearest"),
    dict(size=(16, 16), mode="bilinear", ac=False),
    dict(scale=(2, 2), mode="bilinear", ac=False),
    dict(size=(20, 20), mode="bilinear", ac=False),
    dict(scale=(4, 4), mode="bilinear", ac=False),
    dict(size=(16, 24), mode="bilinear", ac=True),
    dict(scale=(2, 3), mode="bilinear", ac=True),
    dict(size=(16, 16), mode="bicubic", ac=False),
    dict(scale=(2, 2), mode="bicubic", ac=False),
    dict(size=(20, 20), mode="bicubic", ac=False),
    dict(scale=(4, 4), mode="bicubic", ac=False),
    dict(size=(16, 24), mode="bicubic", ac=True),
    dict(scale=(2, 3), mode="bicubic", ac=True),
    dict(scale=(1.7, 2), mode="nearest", recompute=True),
    dict(scale=(2, 1.2), mode="bilinear", ac=False, recompute=True),
    dict(scale=(0.5, 0.4), mode="bilinear", ac=True, recompute=True),
    dict(scale=(0.8, 0.9), mode="bicubic", ac=False, recompute=True),
    dict(scale=(1.1, 0.5), mode="bicubic", ac=True, recompute=True),
]


# ----------------------------------------------------------------------------
# Host-side composition of the whole chain into one matrix per axis (float64)
# ----------------------------------------------------------------------------
def compose_chain_1d(in_size, ops):
    M = np.eye(in_size, dtype=np.float64)
    cur = in_size
    for op in ops:
        out, eff = resolve_size(cur, op.get("size"), op.get("scale"),
                                op.get("recompute", False))
        M = build_matrix(op["mode"], cur, out, op.get("ac", False), eff) @ M
        cur = out
    return M  # (out_final, in_size)


def compose_chain_2d(in_h, in_w, ops):
    Mh = np.eye(in_h, dtype=np.float64)
    Mw = np.eye(in_w, dtype=np.float64)
    ch, cw = in_h, in_w
    for op in ops:
        size = op.get("size")
        scale = op.get("scale")
        sh, sw = size if size is not None else (None, None)
        fh, fw = scale if scale is not None else (None, None)
        oh, eh = resolve_size(ch, sh, fh, op.get("recompute", False))
        ow, ew = resolve_size(cw, sw, fw, op.get("recompute", False))
        Mh = build_matrix(op["mode"], ch, oh, op.get("ac", False), eh) @ Mh
        Mw = build_matrix(op["mode"], cw, ow, op.get("ac", False), ew) @ Mw
        ch, cw = oh, ow
    return Mh, Mw  # (h_out_final, in_h), (w_out_final, in_w)


# ----------------------------------------------------------------------------
# Single fused Pallas kernel: 3 MXU matmuls, no relayouts, unpadded stores
# ----------------------------------------------------------------------------
def _fused_resample_kernel(x_ref, wxt_ref, y_ref, bdh_ref, mwt_ref,
                           ox_ref, oy_ref):
    hi = jax.lax.Precision.HIGHEST

    # x path: one (B, Win) @ (Win, Wout_x) matmul, stored unpadded.
    ox_ref[...] = jnp.dot(x_ref[...], wxt_ref[...],
                          preferred_element_type=jnp.float32, precision=hi)

    # y path, pass 1 (width), batched over all (n, c, h) rows in one matmul:
    #   (BY*H, W) @ (W, Wout)  ->  (BY*H, Wout)
    z = jnp.dot(y_ref[...], mwt_ref[...],
                preferred_element_type=jnp.float32, precision=hi)

    # y path, pass 2 (height), consolidated with a block-diagonal Mh:
    #   (BY*Hp, BY*H) @ (BY*H, Wout) -> (BY*Hp, Wout),  K = BY*H (well-filled MXU)
    o = jnp.dot(bdh_ref[...], z,
                preferred_element_type=jnp.float32, precision=hi)

    BY, Ho, _ = oy_ref.shape
    Hp = bdh_ref.shape[0] // BY          # sublane-aligned padded height (48)
    for b in range(BY):                  # tiny static unroll: aligned sub-stores
        oy_ref[b] = o[b * Hp: b * Hp + Ho, :]


def fused_resample(x2, wxt, yflat, bdh, mwt, by, out_h, out_w):
    # Gridless launch: whole arrays live in VMEM, no pipeline bookkeeping.
    # (For much larger N*C this would become a grid with
    #  dimension_semantics=("parallel",) so both v7x TensorCores get work.)
    vspec = lambda: pl.BlockSpec(memory_space=pltpu.MemorySpace.VMEM)
    return pl.pallas_call(
        _fused_resample_kernel,
        out_shape=(jax.ShapeDtypeStruct((x2.shape[0], wxt.shape[1]), jnp.float32),
                   jax.ShapeDtypeStruct((by, out_h, out_w), jnp.float32)),
        in_specs=[vspec() for _ in range(5)],
        out_specs=(vspec(), vspec()),
    )(x2, wxt, yflat, bdh, mwt)


# ----------------------------------------------------------------------------
# Forward factory: builds composed constants once, jits the whole forward
# ----------------------------------------------------------------------------
def make_forward(in_w_x, in_h_y, in_w_y):
    Ax = compose_chain_1d(in_w_x, OPS_X)                  # (103, in_w_x)
    Mh, Mw = compose_chain_2d(in_h_y, in_w_y, OPS_Y)      # (47, in_h), (30, in_w)
    out_wx, out_h, out_wy = Ax.shape[0], Mh.shape[0], Mw.shape[0]

    # Pad the composed height operator to a sublane multiple (47 -> 48 rows)
    # so every per-(n,c) block of the block-diagonal result is 8-row aligned.
    h_pad = (-Mh.shape[0]) % 8
    Mh_p = np.concatenate([Mh, np.zeros((h_pad, Mh.shape[1]), dtype=np.float64)],
                          axis=0)                          # (48, in_h_y)

    wxt_np = np.ascontiguousarray(Ax.T).astype(np.float32)   # (in_w_x, 103)
    mwt_np = np.ascontiguousarray(Mw.T).astype(np.float32)   # (in_w_y, 30)
    mhp_np = Mh_p.astype(np.float32)                          # (48, in_h_y)

    wxt = jnp.asarray(wxt_np)
    mwt = jnp.asarray(mwt_np)

    @jax.jit
    def forward(x, y):
        N, C, _ = x.shape
        BY = N * C
        # Block-diagonal height operator (trace-time constant; 288x192 f32 at
        # the test size -> 221 KB, cheap weight DMA on every TPU generation).
        bdh = jnp.asarray(np.kron(np.eye(BY, dtype=np.float32), mhp_np))

        x2 = x.reshape(BY, in_w_x).astype(jnp.float32)               # free reshape
        yflat = y.reshape(BY * in_h_y, in_w_y).astype(jnp.float32)   # free reshape

        ox, oy = fused_resample(x2, wxt, yflat, bdh, mwt, BY, out_h, out_wy)
        return (ox.reshape(N, C, out_wx),
                oy.reshape(N, C, out_h, out_wy))

    return forward


# ----------------------------------------------------------------------------
# Pure-numpy step-by-step reference (float64) to validate the composition
# TODO(synk): this checks the composed fast path against the same per-op matrix
# builders, not against torch.nn.functional.interpolate itself (no torch here).
# ----------------------------------------------------------------------------
def reference_numpy(x_np, y_np):
    xr = x_np.astype(np.float64)
    cur = xr.shape[-1]
    for op in OPS_X:
        out, eff = resolve_size(cur, op.get("size"), op.get("scale"),
                                op.get("recompute", False))
        Mk = build_matrix(op["mode"], cur, out, op.get("ac", False), eff)
        xr = np.einsum("ncw,ow->nco", xr, Mk)
        cur = out

    yr = y_np.astype(np.float64)
    ch, cw = yr.shape[-2], yr.shape[-1]
    for op in OPS_Y:
        size = op.get("size")
        scale = op.get("scale")
        sh, sw = size if size is not None else (None, None)
        fh, fw = scale if scale is not None else (None, None)
        oh, eh = resolve_size(ch, sh, fh, op.get("recompute", False))
        ow, ew = resolve_size(cw, sw, fw, op.get("recompute", False))
        Mhk = build_matrix(op["mode"], ch, oh, op.get("ac", False), eh)
        Mwk = build_matrix(op["mode"], cw, ow, op.get("ac", False), ew)
        yr = np.einsum("nchw,pw->nchp", yr, Mwk)
        yr = np.einsum("nchp,oh->ncop", yr, Mhk)
        ch, cw = oh, ow
    return xr, yr


if __name__ == "__main__":
    key = jax.random.PRNGKey(0)
    kx, ky = jax.random.split(key)
    # Small deterministic inputs: x is (N, C, W), y is (N, C, H, W).
    x = jax.random.uniform(kx, (2, 3, 32), dtype=jnp.float32)
    y = jax.random.uniform(ky, (2, 3, 32, 32), dtype=jnp.float32)

    fwd = make_forward(in_w_x=32, in_h_y=32, in_w_y=32)
    out_x, out_y = fwd(x, y)
    out_x = jax.block_until_ready(out_x)
    out_y = jax.block_until_ready(out_y)

    # Shape checks derived from tracing the PyTorch op chain.
    assert out_x.shape == (2, 3, 103), out_x.shape
    assert out_y.shape == (2, 3, 47, 30), out_y.shape
    assert out_x.dtype == jnp.float32 and out_y.dtype == jnp.float32

    # Numerical check of the composed-operator fast path vs the step-by-step
    # reference (same weight-matrix semantics, applied one op at a time).
    ref_x, ref_y = reference_numpy(np.asarray(x), np.asarray(y))
    assert np.allclose(np.asarray(out_x), ref_x, rtol=1e-3, atol=1e-3)
    assert np.allclose(np.asarray(out_y), ref_y, rtol=1e-3, atol=1e-3)

    print("KERNEL_OK")
</pallas_src>

<mosaic_0001>
module attributes {stable_mosaic.version = 11 : i64} {
  func.func @_fused_resample_kernel(%arg0: memref<6x32xf32, #tpu.memory_space<vmem>>, %arg1: memref<32x103xf32, #tpu.memory_space<vmem>>, %arg2: memref<192x32xf32, #tpu.memory_space<vmem>>, %arg3: memref<288x192xf32, #tpu.memory_space<vmem>>, %arg4: memref<32x30xf32, #tpu.memory_space<vmem>>, %arg5: memref<6x103xf32, #tpu.memory_space<vmem>>, %arg6: memref<6x47x30xf32, #tpu.memory_space<vmem>>) attributes {dimension_semantics = [], scalar_prefetch = 0 : i64, scratch_operands = 0 : i64, tpu.core_type = #tpu.core_type<tc>} {
    %c0 = arith.constant 0 : index
    %c0_0 = arith.constant 0 : index
    %0 = vector.load %arg0[%c0, %c0_0] : memref<6x32xf32, #tpu.memory_space<vmem>>, vector<6x32xf32>
    %c0_1 = arith.constant 0 : index
    %c0_2 = arith.constant 0 : index
    %1 = vector.load %arg1[%c0_1, %c0_2] : memref<32x103xf32, #tpu.memory_space<vmem>>, vector<32x103xf32>
    %cst = arith.constant dense<0.000000e+00> : vector<6x103xf32>
    %2 = tpu.matmul %0, %1, %cst {dimension_numbers = #tpu.dot_dimension_numbers<[1], [0], [0], [1], [0, 0, 1, 1], [], []>, precision = #tpu.contract_precision<fp32>} : vector<6x32xf32>, vector<32x103xf32>, vector<6x103xf32> -> vector<6x103xf32>
    %c0_3 = arith.constant 0 : index
    %c0_4 = arith.constant 0 : index
    %3 = vector.load %arg5[%c0_3, %c0_4] : memref<6x103xf32, #tpu.memory_space<vmem>>, vector<6x103xf32>
    tpu.vector_store %arg5[%c0_3, %c0_4], %2 {strides = array<i32>} : memref<6x103xf32, #tpu.memory_space<vmem>>, vector<6x103xf32>,
    %c0_5 = arith.constant 0 : index
    %c0_6 = arith.constant 0 : index
    %4 = vector.load %arg2[%c0_5, %c0_6] : memref<192x32xf32, #tpu.memory_space<vmem>>, vector<192x32xf32>
    %c0_7 = arith.constant 0 : index
    %c0_8 = arith.constant 0 : index
    %5 = vector.load %arg4[%c0_7, %c0_8] : memref<32x30xf32, #tpu.memory_space<vmem>>, vector<32x30xf32>
    %cst_9 = arith.constant dense<0.000000e+00> : vector<192x30xf32>
    %6 = tpu.matmul %4, %5, %cst_9 {dimension_numbers = #tpu.dot_dimension_numbers<[1], [0], [0], [1], [0, 0, 1, 1], [], []>, precision = #tpu.contract_precision<fp32>} : vector<192x32xf32>, vector<32x30xf32>, vector<192x30xf32> -> vector<192x30xf32>
    %c0_10 = arith.constant 0 : index
    %c0_11 = arith.constant 0 : index
    %7 = vector.load %arg3[%c0_10, %c0_11] : memref<288x192xf32, #tpu.memory_space<vmem>>, vector<288x192xf32>
    %cst_12 = arith.constant dense<0.000000e+00> : vector<288x30xf32>
    %8 = tpu.matmul %7, %6, %cst_12 {dimension_numbers = #tpu.dot_dimension_numbers<[1], [0], [0], [1], [0, 0, 1, 1], [], []>, precision = #tpu.contract_precision<fp32>} : vector<288x192xf32>, vector<192x30xf32>, vector<288x30xf32> -> vector<288x30xf32>
    %9 = vector.extract_strided_slice %8 {offsets = [0, 0], sizes = [47, 30], strides = [1, 1]} : vector<288x30xf32> to vector<47x30xf32>
    %c0_13 = arith.constant 0 : index
    %c0_14 = arith.constant 0 : index
    %c0_15 = arith.constant 0 : index
    %10 = vector.load %arg6[%c0_13, %c0_14, %c0_15] : memref<6x47x30xf32, #tpu.memory_space<vmem>>, vector<1x47x30xf32>
    %11 = vector.shape_cast %10 : vector<1x47x30xf32> to vector<47x30xf32>
    %12 = vector.shape_cast %9 : vector<47x30xf32> to vector<1x47x30xf32>
    tpu.vector_store %arg6[%c0_13, %c0_14, %c0_15], %12 {strides = array<i32>} : memref<6x47x30xf32, #tpu.memory_space<vmem>>, vector<1x47x30xf32>,
    %13 = vector.extract_strided_slice %8 {offsets = [48, 0], sizes = [47, 30], strides = [1, 1]} : vector<288x30xf32> to vector<47x30xf32>
    %c1 = arith.constant 1 : index
    %c0_16 = arith.constant 0 : index
    %c0_17 = arith.constant 0 : index
    %14 = vector.load %arg6[%c1, %c0_16, %c0_17] : memref<6x47x30xf32, #tpu.memory_space<vmem>>, vector<1x47x30xf32>
    %15 = vector.shape_cast %14 : vector<1x47x30xf32> to vector<47x30xf32>
    %16 = vector.shape_cast %13 : vector<47x30xf32> to vector<1x47x30xf32>
    tpu.vector_store %arg6[%c1, %c0_16, %c0_17], %16 {strides = array<i32>} : memref<6x47x30xf32, #tpu.memory_space<vmem>>, vector<1x47x30xf32>,
    %17 = vector.extract_strided_slice %8 {offsets = [96, 0], sizes = [47, 30], strides = [1, 1]} : vector<288x30xf32> to vector<47x30xf32>
    %c2 = arith.constant 2 : index
    %c0_18 = arith.constant 0 : index
    %c0_19 = arith.constant 0 : index
    %18 = vector.load %arg6[%c2, %c0_18, %c0_19] : memref<6x47x30xf32, #tpu.memory_space<vmem>>, vector<1x47x30xf32>
    %19 = vector.shape_cast %18 : vector<1x47x30xf32> to vector<47x30xf32>
    %20 = vector.shape_cast %17 : vector<47x30xf32> to vector<1x47x30xf32>
    tpu.vector_store %arg6[%c2, %c0_18, %c0_19], %20 {strides = array<i32>} : memref<6x47x30xf32, #tpu.memory_space<vmem>>, vector<1x47x30xf32>,
    %21 = vector.extract_strided_slice %8 {offsets = [144, 0], sizes = [47, 30], strides = [1, 1]} : vector<288x30xf32> to vector<47x30xf32>
    %c3 = arith.constant 3 : index
    %c0_20 = arith.constant 0 : index
    %c0_21 = arith.constant 0 : index
    %22 = vector.load %arg6[%c3, %c0_20, %c0_21] : memref<6x47x30xf32, #tpu.memory_space<vmem>>, vector<1x47x30xf32>
    %23 = vector.shape_cast %22 : vector<1x47x30xf32> to vector<47x30xf32>
    %24 = vector.shape_cast %21 : vector<47x30xf32> to vector<1x47x30xf32>
    tpu.vector_store %arg6[%c3, %c0_20, %c0_21], %24 {strides = array<i32>} : memref<6x47x30xf32, #tpu.memory_space<vmem>>, vector<1x47x30xf32>,
    %25 = vector.extract_strided_slice %8 {offsets = [192, 0], sizes = [47, 30], strides = [1, 1]} : vector<288x30xf32> to vector<47x30xf32>
    %c4 = arith.constant 4 : index
    %c0_22 = arith.constant 0 : index
    %c0_23 = arith.constant 0 : index
    %26 = vector.load %arg6[%c4, %c0_22, %c0_23] : memref<6x47x30xf32, #tpu.memory_space<vmem>>, vector<1x47x30xf32>
    %27 = vector.shape_cast %26 : vector<1x47x30xf32> to vector<47x30xf32>
    %28 = vector.shape_cast %25 : vector<47x30xf32> to vector<1x47x30xf32>
    tpu.vector_store %arg6[%c4, %c0_22, %c0_23], %28 {strides = array<i32>} : memref<6x47x30xf32, #tpu.memory_space<vmem>>, vector<1x47x30xf32>,
    %29 = vector.extract_strided_slice %8 {offsets = [240, 0], sizes = [47, 30], strides = [1, 1]} : vector<288x30xf32> to vector<47x30xf32>
    %c5 = arith.constant 5 : index
    %c0_24 = arith.constant 0 : index
    %c0_25 = arith.constant 0 : index
    %30 = vector.load %arg6[%c5, %c0_24, %c0_25] : memref<6x47x30xf32, #tpu.memory_space<vmem>>, vector<1x47x30xf32>
    %31 = vector.shape_cast %30 : vector<1x47x30xf32> to vector<47x30xf32>
    %32 = vector.shape_cast %29 : vector<47x30xf32> to vector<1x47x30xf32>
    tpu.vector_store %arg6[%c5, %c0_24, %c0_25], %32 {strides = array<i32>} : memref<6x47x30xf32, #tpu.memory_space<vmem>>, vector<1x47x30xf32>,
    return
  }
}

</mosaic_0001>

<llo_original>
// kernel: forward.1
$region0: #{forward.1}
  #allocation0 [shape = 'u32[]', space=smem, size = 0x4, offset = 0x4, fixed_abs, tag = 'smem constant byte address 0x4 - core index']
  #allocation1 [shape = 'u32[144,128]{1,0:T(1,128)}', space=vmem, size = 0x12000, scoped, tag = 'internal scratch']
  %s0 = inlined_call_operand.vmem [shape: f32[6,32], index: 0, kind: input, shape index: {}]
  %s1 = inlined_call_operand.hbm [shape: f32[32,103], index: 1, kind: input, shape index: {}]
  %s2 = inlined_call_operand.hbm [shape: f32[192,32], index: 2, kind: input, shape index: {}]
  %s3 = inlined_call_operand.hbm [shape: f32[288,192], index: 3, kind: input, shape index: {}]
  %s4 = inlined_call_operand.vmem [shape: f32[32,30], index: 4, kind: input, shape index: {}]
  %s5 = inlined_call_operand.vmem [shape: f32[6,103], index: 5, kind: output, shape index: {0}]
  %s6 = inlined_call_operand.vmem [shape: f32[6,47,30], index: 6, kind: output, shape index: {1}]
  %7 = xla_tuple %s5, %s6
  %s8 = sld [smem:[#allocation0]]
  $region50: #{forward.1} parent=0
    _
  %s10 = ssub.s32 1, %s8
  %s11 = scalar_select 0, %s10, %s8
  $region1: #{forward.1} parent=0
    #allocation2 [shape = 'u8[16384]{0}', space=vmem, size = 0x4000, scoped, tag = 'input window, operand 1, single buffered']
    #allocation3 [shape = 's32[1]{0}', space=sflag, size = 0x4, scoped, tag = 'scoped memory for forward.1']
    #allocation4 [shape = 'u8[98304]{0}', space=vmem, size = 0x18000, scoped, tag = 'input window, operand 2, single buffered']
    #allocation5 [shape = 's32[1]{0}', space=sflag, size = 0x4, scoped, tag = 'scoped memory for forward.1']
    #allocation6 [shape = 'u8[294912]{0}', space=vmem, size = 0x48000, scoped, tag = 'input window, operand 3, single buffered']
    %12 = vsyncpa [#allocation3], 0
    %13 = vsyncpa [#allocation5], 0
    // Predicated region
    $region2: #{forward.1} parent=1 // pred_check
      _
    $region3: #{forward.1} parent=1 // pred_check_branch
      %15 = sbr.rel (0) target = $region5
    $region4: #{forward.1} parent=1 // pred_region
      _
    $region5: #{forward.1} parent=1 // pred_fallthru
      _
    // Predicated region
    $region6: #{forward.1} parent=1 // pred_check
      _
    $region7: #{forward.1} parent=1 // pred_check_branch
      %17 = sbr.rel (0) target = $region9
    $region8: #{forward.1} parent=1 // pred_region
      %s19 = ssub.s32 512, 512
      %20 = vsyncadd [#allocation3], %s19
      %s21 = sshll.u32 [#allocation2], 4
      %s22 = int_to_ptr.vmem [resolvable:$true] %s21
      %27 = dma.hbm_to_vmem [thread:$0]  %s1, 512, %s22, [#allocation3], 128, 128, 8
    $region9: #{forward.1} parent=1 // pred_fallthru
      _
    // Predicated region
    $region10: #{forward.1} parent=1 // pred_check
      _
    $region11: #{forward.1} parent=1 // pred_check_branch
      %29 = sbr.rel (0) target = $region13
    $region12: #{forward.1} parent=1 // pred_region
      %s31 = ssub.s32 3072, 3072
      %32 = vsyncadd [#allocation5], %s31
      %s33 = sshll.u32 [#allocation4], 4
      %s34 = int_to_ptr.vmem [resolvable:$true] %s33
      %39 = dma.hbm_to_vmem [thread:$0]  %s2, 3072, %s34, [#allocation5], 128, 128, 8
    $region13: #{forward.1} parent=1 // pred_fallthru
      _
    // Predicated region
    $region14: #{forward.1} parent=1 // pred_check
      _
    $region15: #{forward.1} parent=1 // pred_check_branch
      %41 = sbr.rel (0) target = $region17
    $region16: #{forward.1} parent=1 // pred_region
      %s43 = ssub.s32 9216, 9216
      %44 = vsyncadd [#allocation5], %s43
      %s45 = sshll.u32 [#allocation6], 4
      %s46 = int_to_ptr.vmem [resolvable:$true] %s45
      %51 = dma.hbm_to_vmem [thread:$0]  %s3, 9216, %s46, [#allocation5], 256, 256, 16
    $region17: #{forward.1} parent=1 // pred_fallthru
      _
    // Predicated region
    $region18: #{forward.1} parent=1 // pred_check
      _
    $region19: #{forward.1} parent=1 // pred_check_branch
      %53 = sbr.rel (0) target = $region21
    $region20: #{forward.1} parent=1 // pred_region
      _
    $region21: #{forward.1} parent=1 // pred_fallthru
      _
    // Predicated region
    $region22: #{forward.1} parent=1 // pred_check
      _
    $region23: #{forward.1} parent=1 // pred_check_branch
      %55 = sbr.rel (0) target = $region25
    $region24: #{forward.1} parent=1 // pred_region
      %56 = dma.done [#allocation3], 512
    $region25: #{forward.1} parent=1 // pred_fallthru
      _
    // Predicated region
    $region26: #{forward.1} parent=1 // pred_check
      _
    $region27: #{forward.1} parent=1 // pred_check_branch
      %58 = sbr.rel (0) target = $region29
    $region28: #{forward.1} parent=1 // pred_region
      %59 = dma.done [#allocation5], 3072
    $region29: #{forward.1} parent=1 // pred_fallthru
      _
    // Predicated region
    $region30: #{forward.1} parent=1 // pred_check
      _
    $region31: #{forward.1} parent=1 // pred_check_branch
      %61 = sbr.rel (0) target = $region33
    $region32: #{forward.1} parent=1 // pred_region
      %62 = dma.done [#allocation5], 9216
    $region33: #{forward.1} parent=1 // pred_fallthru
      _
    %v63 = vld [vmem:[%s0] sm:$0x3f]
    %v64 = vld [vmem:[#allocation2] sm:$0xff]
    %v65 = vld [vmem:[#allocation2 + $0x8] sm:$0xff]
    %v66 = vld [vmem:[#allocation2 + $0x10] sm:$0xff]
    %v67 = vld [vmem:[#allocation2 + $0x18] sm:$0xff]
    %vm68 = vcmask 261120
    %v70 = vsel %vm68, %v63, 0
    %72 = vmatprep.subr.mxu0 0.0
    %v73 = vand.u32 %v64, 4294901760
    %74 = vmatpush1.msra.mxu0 %v73
    %75 = vmatprep.subr.mxu0 0.0
    %v76 = vand.u32 %v65, 4294901760
    %77 = vmatpush1.msra.mxu0 %v76
    %78 = vmatprep.subr.mxu0 0.0
    %v79 = vand.u32 %v66, 4294901760
    %80 = vmatpush1.msra.mxu0 %v79
    %81 = vmatprep.subr.mxu0 0.0
    %v82 = vand.u32 %v67, 4294901760
    %83 = vmatpush1.msra.mxu0 %v82
    %84 = vmatprep.subr.mxu0 0.0
    %85 = vmatpush1.msra.mxu0 0.0
    %86 = vmatprep.subr.mxu0 0.0
    %87 = vmatpush1.msra.mxu0 0.0
    %88 = vmatprep.subr.mxu0 0.0
    %89 = vmatpush1.msra.mxu0 0.0
    %90 = vmatprep.subr.mxu0 0.0
    %91 = vmatpush1.msra.mxu0 0.0
    %92 = vmatprep.subr.mxu0 0.0
    %93 = vmatpush1.msra.mxu0 0.0
    %94 = vmatprep.subr.mxu0 0.0
    %95 = vmatpush1.msra.mxu0 0.0
    %96 = vmatprep.subr.mxu0 0.0
    %97 = vmatpush1.msra.mxu0 0.0
    %98 = vmatprep.subr.mxu0 0.0
    %99 = vmatpush1.msra.mxu0 0.0
    %100 = vmatprep.subr.mxu0 0.0
    %101 = vmatpush1.msra.mxu0 0.0
    %102 = vmatprep.subr.mxu0 0.0
    %103 = vmatpush1.msra.mxu0 0.0
    %104 = vmatprep.subr.mxu0 0.0
    %105 = vmatpush1.msra.mxu0 0.0
    %106 = vmatprep.subr.mxu0 0.0
    %107 = vmatpush1.msra.mxu0 0.0
    %108 = vmatprep.subr.mxu0 0.0
    %109 = vmatpush1.msra.mxu0 0.0
    %110 = vmatprep.subr.mxu0 0.0
    %111 = vmatpush1.msra.mxu0 0.0
    %112 = vmatprep.subr.mxu0 0.0
    %113 = vmatpush1.msra.mxu0 0.0
    %114 = vmatprep.subr.mxu0 0.0
    %115 = vmatpush1.msra.mxu0 0.0
    %116 = vmatprep.subr.mxu0 0.0
    %117 = vmatpush1.msra.mxu0 0.0
    %118 = vmatprep.subr.mxu0 0.0
    %119 = vmatpush1.msra.mxu0 0.0
    %120 = vmatprep.subr.mxu0 0.0
    %121 = vmatpush1.msra.mxu0 0.0
    %122 = vmatprep.subr.mxu0 0.0
    %123 = vmatpush1.msra.mxu0 0.0
    %124 = vmatprep.subr.mxu0 0.0
    %125 = vmatpush1.msra.mxu0 0.0
    %126 = vmatprep.subr.mxu0 0.0
    %127 = vmatpush1.msra.mxu0 0.0
    %128 = vmatprep.subr.mxu0 0.0
    %129 = vmatpush1.msra.mxu0 0.0
    %130 = vmatprep.subr.mxu0 0.0
    %131 = vmatpush1.msra.mxu0 0.0
    %132 = vmatprep.subr.mxu0 0.0
    %133 = vmatpush1.msra.mxu0 0.0
    %134 = vmatprep.subr.mxu0 0.0
    %135 = vmatpush1.msra.mxu0 0.0
    %136 = vmatprep.subr.mxu0 0.0
    %137 = vmatpush1.msra.mxu0 0.0
    %138 = vmatprep.subr.mxu0 0.0
    %139 = vmatpush1.msra.mxu0 0.0
    %140 = vmatprep.mubr.f32.mxu0 0.0
    %v141 = vand.u32 %v70, 4294901760
    %v142 = vsub.f32 %v70, %v141
    %v143 = vand.u32 %v142, 4294901760
    %v144 = vsub.f32 %v142, %v143
    %v145 = vand.u32 %v144, 4294901760
    %146 = vmatmul.mubr.f32.gmra.mrb[0].mxu0 %v145
    %v147 = vpop.f32.mrb[0].mxu0
    %v148 = vadd.f32 0.0, %v147
    %v149 = vpop.f32.mrb[0].mxu0
    %150 = vdwg.mxu0
    %151 = vmatprep.subr.mxu0 0.0
    %v152 = vand.u32 %v64, 4294901760
    %v153 = vsub.f32 %v64, %v152
    %v154 = vand.u32 %v153, 4294901760
    %v155 = vsub.f32 %v153, %v154
    %v156 = vand.u32 %v155, 4294901760
    %157 = vmatpush1.msra.mxu0 %v156
    %158 = vmatprep.subr.mxu0 0.0
    %v159 = vand.u32 %v65, 4294901760
    %v160 = vsub.f32 %v65, %v159
    %v161 = vand.u32 %v160, 4294901760
    %v162 = vsub.f32 %v160, %v161
    %v163 = vand.u32 %v162, 4294901760
    %164 = vmatpush1.msra.mxu0 %v163
    %165 = vmatprep.subr.mxu0 0.0
    %v166 = vand.u32 %v66, 4294901760
    %v167 = vsub.f32 %v66, %v166
    %v168 = vand.u32 %v167, 4294901760
    %v169 = vsub.f32 %v167, %v168
    %v170 = vand.u32 %v169, 4294901760
    %171 = vmatpush1.msra.mxu0 %v170
    %172 = vmatprep.subr.mxu0 0.0
    %v173 = vand.u32 %v67, 4294901760
    %v174 = vsub.f32 %v67, %v173
    %v175 = vand.u32 %v174, 4294901760
    %v176 = vsub.f32 %v174, %v175
    %v177 = vand.u32 %v176, 4294901760
    %178 = vmatpush1.msra.mxu0 %v177
    %179 = vmatprep.subr.mxu0 0.0
    %180 = vmatpush1.msra.mxu0 0.0
    %181 = vmatprep.subr.mxu0 0.0
    %182 = vmatpush1.msra.mxu0 0.0
    %183 = vmatprep.subr.mxu0 0.0
    %184 = vmatpush1.msra.mxu0 0.0
    %185 = vmatprep.subr.mxu0 0.0
    %186 = vmatpush1.msra.mxu0 0.0
    %187 = vmatprep.subr.mxu0 0.0
    %188 = vmatpush1.msra.mxu0 0.0
    %189 = vmatprep.subr.mxu0 0.0
    %190 = vmatpush1.msra.mxu0 0.0
    %191 = vmatprep.subr.mxu0 0.0
    %192 = vmatpush1.msra.mxu0 0.0
    %193 = vmatprep.subr.mxu0 0.0
    %194 = vmatpush1.msra.mxu0 0.0
    %195 = vmatprep.subr.mxu0 0.0
    %196 = vmatpush1.msra.mxu0 0.0
    %197 = vmatprep.subr.mxu0 0.0
    %198 = vmatpush1.msra.mxu0 0.0
    %199 = vmatprep.subr.mxu0 0.0
    %200 = vmatpush1.msra.mxu0 0.0
    %201 = vmatprep.subr.mxu0 0.0
    %202 = vmatpush1.msra.mxu0 0.0
    %203 = vmatprep.subr.mxu0 0.0
    %204 = vmatpush1.msra.mxu0 0.0
    %205 = vmatprep.subr.mxu0 0.0
    %206 = vmatpush1.msra.mxu0 0.0
    %207 = vmatprep.subr.mxu0 0.0
    %208 = vmatpush1.msra.mxu0 0.0
    %209 = vmatprep.subr.mxu0 0.0
    %210 = vmatpush1.msra.mxu0 0.0
    %211 = vmatprep.subr.mxu0 0.0
    %212 = vmatpush1.msra.mxu0 0.0
    %213 = vmatprep.subr.mxu0 0.0
    %214 = vmatpush1.msra.mxu0 0.0
    %215 = vmatprep.subr.mxu0 0.0
    %216 = vmatpush1.msra.mxu0 0.0
    %217 = vmatprep.subr.mxu0 0.0
    %218 = vmatpush1.msra.mxu0 0.0
    %219 = vmatprep.subr.mxu0 0.0
    %220 = vmatpush1.msra.mxu0 0.0
    %221 = vmatprep.subr.mxu0 0.0
    %222 = vmatpush1.msra.mxu0 0.0
    %223 = vmatprep.subr.mxu0 0.0
    %224 = vmatpush1.msra.mxu0 0.0
    %225 = vmatprep.subr.mxu0 0.0
    %226 = vmatpush1.msra.mxu0 0.0
    %227 = vmatprep.subr.mxu0 0.0
    %228 = vmatpush1.msra.mxu0 0.0
    %229 = vmatprep.subr.mxu0 0.0
    %230 = vmatpush1.msra.mxu0 0.0
    %231 = vmatprep.subr.mxu0 0.0
    %232 = vmatpush1.msra.mxu0 0.0
    %233 = vmatprep.subr.mxu0 0.0
    %234 = vmatpush1.msra.mxu0 0.0
    %235 = vmatprep.mubr.f32.mxu0 0.0
    %v236 = vand.u32 %v70, 4294901760
    %237 = vmatmul.mubr.f32.gmra.mrb[0].mxu0 %v236
    %v238 = vpop.f32.mrb[0].mxu0
    %v239 = vadd.f32 %v148, %v238
    %v240 = vpop.f32.mrb[0].mxu0
    %241 = vdwg.mxu0
    %242 = vmatprep.subr.mxu0 0.0
    %v243 = vand.u32 %v64, 4294901760
    %v244 = vsub.f32 %v64, %v243
    %245 = vmatpush1.msra.mxu0 %v244
    %246 = vmatprep.subr.mxu0 0.0
    %v247 = vand.u32 %v65, 4294901760
    %v248 = vsub.f32 %v65, %v247
    %249 = vmatpush1.msra.mxu0 %v248
    %250 = vmatprep.subr.mxu0 0.0
    %v251 = vand.u32 %v66, 4294901760
    %v252 = vsub.f32 %v66, %v251
    %253 = vmatpush1.msra.mxu0 %v252
    %254 = vmatprep.subr.mxu0 0.0
    %v255 = vand.u32 %v67, 4294901760
    %v256 = vsub.f32 %v67, %v255
    %257 = vmatpush1.msra.mxu0 %v256
    %258 = vmatprep.subr.mxu0 0.0
    %259 = vmatpush1.msra.mxu0 0.0
    %260 = vmatprep.subr.mxu0 0.0
    %261 = vmatpush1.msra.mxu0 0.0
    %262 = vmatprep.subr.mxu0 0.0
    %263 = vmatpush1.msra.mxu0 0.0
    %264 = vmatprep.subr.mxu0 0.0
    %265 = vmatpush1.msra.mxu0 0.0
    %266 = vmatprep.subr.mxu0 0.0
    %267 = vmatpush1.msra.mxu0 0.0
    %268 = vmatprep.subr.mxu0 0.0
    %269 = vmatpush1.msra.mxu0 0.0
    %270 = vmatprep.subr.mxu0 0.0
    %271 = vmatpush1.msra.mxu0 0.0
    %272 = vmatprep.subr.mxu0 0.0
    %273 = vmatpush1.msra.mxu0 0.0
    %274 = vmatprep.subr.mxu0 0.0
    %275 = vmatpush1.msra.mxu0 0.0
    %276 = vmatprep.subr.mxu0 0.0
    %277 = vmatpush1.msra.mxu0 0.0
    %278 = vmatprep.subr.mxu0 0.0
    %279 = vmatpush1.msra.mxu0 0.0
    %280 = vmatprep.subr.mxu0 0.0
    %281 = vmatpush1.msra.mxu0 0.0
    %282 = vmatprep.subr.mxu0 0.0
    %283 = vmatpush1.msra.mxu0 0.0
    %284 = vmatprep.subr.mxu0 0.0
    %285 = vmatpush1.msra.mxu0 0.0
    %286 = vmatprep.subr.mxu0 0.0
    %287 = vmatpush1.msra.mxu0 0.0
    %288 = vmatprep.subr.mxu0 0.0
    %289 = vmatpush1.msra.mxu0 0.0
    %290 = vmatprep.subr.mxu0 0.0
    %291 = vmatpush1.msra.mxu0 0.0
    %292 = vmatprep.subr.mxu0 0.0
    %293 = vmatpush1.msra.mxu0 0.0
    %294 = vmatprep.subr.mxu0 0.0
    %295 = vmatpush1.msra.mxu0 0.0
    %296 = vmatprep.subr.mxu0 0.0
    %297 = vmatpush1.msra.mxu0 0.0
    %298 = vmatprep.subr.mxu0 0.0
    %299 = vmatpush1.msra.mxu0 0.0
    %300 = vmatprep.subr.mxu0 0.0
    %301 = vmatpush1.msra.mxu0 0.0
    %302 = vmatprep.subr.mxu0 0.0
    %303 = vmatpush1.msra.mxu0 0.0
    %304 = vmatprep.subr.mxu0 0.0
    %305 = vmatpush1.msra.mxu0 0.0
    %306 = vmatprep.subr.mxu0 0.0
    %307 = vmatpush1.msra.mxu0 0.0
    %308 = vmatprep.subr.mxu0 0.0
    %309 = vmatpush1.msra.mxu0 0.0
    %310 = vmatprep.subr.mxu0 0.0
    %311 = vmatpush1.msra.mxu0 0.0
    %312 = vmatprep.subr.mxu0 0.0
    %313 = vmatpush1.msra.mxu0 0.0
    %314 = vmatprep.mubr.f32.mxu0 0.0
    %v315 = vand.u32 %v70, 4294901760
    %v316 = vsub.f32 %v70, %v315
    %317 = vmatmul.mubr.f32.gmra.mrb[0].mxu0 %v316
    %v318 = vpop.f32.mrb[0].mxu0
    %v319 = vadd.f32 %v239, %v318
    %v320 = vpop.f32.mrb[0].mxu0
    %321 = vdwg.mxu0
    %322 = vmatprep.subr.mxu0 0.0
    %v323 = vand.u32 %v64, 4294901760
    %324 = vmatpush1.msra.mxu0 %v323
    %325 = vmatprep.subr.mxu0 0.0
    %v326 = vand.u32 %v65, 4294901760
    %327 = vmatpush1.msra.mxu0 %v326
    %328 = vmatprep.subr.mxu0 0.0
    %v329 = vand.u32 %v66, 4294901760
    %330 = vmatpush1.msra.mxu0 %v329
    %331 = vmatprep.subr.mxu0 0.0
    %v332 = vand.u32 %v67, 4294901760
    %333 = vmatpush1.msra.mxu0 %v332
    %334 = vmatprep.subr.mxu0 0.0
    %335 = vmatpush1.msra.mxu0 0.0
    %336 = vmatprep.subr.mxu0 0.0
    %337 = vmatpush1.msra.mxu0 0.0
    %338 = vmatprep.subr.mxu0 0.0
    %339 = vmatpush1.msra.mxu0 0.0
    %340 = vmatprep.subr.mxu0 0.0
    %341 = vmatpush1.msra.mxu0 0.0
    %342 = vmatprep.subr.mxu0 0.0
    %343 = vmatpush1.msra.mxu0 0.0
    %344 = vmatprep.subr.mxu0 0.0
    %345 = vmatpush1.msra.mxu0 0.0
    %346 = vmatprep.subr.mxu0 0.0
    %347 = vmatpush1.msra.mxu0 0.0
    %348 = vmatprep.subr.mxu0 0.0
    %349 = vmatpush1.msra.mxu0 0.0
    %350 = vmatprep.subr.mxu0 0.0
    %351 = vmatpush1.msra.mxu0 0.0
    %352 = vmatprep.subr.mxu0 0.0
    %353 = vmatpush1.msra.mxu0 0.0
    %354 = vmatprep.subr.mxu0 0.0
    %355 = vmatpush1.msra.mxu0 0.0
    %356 = vmatprep.subr.mxu0 0.0
    %357 = vmatpush1.msra.mxu0 0.0
    %358 = vmatprep.subr.mxu0 0.0
    %359 = vmatpush1.msra.mxu0 0.0
    %360 = vmatprep.subr.mxu0 0.0
    %361 = vmatpush1.msra.mxu0 0.0
    %362 = vmatprep.subr.mxu0 0.0
    %363 = vmatpush1.msra.mxu0 0.0
    %364 = vmatprep.subr.mxu0 0.0
    %365 = vmatpush1.msra.mxu0 0.0
    %366 = vmatprep.subr.mxu0 0.0
    %367 = vmatpush1.msra.mxu0 0.0
    %368 = vmatprep.subr.mxu0 0.0
    %369 = vmatpush1.msra.mxu0 0.0
    %370 = vmatprep.subr.mxu0 0.0
    %371 = vmatpush1.msra.mxu0 0.0
    %372 = vmatprep.subr.mxu0 0.0
    %373 = vmatpush1.msra.mxu0 0.0
    %374 = vmatprep.subr.mxu0 0.0
    %375 = vmatpush1.msra.mxu0 0.0
    %376 = vmatprep.subr.mxu0 0.0
    %377 = vmatpush1.msra.mxu0 0.0
    %378 = vmatprep.subr.mxu0 0.0
    %379 = vmatpush1.msra.mxu0 0.0
    %380 = vmatprep.subr.mxu0 0.0
    %381 = vmatpush1.msra.mxu0 0.0
    %382 = vmatprep.subr.mxu0 0.0
    %383 = vmatpush1.msra.mxu0 0.0
    %384 = vmatprep.subr.mxu0 0.0
    %385 = vmatpush1.msra.mxu0 0.0
    %386 = vmatprep.subr.mxu0 0.0
    %387 = vmatpush1.msra.mxu0 0.0
    %388 = vmatprep.subr.mxu0 0.0
    %389 = vmatpush1.msra.mxu0 0.0
    %390 = vmatprep.mubr.f32.mxu0 0.0
    %v391 = vand.u32 %v70, 4294901760
    %v392 = vsub.f32 %v70, %v391
    %v393 = vand.u32 %v392, 4294901760
    %394 = vmatmul.mubr.f32.gmra.mrb[0].mxu0 %v393
    %v395 = vpop.f32.mrb[0].mxu0
    %v396 = vadd.f32 %v319, %v395
    %v397 = vpop.f32.mrb[0].mxu0
    %398 = vdwg.mxu0
    %399 = vmatprep.subr.mxu0 0.0
    %v400 = vand.u32 %v64, 4294901760
    %v401 = vsub.f32 %v64, %v400
    %v402 = vand.u32 %v401, 4294901760
    %403 = vmatpush1.msra.mxu0 %v402
    %404 = vmatprep.subr.mxu0 0.0
    %v405 = vand.u32 %v65, 4294901760
    %v406 = vsub.f32 %v65, %v405
    %v407 = vand.u32 %v406, 4294901760
    %408 = vmatpush1.msra.mxu0 %v407
    %409 = vmatprep.subr.mxu0 0.0
    %v410 = vand.u32 %v66, 4294901760
    %v411 = vsub.f32 %v66, %v410
    %v412 = vand.u32 %v411, 4294901760
    %413 = vmatpush1.msra.mxu0 %v412
    %414 = vmatprep.subr.mxu0 0.0
    %v415 = vand.u32 %v67, 4294901760
    %v416 = vsub.f32 %v67, %v415
    %v417 = vand.u32 %v416, 4294901760
    %418 = vmatpush1.msra.mxu0 %v417
    %419 = vmatprep.subr.mxu0 0.0
    %420 = vmatpush1.msra.mxu0 0.0
    %421 = vmatprep.subr.mxu0 0.0
    %422 = vmatpush1.msra.mxu0 0.0
    %423 = vmatprep.subr.mxu0 0.0
    %424 = vmatpush1.msra.mxu0 0.0
    %425 = vmatprep.subr.mxu0 0.0
    %426 = vmatpush1.msra.mxu0 0.0
    %427 = vmatprep.subr.mxu0 0.0
    %428 = vmatpush1.msra.mxu0 0.0
    %429 = vmatprep.subr.mxu0 0.0
    %430 = vmatpush1.msra.mxu0 0.0
    %431 = vmatprep.subr.mxu0 0.0
    %432 = vmatpush1.msra.mxu0 0.0
    %433 = vmatprep.subr.mxu0 0.0
    %434 = vmatpush1.msra.mxu0 0.0
    %435 = vmatprep.subr.mxu0 0.0
    %436 = vmatpush1.msra.mxu0 0.0
    %437 = vmatprep.subr.mxu0 0.0
    %438 = vmatpush1.msra.mxu0 0.0
    %439 = vmatprep.subr.mxu0 0.0
    %440 = vmatpush1.msra.mxu0 0.0
    %441 = vmatprep.subr.mxu0 0.0
    %442 = vmatpush1.msra.mxu0 0.0
    %443 = vmatprep.subr.mxu0 0.0
    %444 = vmatpush1.msra.mxu0 0.0
    %445 = vmatprep.subr.mxu0 0.0
    %446 = vmatpush1.msra.mxu0 0.0
    %447 = vmatprep.subr.mxu0 0.0
    %448 = vmatpush1.msra.mxu0 0.0
    %449 = vmatprep.subr.mxu0 0.0
    %450 = vmatpush1.msra.mxu0 0.0
    %451 = vmatprep.subr.mxu0 0.0
    %452 = vmatpush1.msra.mxu0 0.0
    %453 = vmatprep.subr.mxu0 0.0
    %454 = vmatpush1.msra.mxu0 0.0
    %455 = vmatprep.subr.mxu0 0.0
    %456 = vmatpush1.msra.mxu0 0.0
    %457 = vmatprep.subr.mxu0 0.0
    %458 = vmatpush1.msra.mxu0 0.0
    %459 = vmatprep.subr.mxu0 0.0
    %460 = vmatpush1.msra.mxu0 0.0
    %461 = vmatprep.subr.mxu0 0.0
    %462 = vmatpush1.msra.mxu0 0.0
    %463 = vmatprep.subr.mxu0 0.0
    %464 = vmatpush1.msra.mxu0 0.0
    %465 = vmatprep.subr.mxu0 0.0
    %466 = vmatpush1.msra.mxu0 0.0
    %467 = vmatprep.subr.mxu0 0.0
    %468 = vmatpush1.msra.mxu0 0.0
    %469 = vmatprep.subr.mxu0 0.0
    %470 = vmatpush1.msra.mxu0 0.0
    %471 = vmatprep.subr.mxu0 0.0
    %472 = vmatpush1.msra.mxu0 0.0
    %473 = vmatprep.subr.mxu0 0.0
    %474 = vmatpush1.msra.mxu0 0.0
    %475 = vmatprep.mubr.f32.mxu0 0.0
    %v476 = vand.u32 %v70, 4294901760
    %477 = vmatmul.mubr.f32.gmra.mrb[0].mxu0 %v476
    %v478 = vpop.f32.mrb[0].mxu0
    %v479 = vadd.f32 %v396, %v478
    %v480 = vpop.f32.mrb[0].mxu0
    %481 = vdwg.mxu0
    %482 = vmatprep.subr.mxu0 0.0
    %v483 = vand.u32 %v64, 4294901760
    %484 = vmatpush1.msra.mxu0 %v483
    %485 = vmatprep.subr.mxu0 0.0
    %v486 = vand.u32 %v65, 4294901760
    %487 = vmatpush1.msra.mxu0 %v486
    %488 = vmatprep.subr.mxu0 0.0
    %v489 = vand.u32 %v66, 4294901760
    %490 = vmatpush1.msra.mxu0 %v489
    %491 = vmatprep.subr.mxu0 0.0
    %v492 = vand.u32 %v67, 4294901760
    %493 = vmatpush1.msra.mxu0 %v492
    %494 = vmatprep.subr.mxu0 0.0
    %495 = vmatpush1.msra.mxu0 0.0
    %496 = vmatprep.subr.mxu0 0.0
    %497 = vmatpush1.msra.mxu0 0.0
    %498 = vmatprep.subr.mxu0 0.0
    %499 = vmatpush1.msra.mxu0 0.0
    %500 = vmatprep.subr.mxu0 0.0
    %501 = vmatpush1.msra.mxu0 0.0
    %502 = vmatprep.subr.mxu0 0.0
    %503 = vmatpush1.msra.mxu0 0.0
    %504 = vmatprep.subr.mxu0 0.0
    %505 = vmatpush1.msra.mxu0 0.0
    %506 = vmatprep.subr.mxu0 0.0
    %507 = vmatpush1.msra.mxu0 0.0
    %508 = vmatprep.subr.mxu0 0.0
    %509 = vmatpush1.msra.mxu0 0.0
    %510 = vmatprep.subr.mxu0 0.0
    %511 = vmatpush1.msra.mxu0 0.0
    %512 = vmatprep.subr.mxu0 0.0
    %513 = vmatpush1.msra.mxu0 0.0
    %514 = vmatprep.subr.mxu0 0.0
    %515 = vmatpush1.msra.mxu0 0.0
    %516 = vmatprep.subr.mxu0 0.0
    %517 = vmatpush1.msra.mxu0 0.0
    %518 = vmatprep.subr.mxu0 0.0
    %519 = vmatpush1.msra.mxu0 0.0
    %520 = vmatprep.subr.mxu0 0.0
    %521 = vmatpush1.msra.mxu0 0.0
    %522 = vmatprep.subr.mxu0 0.0
    %523 = vmatpush1.msra.mxu0 0.0
    %524 = vmatprep.subr.mxu0 0.0
    %525 = vmatpush1.msra.mxu0 0.0
    %526 = vmatprep.subr.mxu0 0.0
    %527 = vmatpush1.msra.mxu0 0.0
    %528 = vmatprep.subr.mxu0 0.0
    %529 = vmatpush1.msra.mxu0 0.0
    %530 = vmatprep.subr.mxu0 0.0
    %531 = vmatpush1.msra.mxu0 0.0
    %532 = vmatprep.subr.mxu0 0.0
    %533 = vmatpush1.msra.mxu0 0.0
    %534 = vmatprep.subr.mxu0 0.0
    %535 = vmatpush1.msra.mxu0 0.0
    %536 = vmatprep.subr.mxu0 0.0
    %537 = vmatpush1.msra.mxu0 0.0
    %538 = vmatprep.subr.mxu0 0.0
    %539 = vmatpush1.msra.mxu0 0.0
    %540 = vmatprep.subr.mxu0 0.0
    %541 = vmatpush1.msra.mxu0 0.0
    %542 = vmatprep.subr.mxu0 0.0
    %543 = vmatpush1.msra.mxu0 0.0
    %544 = vmatprep.subr.mxu0 0.0
    %545 = vmatpush1.msra.mxu0 0.0
    %546 = vmatprep.subr.mxu0 0.0
    %547 = vmatpush1.msra.mxu0 0.0
    %548 = vmatprep.subr.mxu0 0.0
    %549 = vmatpush1.msra.mxu0 0.0
    %550 = vmatprep.mubr.f32.mxu0 0.0
    %v551 = vand.u32 %v70, 4294901760
    %552 = vmatmul.mubr.f32.gmra.mrb[0].mxu0 %v551
    %v553 = vpop.f32.mrb[0].mxu0
    %v554 = vadd.f32 %v479, %v553
    %v555 = vpop.f32.mrb[0].mxu0
    %556 = vdwg.mxu0
    %vm557 = vcmask 840704
    %558 = vst.msk [vmem:[%s5] sm:$0x3f] %vm557, %v554
    %v559 = vld [vmem:[#allocation4] sm:$0xff]
    %v560 = vld [vmem:[#allocation4 + $0x8] sm:$0xff]
    %v561 = vld [vmem:[#allocation4 + $0x10] sm:$0xff]
    %v562 = vld [vmem:[#allocation4 + $0x18] sm:$0xff]
    %v563 = vld [vmem:[#allocation4 + $0x20] sm:$0xff]
    %v564 = vld [vmem:[#allocation4 + $0x28] sm:$0xff]
    %v565 = vld [vmem:[#allocation4 + $0x30] sm:$0xff]
    %v566 = vld [vmem:[#allocation4 + $0x38] sm:$0xff]
    %v567 = vld [vmem:[#allocation4 + $0x40] sm:$0xff]
    %v568 = vld [vmem:[#allocation4 + $0x48] sm:$0xff]
    %v569 = vld [vmem:[#allocation4 + $0x50] sm:$0xff]
    %v570 = vld [vmem:[#allocation4 + $0x58] sm:$0xff]
    %v571 = vld [vmem:[#allocation4 + $0x60] sm:$0xff]
    %v572 = vld [vmem:[#allocation4 + $0x68] sm:$0xff]
    %v573 = vld [vmem:[#allocation4 + $0x70] sm:$0xff]
    %v574 = vld [vmem:[#allocation4 + $0x78] sm:$0xff]
    %v575 = vld [vmem:[#allocation4 + $0x80] sm:$0xff]
    %v576 = vld [vmem:[#allocation4 + $0x88] sm:$0xff]
    %v577 = vld [vmem:[#allocation4 + $0x90] sm:$0xff]
    %v578 = vld [vmem:[#allocation4 + $0x98] sm:$0xff]
    %v579 = vld [vmem:[#allocation4 + $0xa0] sm:$0xff]
    %v580 = vld [vmem:[#allocation4 + $0xa8] sm:$0xff]
    %v581 = vld [vmem:[#allocation4 + $0xb0] sm:$0xff]
    %v582 = vld [vmem:[#allocation4 + $0xb8] sm:$0xff]
    %v583 = vld [vmem:[%s4] sm:$0xff]
    %v584 = vld [vmem:[%s4 + $0x8] sm:$0xff]
    %v585 = vld [vmem:[%s4 + $0x10] sm:$0xff]
    %v586 = vld [vmem:[%s4 + $0x18] sm:$0xff]
    %v588 = vsel %vm68, %v559, 0
    %v591 = vsel %vm68, %v560, 0
    %v594 = vsel %vm68, %v561, 0
    %v597 = vsel %vm68, %v562, 0
    %v600 = vsel %vm68, %v563, 0
    %v603 = vsel %vm68, %v564, 0
    %v606 = vsel %vm68, %v565, 0
    %v609 = vsel %vm68, %v566, 0
    %v612 = vsel %vm68, %v567, 0
    %v615 = vsel %vm68, %v568, 0
    %v618 = vsel %vm68, %v569, 0
    %v621 = vsel %vm68, %v570, 0
    %v624 = vsel %vm68, %v571, 0
    %v627 = vsel %vm68, %v572, 0
    %v630 = vsel %vm68, %v573, 0
    %v633 = vsel %vm68, %v574, 0
    %v636 = vsel %vm68, %v575, 0
    %v639 = vsel %vm68, %v576, 0
    %v642 = vsel %vm68, %v577, 0
    %v645 = vsel %vm68, %v578, 0
    %v648 = vsel %vm68, %v579, 0
    %v651 = vsel %vm68, %v580, 0
    %v654 = vsel %vm68, %v581, 0
    %v657 = vsel %vm68, %v582, 0
    %659 = vmatprep.subr.mxu0 0.0
    %v660 = vand.u32 %v583, 4294901760
    %661 = vmatpush1.msra.mxu0 %v660
    %662 = vmatprep.subr.mxu0 0.0
    %v663 = vand.u32 %v584, 4294901760
    %664 = vmatpush1.msra.mxu0 %v663
    %665 = vmatprep.subr.mxu0 0.0
    %v666 = vand.u32 %v585, 4294901760
    %667 = vmatpush1.msra.mxu0 %v666
    %668 = vmatprep.subr.mxu0 0.0
    %v669 = vand.u32 %v586, 4294901760
    %670 = vmatpush1.msra.mxu0 %v669
    %671 = vmatprep.subr.mxu0 0.0
    %672 = vmatpush1.msra.mxu0 0.0
    %673 = vmatprep.subr.mxu0 0.0
    %674 = vmatpush1.msra.mxu0 0.0
    %675 = vmatprep.subr.mxu0 0.0
    %676 = vmatpush1.msra.mxu0 0.0
    %677 = vmatprep.subr.mxu0 0.0
    %678 = vmatpush1.msra.mxu0 0.0
    %679 = vmatprep.subr.mxu0 0.0
    %680 = vmatpush1.msra.mxu0 0.0
    %681 = vmatprep.subr.mxu0 0.0
    %682 = vmatpush1.msra.mxu0 0.0
    %683 = vmatprep.subr.mxu0 0.0
    %684 = vmatpush1.msra.mxu0 0.0
    %685 = vmatprep.subr.mxu0 0.0
    %686 = vmatpush1.msra.mxu0 0.0
    %687 = vmatprep.subr.mxu0 0.0
    %688 = vmatpush1.msra.mxu0 0.0
    %689 = vmatprep.subr.mxu0 0.0
    %690 = vmatpush1.msra.mxu0 0.0
    %691 = vmatprep.subr.mxu0 0.0
    %692 = vmatpush1.msra.mxu0 0.0
    %693 = vmatprep.subr.mxu0 0.0
    %694 = vmatpush1.msra.mxu0 0.0
    %695 = vmatprep.subr.mxu0 0.0
    %696 = vmatpush1.msra.mxu0 0.0
    %697 = vmatprep.subr.mxu0 0.0
    %698 = vmatpush1.msra.mxu0 0.0
    %699 = vmatprep.subr.mxu0 0.0
    %700 = vmatpush1.msra.mxu0 0.0
    %701 = vmatprep.subr.mxu0 0.0
    %702 = vmatpush1.msra.mxu0 0.0
    %703 = vmatprep.subr.mxu0 0.0
    %704 = vmatpush1.msra.mxu0 0.0
    %705 = vmatprep.subr.mxu0 0.0
    %706 = vmatpush1.msra.mxu0 0.0
    %707 = vmatprep.subr.mxu0 0.0
    %708 = vmatpush1.msra.mxu0 0.0
    %709 = vmatprep.subr.mxu0 0.0
    %710 = vmatpush1.msra.mxu0 0.0
    %711 = vmatprep.subr.mxu0 0.0
    %712 = vmatpush1.msra.mxu0 0.0
    %713 = vmatprep.subr.mxu0 0.0
    %714 = vmatpush1.msra.mxu0 0.0
    %715 = vmatprep.subr.mxu0 0.0
    %716 = vmatpush1.msra.mxu0 0.0
    %717 = vmatprep.subr.mxu0 0.0
    %718 = vmatpush1.msra.mxu0 0.0
    %719 = vmatprep.subr.mxu0 0.0
    %720 = vmatpush1.msra.mxu0 0.0
    %721 = vmatprep.subr.mxu0 0.0
    %722 = vmatpush1.msra.mxu0 0.0
    %723 = vmatprep.subr.mxu0 0.0
    %724 = vmatpush1.msra.mxu0 0.0
    %725 = vmatprep.subr.mxu0 0.0
    %726 = vmatpush1.msra.mxu0 0.0
    %727 = vmatprep.mubr.f32.mxu0 0.0
    %v728 = vand.u32 %v588, 4294901760
    %v729 = vsub.f32 %v588, %v728
    %v730 = vand.u32 %v729, 4294901760
    %v731 = vsub.f32 %v729, %v730
    %v732 = vand.u32 %v731, 4294901760
    %733 = vmatmul.mubr.f32.gmra.mrb[0].mxu0 %v732
    %v734 = vpop.f32.mrb[0].mxu0
    %v735 = vadd.f32 0.0, %v734
    %v736 = vpop.f32.mrb[0].mxu0
    %737 = vmatprep.mubr.f32.mxu0 0.0
    %v738 = vand.u32 %v591, 4294901760
    %v739 = vsub.f32 %v591, %v738
    %v740 = vand.u32 %v739, 4294901760
    %v741 = vsub.f32 %v739, %v740
    %v742 = vand.u32 %v741, 4294901760
    %743 = vmatmul.mubr.f32.gmra.mrb[0].mxu0 %v742
    %v744 = vpop.f32.mrb[0].mxu0
    %v745 = vadd.f32 0.0, %v744
    %v746 = vpop.f32.mrb[0].mxu0
    %747 = vmatprep.mubr.f32.mxu0 0.0
    %v748 = vand.u32 %v594, 4294901760
    %v749 = vsub.f32 %v594, %v748
    %v750 = vand.u32 %v749, 4294901760
    %v751 = vsub.f32 %v749, %v750
    %v752 = vand.u32 %v751, 4294901760
    %753 = vmatmul.mubr.f32.gmra.mrb[0].mxu0 %v752
    %v754 = vpop.f32.mrb[0].mxu0
    %v755 = vadd.f32 0.0, %v754
    %v756 = vpop.f32.mrb[0].mxu0
    %757 = vmatprep.mubr.f32.mxu0 0.0
    %v758 = vand.u32 %v597, 4294901760
    %v759 = vsub.f32 %v597, %v758
    %v760 = vand.u32 %v759, 4294901760
    %v761 = vsub.f32 %v759, %v760
    %v762 = vand.u32 %v761, 4294901760
    %763 = vmatmul.mubr.f32.gmra.mrb[0].mxu0 %v762
    %v764 = vpop.f32.mrb[0].mxu0
    %v765 = vadd.f32 0.0, %v764
    %v766 = vpop.f32.mrb[0].mxu0
    %767 = vmatprep.mubr.f32.mxu0 0.0
    %v768 = vand.u32 %v600, 4294901760
    %v769 = vsub.f32 %v600, %v768
    %v770 = vand.u32 %v769, 4294901760
    %v771 = vsub.f32 %v769, %v770
    %v772 = vand.u32 %v771, 4294901760
    %773 = vmatmul.mubr.f32.gmra.mrb[0].mxu0 %v772
    %v774 = vpop.f32.mrb[0].mxu0
    %v775 = vadd.f32 0.0, %v774
    %v776 = vpop.f32.mrb[0].mxu0
    %777 = vmatprep.mubr.f32.mxu0 0.0
    %v778 = vand.u32 %v603, 4294901760
    %v779 = vsub.f32 %v603, %v778
    %v780 = vand.u32 %v779, 4294901760
    %v781 = vsub.f32 %v779, %v780
    %v782 = vand.u32 %v781, 4294901760
    %783 = vmatmul.mubr.f32.gmra.mrb[0].mxu0 %v782
    %v784 = vpop.f32.mrb[0].mxu0
    %v785 = vadd.f32 0.0, %v784
    %v786 = vpop.f32.mrb[0].mxu0
    %787 = vmatprep.mubr.f32.mxu0 0.0
    %v788 = vand.u32 %v606, 4294901760
    %v789 = vsub.f32 %v606, %v788
    %v790 = vand.u32 %v789, 4294901760
    %v791 = vsub.f32 %v789, %v790
    %v792 = vand.u32 %v791, 4294901760
    %793 = vmatmul.mubr.f32.gmra.mrb[0].mxu0 %v792
    %v794 = vpop.f32.mrb[0].mxu0
    %v795 = vadd.f32 0.0, %v794
    %v796 = vpop.f32.mrb[0].mxu0
    %797 = vmatprep.mubr.f32.mxu0 0.0
    %v798 = vand.u32 %v609, 4294901760
    %v799 = vsub.f32 %v609, %v798
    %v800 = vand.u32 %v799, 4294901760
    %v801 = vsub.f32 %v799, %v800
    %v802 = vand.u32 %v801, 4294901760
    %803 = vmatmul.mubr.f32.gmra.mrb[0].mxu0 %v802
    %v804 = vpop.f32.mrb[0].mxu0
    %v805 = vadd.f32 0.0, %v804
    %v806 = vpop.f32.mrb[0].mxu0
    %807 = vmatprep.mubr.f32.mxu0 0.0
    %v808 = vand.u32 %v612, 4294901760
    %v809 = vsub.f32 %v612, %v808
    %v810 = vand.u32 %v809, 4294901760
    %v811 = vsub.f32 %v809, %v810
    %v812 = vand.u32 %v811, 4294901760
    %813 = vmatmul.mubr.f32.gmra.mrb[0].mxu0 %v812
    %v814 = vpop.f32.mrb[0].mxu0
    %v815 = vadd.f32 0.0, %v814
    %v816 = vpop.f32.mrb[0].mxu0
    %817 = vmatprep.mubr.f32.mxu0 0.0
    %v818 = vand.u32 %v615, 4294901760
    %v819 = vsub.f32 %v615, %v818
    %v820 = vand.u32 %v819, 4294901760
    %v821 = vsub.f32 %v819, %v820
    %v822 = vand.u32 %v821, 4294901760
    %823 = vmatmul.mubr.f32.gmra.mrb[0].mxu0 %v822
    %v824 = vpop.f32.mrb[0].mxu0
    %v825 = vadd.f32 0.0, %v824
    %v826 = vpop.f32.mrb[0].mxu0
    %827 = vmatprep.mubr.f32.mxu0 0.0
    %v828 = vand.u32 %v618, 4294901760
    %v829 = vsub.f32 %v618, %v828
    %v830 = vand.u32 %v829, 4294901760
    %v831 = vsub.f32 %v829, %v830
    %v832 = vand.u32 %v831, 4294901760
    %833 = vmatmul.mubr.f32.gmra.mrb[0].mxu0 %v832
    %v834 = vpop.f32.mrb[0].mxu0
    %v835 = vadd.f32 0.0, %v834
    %v836 = vpop.f32.mrb[0].mxu0
    %837 = vmatprep.mubr.f32.mxu0 0.0
    %v838 = vand.u32 %v621, 4294901760
    %v839 = vsub.f32 %v621, %v838
    %v840 = vand.u32 %v839, 4294901760
    %v841 = vsub.f32 %v839, %v840
    %v842 = vand.u32 %v841, 4294901760
    %843 = vmatmul.mubr.f32.gmra.mrb[0].mxu0 %v842
    %v844 = vpop.f32.mrb[0].mxu0
    %v845 = vadd.f32 0.0, %v844
    %v846 = vpop.f32.mrb[0].mxu0
    %847 = vmatprep.mubr.f32.mxu0 0.0
    %v848 = vand.u32 %v624, 4294901760
    %v849 = vsub.f32 %v624, %v848
    %v850 = vand.u32 %v849, 4294901760
    %v851 = vsub.f32 %v849, %v850
    %v852 = vand.u32 %v851, 4294901760
    %853 = vmatmul.mubr.f32.gmra.mrb[0].mxu0 %v852
    %v854 = vpop.f32.mrb[0].mxu0
    %v855 = vadd.f32 0.0, %v854
    %v856 = vpop.f32.mrb[0].mxu0
    %857 = vmatprep.mubr.f32.mxu0 0.0
    %v858 = vand.u32 %v627, 4294901760
    %v859 = vsub.f32 %v627, %v858
    %v860 = vand.u32 %v859, 4294901760
    %v861 = vsub.f32 %v859, %v860
    %v862 = vand.u32 %v861, 4294901760
    %863 = vmatmul.mubr.f32.gmra.mrb[0].mxu0 %v862
    %v864 = vpop.f32.mrb[0].mxu0
    %v865 = vadd.f32 0.0, %v864
    %v866 = vpop.f32.mrb[0].mxu0
    %867 = vmatprep.mubr.f32.mxu0 0.0
    %v868 = vand.u32 %v630, 4294901760
    %v869 = vsub.f32 %v630, %v868
    %v870 = vand.u32 %v869, 4294901760
    %v871 = vsub.f32 %v869, %v870
    %v872 = vand.u32 %v871, 4294901760
    %873 = vmatmul.mubr.f32.gmra.mrb[0].mxu0 %v872
    %v874 = vpop.f32.mrb[0].mxu0
    %v875 = vadd.f32 0.0, %v874
    %v876 = vpop.f32.mrb[0].mxu0
    %877 = vmatprep.mubr.f32.mxu0 0.0
    %v878 = vand.u32 %v633, 4294901760
    %v879 = vsub.f32 %v633, %v878
    %v880 = vand.u32 %v879, 4294901760
    %v881 = vsub.f32 %v879, %v880
    %v882 = vand.u32 %v881, 4294901760
    %883 = vmatmul.mubr.f32.gmra.mrb[0].mxu0 %v882
    %v884 = vpop.f32.mrb[0].mxu0
    %v885 = vadd.f32 0.0, %v884
    %v886 = vpop.f32.mrb[0].mxu0
    %887 = vmatprep.mubr.f32.mxu0 0.0
    %v888 = vand.u32 %v636, 4294901760
    %v889 = vsub.f32 %v636, %v888
    %v890 = vand.u32 %v889, 4294901760
    %v891 = vsub.f32 %v889, %v890
    %v892 = vand.u32 %v891, 4294901760
    %893 = vmatmul.mubr.f32.gmra.mrb[0].mxu0 %v892
    %v894 = vpop.f32.mrb[0].mxu0
    %v895 = vadd.f32 0.0, %v894
    %v896 = vpop.f32.mrb[0].mxu0
    %897 = vmatprep.mubr.f32.mxu0 0.0
    %v898 = vand.u32 %v639, 4294901760
    %v899 = vsub.f32 %v639, %v898
    %v900 = vand.u32 %v899, 4294901760
    %v901 = vsub.f32 %v899, %v900
    %v902 = vand.u32 %v901, 4294901760
    %903 = vmatmul.mubr.f32.gmra.mrb[0].mxu0 %v902
    %v904 = vpop.f32.mrb[0].mxu0
    %v905 = vadd.f32 0.0, %v904
    %v906 = vpop.f32.mrb[0].mxu0
    %907 = vmatprep.mubr.f32.mxu0 0.0
    %v908 = vand.u32 %v642, 4294901760
    %v909 = vsub.f32 %v642, %v908
    %v910 = vand.u32 %v909, 4294901760
    %v911 = vsub.f32 %v909, %v910
    %v912 = vand.u32 %v911, 4294901760
    %913 = vmatmul.mubr.f32.gmra.mrb[0].mxu0 %v912
    %v914 = vpop.f32.mrb[0].mxu0
    %v915 = vadd.f32 0.0, %v914
    %v916 = vpop.f32.mrb[0].mxu0
    %917 = vmatprep.mubr.f32.mxu0 0.0
    %v918 = vand.u32 %v645, 4294901760
    %v919 = vsub.f32 %v645, %v918
    %v920 = vand.u32 %v919, 4294901760
    %v921 = vsub.f32 %v919, %v920
    %v922 = vand.u32 %v921, 4294901760
    %923 = vmatmul.mubr.f32.gmra.mrb[0].mxu0 %v922
    %v924 = vpop.f32.mrb[0].mxu0
    %v925 = vadd.f32 0.0, %v924
    %v926 = vpop.f32.mrb[0].mxu0
    %927 = vmatprep.mubr.f32.mxu0 0.0
    %v928 = vand.u32 %v648, 4294901760
    %v929 = vsub.f32 %v648, %v928
    %v930 = vand.u32 %v929, 4294901760
    %v931 = vsub.f32 %v929, %v930
    %v932 = vand.u32 %v931, 4294901760
    %933 = vmatmul.mubr.f32.gmra.mrb[0].mxu0 %v932
    %v934 = vpop.f32.mrb[0].mxu0
    %v935 = vadd.f32 0.0, %v934
    %v936 = vpop.f32.mrb[0].mxu0
    %937 = vmatprep.mubr.f32.mxu0 0.0
    %v938 = vand.u32 %v651, 4294901760
    %v939 = vsub.f32 %v651, %v938
    %v940 = vand.u32 %v939, 4294901760
    %v941 = vsub.f32 %v939, %v940
    %v942 = vand.u32 %v941, 4294901760
    %943 = vmatmul.mubr.f32.gmra.mrb[0].mxu0 %v942
    %v944 = vpop.f32.mrb[0].mxu0
    %v945 = vadd.f32 0.0, %v944
    %v946 = vpop.f32.mrb[0].mxu0
    %947 = vmatprep.mubr.f32.mxu0 0.0
    %v948 = vand.u32 %v654, 4294901760
    %v949 = vsub.f32 %v654, %v948
    %v950 = vand.u32 %v949, 4294901760
    %v951 = vsub.f32 %v949, %v950
    %v952 = vand.u32 %v951, 4294901760
    %953 = vmatmul.mubr.f32.gmra.mrb[0].mxu0 %v952
    %v954 = vpop.f32.mrb[0].mxu0
    %v955 = vadd.f32 0.0, %v954
    %v956 = vpop.f32.mrb[0].mxu0
    %957 = vmatprep.mubr.f32.mxu0 0.0
    %v958 = vand.u32 %v657, 4294901760
    %v959 = vsub.f32 %v657, %v958
    %v960 = vand.u32 %v959, 4294901760
    %v961 = vsub.f32 %v959, %v960
    %v962 = vand.u32 %v961, 4294901760
    %963 = vmatmul.mubr.f32.gmra.mrb[0].mxu0 %v962
    %v964 = vpop.f32.mrb[0].mxu0
    %v965 = vadd.f32 0.0, %v964
    %v966 = vpop.f32.mrb[0].mxu0
    %967 = vdwg.mxu0
    %968 = vmatprep.subr.mxu0 0.0
    %v969 = vand.u32 %v583, 4294901760
    %v970 = vsub.f32 %v583, %v969
    %v971 = vand.u32 %v970, 4294901760
    %v972 = vsub.f32 %v970, %v971
    %v973 = vand.u32 %v972, 4294901760
    %974 = vmatpush1.msra.mxu0 %v973
    %975 = vmatprep.subr.mxu0 0.0
    %v976 = vand.u32 %v584, 4294901760
    %v977 = vsub.f32 %v584, %v976
    %v978 = vand.u32 %v977, 4294901760
    %v979 = vsub.f32 %v977, %v978
    %v980 = vand.u32 %v979, 4294901760
    %981 = vmatpush1.msra.mxu0 %v980
    %982 = vmatprep.subr.mxu0 0.0
    %v983 = vand.u32 %v585, 4294901760
    %v984 = vsub.f32 %v585, %v983
    %v985 = vand.u32 %v984, 4294901760
    %v986 = vsub.f32 %v984, %v985
    %v987 = vand.u32 %v986, 4294901760
    %988 = vmatpush1.msra.mxu0 %v987
    %989 = vmatprep.subr.mxu0 0.0
    %v990 = vand.u32 %v586, 4294901760
    %v991 = vsub.f32 %v586, %v990
    %v992 = vand.u32 %v991, 4294901760
    %v993 = vsub.f32 %v991, %v992
    %v994 = vand.u32 %v993, 4294901760
    %995 = vmatpush1.msra.mxu0 %v994
    %996 = vmatprep.subr.mxu0 0.0
    %997 = vmatpush1.msra.mxu0 0.0
    %998 = vmatprep.subr.mxu0 0.0
    %999 = vmatpush1.msra.mxu0 0.0
    %1000 = vmatprep.subr.mxu0 0.0
    %1001 = vmatpush1.msra.mxu0 0.0
    %1002 = vmatprep.subr.mxu0 0.0
    %1003 = vmatpush1.msra.mxu0 0.0
    %1004 = vmatprep.subr.mxu0 0.0
    %1005 = vmatpush1.msra.mxu0 0.0
    %1006 = vmatprep.subr.mxu0 0.0
    %1007 = vmatpush1.msra.mxu0 0.0
    %1008 = vmatprep.subr.mxu0 0.0
    %1009 = vmatpush1.msra.mxu0 0.0
    %1010 = vmatprep.subr.mxu0 0.0
    %1011 = vmatpush1.msra.mxu0 0.0
    %1012 = vmatprep.subr.mxu0 0.0
    %1013 = vmatpush1.msra.mxu0 0.0
    %1014 = vmatprep.subr.mxu0 0.0
    %1015 = vmatpush1.msra.mxu0 0.0
    %1016 = vmatprep.subr.mxu0 0.0
    %1017 = vmatpush1.msra.mxu0 0.0
    %1018 = vmatprep.subr.mxu0 0.0
    %1019 = vmatpush1.msra.mxu0 0.0
    %1020 = vmatprep.subr.mxu0 0.0
    %1021 = vmatpush1.msra.mxu0 0.0
    %1022 = vmatprep.subr.mxu0 0.0
    %1023 = vmatpush1.msra.mxu0 0.0
    %1024 = vmatprep.subr.mxu0 0.0
    %1025 = vmatpush1.msra.mxu0 0.0
    %1026 = vmatprep.subr.mxu0 0.0
    %1027 = vmatpush1.msra.mxu0 0.0
    %1028 = vmatprep.subr.mxu0 0.0
    %1029 = vmatpush1.msra.mxu0 0.0
    %1030 = vmatprep.subr.mxu0 0.0
    %1031 = vmatpush1.msra.mxu0 0.0
    %1032 = vmatprep.subr.mxu0 0.0
    %1033 = vmatpush1.msra.mxu0 0.0
    %1034 = vmatprep.subr.mxu0 0.0
    %1035 = vmatpush1.msra.mxu0 0.0
    %1036 = vmatprep.subr.mxu0 0.0
    %1037 = vmatpush1.msra.mxu0 0.0
    %1038 = vmatprep.subr.mxu0 0.0
    %1039 = vmatpush1.msra.mxu0 0.0
    %1040 = vmatprep.subr.mxu0 0.0
    %1041 = vmatpush1.msra.mxu0 0.0
    %1042 = vmatprep.subr.mxu0 0.0
    %1043 = vmatpush1.msra.mxu0 0.0
    %1044 = vmatprep.subr.mxu0 0.0
    %1045 = vmatpush1.msra.mxu0 0.0
    %1046 = vmatprep.subr.mxu0 0.0
    %1047 = vmatpush1.msra.mxu0 0.0
    %1048 = vmatprep.subr.mxu0 0.0
    %1049 = vmatpush1.msra.mxu0 0.0
    %1050 = vmatprep.subr.mxu0 0.0
    %1051 = vmatpush1.msra.mxu0 0.0
    %1052 = vmatprep.mubr.f32.mxu0 0.0
    %v1053 = vand.u32 %v588, 4294901760
    %1054 = vmatmul.mubr.f32.gmra.mrb[0].mxu0 %v1053
    %v1055 = vpop.f32.mrb[0].mxu0
    %v1056 = vadd.f32 %v735, %v1055
    %v1057 = vpop.f32.mrb[0].mxu0
    %1058 = vmatprep.mubr.f32.mxu0 0.0
    %v1059 = vand.u32 %v591, 4294901760
    %1060 = vmatmul.mubr.f32.gmra.mrb[0].mxu0 %v1059
    %v1061 = vpop.f32.mrb[0].mxu0
    %v1062 = vadd.f32 %v745, %v1061
    %v1063 = vpop.f32.mrb[0].mxu0
    %1064 = vmatprep.mubr.f32.mxu0 0.0
    %v1065 = vand.u32 %v594, 4294901760
    %1066 = vmatmul.mubr.f32.gmra.mrb[0].mxu0 %v1065
    %v1067 = vpop.f32.mrb[0].mxu0
    %v1068 = vadd.f32 %v755, %v1067
    %v1069 = vpop.f32.mrb[0].mxu0
    %1070 = vmatprep.mubr.f32.mxu0 0.0
    %v1071 = vand.u32 %v597, 4294901760
    %1072 = vmatmul.mubr.f32.gmra.mrb[0].mxu0 %v1071
    %v1073 = vpop.f32.mrb[0].mxu0
    %v1074 = vadd.f32 %v765, %v1073
    %v1075 = vpop.f32.mrb[0].mxu0
    %1076 = vmatprep.mubr.f32.mxu0 0.0
    %v1077 = vand.u32 %v600, 4294901760
    %1078 = vmatmul.mubr.f32.gmra.mrb[0].mxu0 %v1077
    %v1079 = vpop.f32.mrb[0].mxu0
    %v1080 = vadd.f32 %v775, %v1079
    %v1081 = vpop.f32.mrb[0].mxu0
    %1082 = vmatprep.mubr.f32.mxu0 0.0
    %v1083 = vand.u32 %v603, 4294901760
    %1084 = vmatmul.mubr.f32.gmra.mrb[0].mxu0 %v1083
    %v1085 = vpop.f32.mrb[0].mxu0
    %v1086 = vadd.f32 %v785, %v1085
    %v1087 = vpop.f32.mrb[0].mxu0
    %1088 = vmatprep.mubr.f32.mxu0 0.0
    %v1089 = vand.u32 %v606, 4294901760
    %1090 = vmatmul.mubr.f32.gmra.mrb[0].mxu0 %v1089
    %v1091 = vpop.f32.mrb[0].mxu0
    %v1092 = vadd.f32 %v795, %v1091
    %v1093 = vpop.f32.mrb[0].mxu0
    %1094 = vmatprep.mubr.f32.mxu0 0.0
    %v1095 = vand.u32 %v609, 4294901760
    %1096 = vmatmul.mubr.f32.gmra.mrb[0].mxu0 %v1095
    %v1097 = vpop.f32.mrb[0].mxu0
    %v1098 = vadd.f32 %v805, %v1097
    %v1099 = vpop.f32.mrb[0].mxu0
    %1100 = vmatprep.mubr.f32.mxu0 0.0
    %v1101 = vand.u32 %v612, 4294901760
    %1102 = vmatmul.mubr.f32.gmra.mrb[0].mxu0 %v1101
    %v1103 = vpop.f32.mrb[0].mxu0
    %v1104 = vadd.f32 %v815, %v1103
    %v1105 = vpop.f32.mrb[0].mxu0
    %1106 = vmatprep.mubr.f32.mxu0 0.0
    %v1107 = vand.u32 %v615, 4294901760
    %1108 = vmatmul.mubr.f32.gmra.mrb[0].mxu0 %v1107
    %v1109 = vpop.f32.mrb[0].mxu0
    %v1110 = vadd.f32 %v825, %v1109
    %v1111 = vpop.f32.mrb[0].mxu0
    %1112 = vmatprep.mubr.f32.mxu0 0.0
    %v1113 = vand.u32 %v618, 4294901760
    %1114 = vmatmul.mubr.f32.gmra.mrb[0].mxu0 %v1113
    %v1115 = vpop.f32.mrb[0].mxu0
    %v1116 = vadd.f32 %v835, %v1115
    %v1117 = vpop.f32.mrb[0].mxu0
    %1118 = vmatprep.mubr.f32.mxu0 0.0
    %v1119 = vand.u32 %v621, 4294901760
    %1120 = vmatmul.mubr.f32.gmra.mrb[0].mxu0 %v1119
    %v1121 = vpop.f32.mrb[0].mxu0
    %v1122 = vadd.f32 %v845, %v1121
    %v1123 = vpop.f32.mrb[0].mxu0
    %1124 = vmatprep.mubr.f32.mxu0 0.0
    %v1125 = vand.u32 %v624, 4294901760
    %1126 = vmatmul.mubr.f32.gmra.mrb[0].mxu0 %v1125
    %v1127 = vpop.f32.mrb[0].mxu0
    %v1128 = vadd.f32 %v855, %v1127
    %v1129 = vpop.f32.mrb[0].mxu0
    %1130 = vmatprep.mubr.f32.mxu0 0.0
    %v1131 = vand.u32 %v627, 4294901760
    %1132 = vmatmul.mubr.f32.gmra.mrb[0].mxu0 %v1131
    %v1133 = vpop.f32.mrb[0].mxu0
    %v1134 = vadd.f32 %v865, %v1133
    %v1135 = vpop.f32.mrb[0].mxu0
    %1136 = vmatprep.mubr.f32.mxu0 0.0
    %v1137 = vand.u32 %v630, 4294901760
    %1138 = vmatmul.mubr.f32.gmra.mrb[0].mxu0 %v1137
    %v1139 = vpop.f32.mrb[0].mxu0
    %v1140 = vadd.f32 %v875, %v1139
    %v1141 = vpop.f32.mrb[0].mxu0
    %1142 = vmatprep.mubr.f32.mxu0 0.0
    %v1143 = vand.u32 %v633, 4294901760
    %1144 = vmatmul.mubr.f32.gmra.mrb[0].mxu0 %v1143
    %v1145 = vpop.f32.mrb[0].mxu0
    %v1146 = vadd.f32 %v885, %v1145
    %v1147 = vpop.f32.mrb[0].mxu0
    %1148 = vmatprep.mubr.f32.mxu0 0.0
    %v1149 = vand.u32 %v636, 4294901760
    %1150 = vmatmul.mubr.f32.gmra.mrb[0].mxu0 %v1149
    %v1151 = vpop.f32.mrb[0].mxu0
    %v1152 = vadd.f32 %v895, %v1151
    %v1153 = vpop.f32.mrb[0].mxu0
    %1154 = vmatprep.mubr.f32.mxu0 0.0
    %v1155 = vand.u32 %v639, 4294901760
    %1156 = vmatmul.mubr.f32.gmra.mrb[0].mxu0 %v1155
    %v1157 = vpop.f32.mrb[0].mxu0
    %v1158 = vadd.f32 %v905, %v1157
    %v1159 = vpop.f32.mrb[0].mxu0
    %1160 = vmatprep.mubr.f32.mxu0 0.0
    %v1161 = vand.u32 %v642, 4294901760
    %1162 = vmatmul.mubr.f32.gmra.mrb[0].mxu0 %v1161
    %v1163 = vpop.f32.mrb[0].mxu0
    %v1164 = vadd.f32 %v915, %v1163
    %v1165 = vpop.f32.mrb[0].mxu0
    %1166 = vmatprep.mubr.f32.mxu0 0.0
    %v1167 = vand.u32 %v645, 4294901760
    %1168 = vmatmul.mubr.f32.gmra.mrb[0].mxu0 %v1167
    %v1169 = vpop.f32.mrb[0].mxu0
    %v1170 = vadd.f32 %v925, %v1169
    %v1171 = vpop.f32.mrb[0].mxu0
    %1172 = vmatprep.mubr.f32.mxu0 0.0
    %v1173 = vand.u32 %v648, 4294901760
    %1174 = vmatmul.mubr.f32.gmra.mrb[0].mxu0 %v1173
    %v1175 = vpop.f32.mrb[0].mxu0
    %v1176 = vadd.f32 %v935, %v1175
    %v1177 = vpop.f32.mrb[0].mxu0
    %1178 = vmatprep.mubr.f32.mxu0 0.0
    %v1179 = vand.u32 %v651, 4294901760
    %1180 = vmatmul.mubr.f32.gmra.mrb[0].mxu0 %v1179
    %v1181 = vpop.f32.mrb[0].mxu0
    %v1182 = vadd.f32 %v945, %v1181
    %v1183 = vpop.f32.mrb[0].mxu0
    %1184 = vmatprep.mubr.f32.mxu0 0.0
    %v1185 = vand.u32 %v654, 4294901760
    %1186 = vmatmul.mubr.f32.gmra.mrb[0].mxu0 %v1185
    %v1187 = vpop.f32.mrb[0].mxu0
    %v1188 = vadd.f32 %v955, %v1187
    %v1189 = vpop.f32.mrb[0].mxu0
    %1190 = vmatprep.mubr.f32.mxu0 0.0
    %v1191 = vand.u32 %v657, 4294901760
    %1192 = vmatmul.mubr.f32.gmra.mrb[0].mxu0 %v1191
    %v1193 = vpop.f32.mrb[0].mxu0
    %v1194 = vadd.f32 %v965, %v1193
    %v1195 = vpop.f32.mrb[0].mxu0
    %1196 = vdwg.mxu0
    %1197 = vmatprep.subr.mxu0 0.0
    %v1198 = vand.u32 %v583, 4294901760
    %v1199 = vsub.f32 %v583, %v1198
    %1200 = vmatpush1.msra.mxu0 %v1199
    %1201 = vmatprep.subr.mxu0 0.0
    %v1202 = vand.u32 %v584, 4294901760
    %v1203 = vsub.f32 %v584, %v1202
    %1204 = vmatpush1.msra.mxu0 %v1203
    %1205 = vmatprep.subr.mxu0 0.0
    %v1206 = vand.u32 %v585, 4294901760
    %v1207 = vsub.f32 %v585, %v1206
    %1208 = vmatpush1.msra.mxu0 %v1207
    %1209 = vmatprep.subr.mxu0 0.0
    %v1210 = vand.u32 %v586, 4294901760
    %v1211 = vsub.f32 %v586, %v1210
    %1212 = vmatpush1.msra.mxu0 %v1211
    %1213 = vmatprep.subr.mxu0 0.0
    %1214 = vmatpush1.msra.mxu0 0.0
    %1215 = vmatprep.subr.mxu0 0.0
    %1216 = vmatpush1.msra.mxu0 0.0
    %1217 = vmatprep.subr.mxu0 0.0
    %1218 = vmatpush1.msra.mxu0 0.0
    %1219 = vmatprep.subr.mxu0 0.0
    %1220 = vmatpush1.msra.mxu0 0.0
    %1221 = vmatprep.subr.mxu0 0.0
    %1222 = vmatpush1.msra.mxu0 0.0
    %1223 = vmatprep.subr.mxu0 0.0
    %1224 = vmatpush1.msra.mxu0 0.0
    %1225 = vmatprep.subr.mxu0 0.0
    %1226 = vmatpush1.msra.mxu0 0.0
    %1227 = vmatprep.subr.mxu0 0.0
    %1228 = vmatpush1.msra.mxu0 0.0
    %1229 = vmatprep.subr.mxu0 0.0
    %1230 = vmatpush1.msra.mxu0 0.0
    %1231 = vmatprep.subr.mxu0 0.0
    %1232 = vmatpush1.msra.mxu0 0.0
    %1233 = vmatprep.subr.mxu0 0.0
    %1234 = vmatpush1.msra.mxu0 0.0
    %1235 = vmatprep.subr.mxu0 0.0
    %1236 = vmatpush1.msra.mxu0 0.0
    %1237 = vmatprep.subr.mxu0 0.0
    %1238 = vmatpush1.msra.mxu0 0.0
    %1239 = vmatprep.subr.mxu0 0.0
    %1240 = vmatpush1.msra.mxu0 0.0
    %1241 = vmatprep.subr.mxu0 0.0
    %1242 = vmatpush1.msra.mxu0 0.0
    %1243 = vmatprep.subr.mxu0 0.0
    %1244 = vmatpush1.msra.mxu0 0.0
    %1245 = vmatprep.subr.mxu0 0.0
    %1246 = vmatpush1.msra.mxu0 0.0
    %1247 = vmatprep.subr.mxu0 0.0
    %1248 = vmatpush1.msra.mxu0 0.0
    %1249 = vmatprep.subr.mxu0 0.0
    %1250 = vmatpush1.msra.mxu0 0.0
    %1251 = vmatprep.subr.mxu0 0.0
    %1252 = vmatpush1.msra.mxu0 0.0
    %1253 = vmatprep.subr.mxu0 0.0
    %1254 = vmatpush1.msra.mxu0 0.0
    %1255 = vmatprep.subr.mxu0 0.0
    %1256 = vmatpush1.msra.mxu0 0.0
    %1257 = vmatprep.subr.mxu0 0.0
    %1258 = vmatpush1.msra.mxu0 0.0
    %1259 = vmatprep.subr.mxu0 0.0
    %1260 = vmatpush1.msra.mxu0 0.0
    %1261 = vmatprep.subr.mxu0 0.0
    %1262 = vmatpush1.msra.mxu0 0.0
    %1263 = vmatprep.subr.mxu0 0.0
    %1264 = vmatpush1.msra.mxu0 0.0
    %1265 = vmatprep.subr.mxu0 0.0
    %1266 = vmatpush1.msra.mxu0 0.0
    %1267 = vmatprep.subr.mxu0 0.0
    %1268 = vmatpush1.msra.mxu0 0.0
    %1269 = vmatprep.mubr.f32.mxu0 0.0
    %v1270 = vand.u32 %v588, 4294901760
    %v1271 = vsub.f32 %v588, %v1270
    %1272 = vmatmul.mubr.f32.gmra.mrb[0].mxu0 %v1271
    %v1273 = vpop.f32.mrb[0].mxu0
    %v1274 = vadd.f32 %v1056, %v1273
    %v1275 = vpop.f32.mrb[0].mxu0
    %1276 = vmatprep.mubr.f32.mxu0 0.0
    %v1277 = vand.u32 %v591, 4294901760
    %v1278 = vsub.f32 %v591, %v1277
    %1279 = vmatmul.mubr.f32.gmra.mrb[0].mxu0 %v1278
    %v1280 = vpop.f32.mrb[0].mxu0
    %v1281 = vadd.f32 %v1062, %v1280
    %v1282 = vpop.f32.mrb[0].mxu0
    %1283 = vmatprep.mubr.f32.mxu0 0.0
    %v1284 = vand.u32 %v594, 4294901760
    %v1285 = vsub.f32 %v594, %v1284
    %1286 = vmatmul.mubr.f32.gmra.mrb[0].mxu0 %v1285
    %v1287 = vpop.f32.mrb[0].mxu0
    %v1288 = vadd.f32 %v1068, %v1287
    %v1289 = vpop.f32.mrb[0].mxu0
    %1290 = vmatprep.mubr.f32.mxu0 0.0
    %v1291 = vand.u32 %v597, 4294901760
    %v1292 = vsub.f32 %v597, %v1291
    %1293 = vmatmul.mubr.f32.gmra.mrb[0].mxu0 %v1292
    %v1294 = vpop.f32.mrb[0].mxu0
    %v1295 = vadd.f32 %v1074, %v1294
    %v1296 = vpop.f32.mrb[0].mxu0
    %1297 = vmatprep.mubr.f32.mxu0 0.0
    %v1298 = vand.u32 %v600, 4294901760
    %v1299 = vsub.f32 %v600, %v1298
    %1300 = vmatmul.mubr.f32.gmra.mrb[0].mxu0 %v1299
    %v1301 = vpop.f32.mrb[0].mxu0
    %v1302 = vadd.f32 %v1080, %v1301
    %v1303 = vpop.f32.mrb[0].mxu0
    %1304 = vmatprep.mubr.f32.mxu0 0.0
    %v1305 = vand.u32 %v603, 4294901760
    %v1306 = vsub.f32 %v603, %v1305
    %1307 = vmatmul.mubr.f32.gmra.mrb[0].mxu0 %v1306
    %v1308 = vpop.f32.mrb[0].mxu0
    %v1309 = vadd.f32 %v1086, %v1308
    %v1310 = vpop.f32.mrb[0].mxu0
    %1311 = vmatprep.mubr.f32.mxu0 0.0
    %v1312 = vand.u32 %v606, 4294901760
    %v1313 = vsub.f32 %v606, %v1312
    %1314 = vmatmul.mubr.f32.gmra.mrb[0].mxu0 %v1313
    %v1315 = vpop.f32.mrb[0].mxu0
    %v1316 = vadd.f32 %v1092, %v1315
    %v1317 = vpop.f32.mrb[0].mxu0
    %1318 = vmatprep.mubr.f32.mxu0 0.0
    %v1319 = vand.u32 %v609, 4294901760
    %v1320 = vsub.f32 %v609, %v1319
    %1321 = vmatmul.mubr.f32.gmra.mrb[0].mxu0 %v1320
    %v1322 = vpop.f32.mrb[0].mxu0
    %v1323 = vadd.f32 %v1098, %v1322
    %v1324 = vpop.f32.mrb[0].mxu0
    %1325 = vmatprep.mubr.f32.mxu0 0.0
    %v1326 = vand.u32 %v612, 4294901760
    %v1327 = vsub.f32 %v612, %v1326
    %1328 = vmatmul.mubr.f32.gmra.mrb[0].mxu0 %v1327
    %v1329 = vpop.f32.mrb[0].mxu0
    %v1330 = vadd.f32 %v1104, %v1329
    %v1331 = vpop.f32.mrb[0].mxu0
    %1332 = vmatprep.mubr.f32.mxu0 0.0
    %v1333 = vand.u32 %v615, 4294901760
    %v1334 = vsub.f32 %v615, %v1333
    %1335 = vmatmul.mubr.f32.gmra.mrb[0].mxu0 %v1334
    %v1336 = vpop.f32.mrb[0].mxu0
    %v1337 = vadd.f32 %v1110, %v1336
    %v1338 = vpop.f32.mrb[0].mxu0
    %1339 = vmatprep.mubr.f32.mxu0 0.0
    %v1340 = vand.u32 %v618, 4294901760
    %v1341 = vsub.f32 %v618, %v1340
    %1342 = vmatmul.mubr.f32.gmra.mrb[0].mxu0 %v1341
    %v1343 = vpop.f32.mrb[0].mxu0
    %v1344 = vadd.f32 %v1116, %v1343
    %v1345 = vpop.f32.mrb[0].mxu0
    %1346 = vmatprep.mubr.f32.mxu0 0.0
    %v1347 = vand.u32 %v621, 4294901760
    %v1348 = vsub.f32 %v621, %v1347
    %1349 = vmatmul.mubr.f32.gmra.mrb[0].mxu0 %v1348
    %v1350 = vpop.f32.mrb[0].mxu0
    %v1351 = vadd.f32 %v1122, %v1350
    %v1352 = vpop.f32.mrb[0].mxu0
    %1353 = vmatprep.mubr.f32.mxu0 0.0
    %v1354 = vand.u32 %v624, 4294901760
    %v1355 = vsub.f32 %v624, %v1354
    %1356 = vmatmul.mubr.f32.gmra.mrb[0].mxu0 %v1355
    %v1357 = vpop.f32.mrb[0].mxu0
    %v1358 = vadd.f32 %v1128, %v1357
    %v1359 = vpop.f32.mrb[0].mxu0
    %1360 = vmatprep.mubr.f32.mxu0 0.0
    %v1361 = vand.u32 %v627, 4294901760
    %v1362 = vsub.f32 %v627, %v1361
    %1363 = vmatmul.mubr.f32.gmra.mrb[0].mxu0 %v1362
    %v1364 = vpop.f32.mrb[0].mxu0
    %v1365 = vadd.f32 %v1134, %v1364
    %v1366 = vpop.f32.mrb[0].mxu0
    %1367 = vmatprep.mubr.f32.mxu0 0.0
    %v1368 = vand.u32 %v630, 4294901760
    %v1369 = vsub.f32 %v630, %v1368
    %1370 = vmatmul.mubr.f32.gmra.mrb[0].mxu0 %v1369
    %v1371 = vpop.f32.mrb[0].mxu0
    %v1372 = vadd.f32 %v1140, %v1371
    %v1373 = vpop.f32.mrb[0].mxu0
    %1374 = vmatprep.mubr.f32.mxu0 0.0
    %v1375 = vand.u32 %v633, 4294901760
    %v1376 = vsub.f32 %v633, %v1375
    %1377 = vmatmul.mubr.f32.gmra.mrb[0].mxu0 %v1376
    %v1378 = vpop.f32.mrb[0].mxu0
    %v1379 = vadd.f32 %v1146, %v1378
    %v1380 = vpop.f32.mrb[0].mxu0
    %1381 = vmatprep.mubr.f32.mxu0 0.0
    %v1382 = vand.u32 %v636, 4294901760
    %v1383 = vsub.f32 %v636, %v1382
    %1384 = vmatmul.mubr.f32.gmra.mrb[0].mxu0 %v1383
    %v1385 = vpop.f32.mrb[0].mxu0
    %v1386 = vadd.f32 %v1152, %v1385
    %v1387 = vpop.f32.mrb[0].mxu0
    %1388 = vmatprep.mubr.f32.mxu0 0.0
    %v1389 = vand.u32 %v639, 4294901760
    %v1390 = vsub.f32 %v639, %v1389
    %1391 = vmatmul.mubr.f32.gmra.mrb[0].mxu0 %v1390
    %v1392 = vpop.f32.mrb[0].mxu0
    %v1393 = vadd.f32 %v1158, %v1392
    %v1394 = vpop.f32.mrb[0].mxu0
    %1395 = vmatprep.mubr.f32.mxu0 0.0
    %v1396 = vand.u32 %v642, 4294901760
    %v1397 = vsub.f32 %v642, %v1396
    %1398 = vmatmul.mubr.f32.gmra.mrb[0].mxu0 %v1397
    %v1399 = vpop.f32.mrb[0].mxu0
    %v1400 = vadd.f32 %v1164, %v1399
    %v1401 = vpop.f32.mrb[0].mxu0
    %1402 = vmatprep.mubr.f32.mxu0 0.0
    %v1403 = vand.u32 %v645, 4294901760
    %v1404 = vsub.f32 %v645, %v1403
    %1405 = vmatmul.mubr.f32.gmra.mrb[0].mxu0 %v1404
    %v1406 = vpop.f32.mrb[0].mxu0
    %v1407 = vadd.f32 %v1170, %v1406
    %v1408 = vpop.f32.mrb[0].mxu0
    %1409 = vmatprep.mubr.f32.mxu0 0.0
    %v1410 = vand.u32 %v648, 4294901760
    %v1411 = vsub.f32 %v648, %v1410
    %1412 = vmatmul.mubr.f32.gmra.mrb[0].mxu0 %v1411
    %v1413 = vpop.f32.mrb[0].mxu0
    %v1414 = vadd.f32 %v1176, %v1413
    %v1415 = vpop.f32.mrb[0].mxu0
    %1416 = vmatprep.mubr.f32.mxu0 0.0
    %v1417 = vand.u32 %v651, 4294901760
    %v1418 = vsub.f32 %v651, %v1417
    %1419 = vmatmul.mubr.f32.gmra.mrb[0].mxu0 %v1418
    %v1420 = vpop.f32.mrb[0].mxu0
    %v1421 = vadd.f32 %v1182, %v1420
    %v1422 = vpop.f32.mrb[0].mxu0
    %1423 = vmatprep.mubr.f32.mxu0 0.0
    %v1424 = vand.u32 %v654, 4294901760
    %v1425 = vsub.f32 %v654, %v1424
    %1426 = vmatmul.mubr.f32.gmra.mrb[0].mxu0 %v1425
    %v1427 = vpop.f32.mrb[0].mxu0
    %v1428 = vadd.f32 %v1188, %v1427
    %v1429 = vpop.f32.mrb[0].mxu0
    %1430 = vmatprep.mubr.f32.mxu0 0.0
    %v1431 = vand.u32 %v657, 4294901760
    %v1432 = vsub.f32 %v657, %v1431
    %1433 = vmatmul.mubr.f32.gmra.mrb[0].mxu0 %v1432
    %v1434 = vpop.f32.mrb[0].mxu0
    %v1435 = vadd.f32 %v1194, %v1434
    %v1436 = vpop.f32.mrb[0].mxu0
    %1437 = vdwg.mxu0
    %1438 = vmatprep.subr.mxu0 0.0
    %v1439 = vand.u32 %v583, 4294901760
    %1440 = vmatpush1.msra.mxu0 %v1439
    %1441 = vmatprep.subr.mxu0 0.0
    %v1442 = vand.u32 %v584, 4294901760
    %1443 = vmatpush1.msra.mxu0 %v1442
    %1444 = vmatprep.subr.mxu0 0.0
    %v1445 = vand.u32 %v585, 4294901760
    %1446 = vmatpush1.msra.mxu0 %v1445
    %1447 = vmatprep.subr.mxu0 0.0
    %v1448 = vand.u32 %v586, 4294901760
    %1449 = vmatpush1.msra.mxu0 %v1448
    %1450 = vmatprep.subr.mxu0 0.0
    %1451 = vmatpush1.msra.mxu0 0.0
    %1452 = vmatprep.subr.mxu0 0.0
    %1453 = vmatpush1.msra.mxu0 0.0
    %1454 = vmatprep.subr.mxu0 0.0
    %1455 = vmatpush1.msra.mxu0 0.0
    %1456 = vmatprep.subr.mxu0 0.0
    %1457 = vmatpush1.msra.mxu0 0.0
    %1458 = vmatprep.subr.mxu0 0.0
    %1459 = vmatpush1.msra.mxu0 0.0
    %1460 = vmatprep.subr.mxu0 0.0
    %1461 = vmatpush1.msra.mxu0 0.0
    %1462 = vmatprep.subr.mxu0 0.0
    %1463 = vmatpush1.msra.mxu0 0.0
    %1464 = vmatprep.subr.mxu0 0.0
    %1465 = vmatpush1.msra.mxu0 0.0
    %1466 = vmatprep.subr.mxu0 0.0
    %1467 = vmatpush1.msra.mxu0 0.0
    %1468 = vmatprep.subr.mxu0 0.0
    %1469 = vmatpush1.msra.mxu0 0.0
    %1470 = vmatprep.subr.mxu0 0.0
    %1471 = vmatpush1.msra.mxu0 0.0
    %1472 = vmatprep.subr.mxu0 0.0
    %1473 = vmatpush1.msra.mxu0 0.0
    %1474 = vmatprep.subr.mxu0 0.0
    %1475 = vmatpush1.msra.mxu0 0.0
    %1476 = vmatprep.subr.mxu0 0.0
    %1477 = vmatpush1.msra.mxu0 0.0
    %1478 = vmatprep.subr.mxu0 0.0
    %1479 = vmatpush1.msra.mxu0 0.0
    %1480 = vmatprep.subr.mxu0 0.0
    %1481 = vmatpush1.msra.mxu0 0.0
    %1482 = vmatprep.subr.mxu0 0.0
    %1483 = vmatpush1.msra.mxu0 0.0
    %1484 = vmatprep.subr.mxu0 0.0
    %1485 = vmatpush1.msra.mxu0 0.0
    %1486 = vmatprep.subr.mxu0 0.0
    %1487 = vmatpush1.msra.mxu0 0.0
    %1488 = vmatprep.subr.mxu0 0.0
    %1489 = vmatpush1.msra.mxu0 0.0
    %1490 = vmatprep.subr.mxu0 0.0
    %1491 = vmatpush1.msra.mxu0 0.0
    %1492 = vmatprep.subr.mxu0 0.0
    %1493 = vmatpush1.msra.mxu0 0.0
    %1494 = vmatprep.subr.mxu0 0.0
    %1495 = vmatpush1.msra.mxu0 0.0
    %1496 = vmatprep.subr.mxu0 0.0
    %1497 = vmatpush1.msra.mxu0 0.0
    %1498 = vmatprep.subr.mxu0 0.0
    %1499 = vmatpush1.msra.mxu0 0.0
    %1500 = vmatprep.subr.mxu0 0.0
    %1501 = vmatpush1.msra.mxu0 0.0
    %1502 = vmatprep.subr.mxu0 0.0
    %1503 = vmatpush1.msra.mxu0 0.0
    %1504 = vmatprep.subr.mxu0 0.0
    %1505 = vmatpush1.msra.mxu0 0.0
    %1506 = vmatprep.mubr.f32.mxu0 0.0
    %v1507 = vand.u32 %v588, 4294901760
    %v1508 = vsub.f32 %v588, %v1507
    %v1509 = vand.u32 %v1508, 4294901760
    %1510 = vmatmul.mubr.f32.gmra.mrb[0].mxu0 %v1509
    %v1511 = vpop.f32.mrb[0].mxu0
    %v1512 = vadd.f32 %v1274, %v1511
    %v1513 = vpop.f32.mrb[0].mxu0
    %1514 = vmatprep.mubr.f32.mxu0 0.0
    %v1515 = vand.u32 %v591, 4294901760
    %v1516 = vsub.f32 %v591, %v1515
    %v1517 = vand.u32 %v1516, 4294901760
    %1518 = vmatmul.mubr.f32.gmra.mrb[0].mxu0 %v1517
    %v1519 = vpop.f32.mrb[0].mxu0
    %v1520 = vadd.f32 %v1281, %v1519
    %v1521 = vpop.f32.mrb[0].mxu0
    %1522 = vmatprep.mubr.f32.mxu0 0.0
    %v1523 = vand.u32 %v594, 4294901760
    %v1524 = vsub.f32 %v594, %v1523
    %v1525 = vand.u32 %v1524, 4294901760
    %1526 = vmatmul.mubr.f32.gmra.mrb[0].mxu0 %v1525
    %v1527 = vpop.f32.mrb[0].mxu0
    %v1528 = vadd.f32 %v1288, %v1527
    %v1529 = vpop.f32.mrb[0].mxu0
    %1530 = vmatprep.mubr.f32.mxu0 0.0
    %v1531 = vand.u32 %v597, 4294901760
    %v1532 = vsub.f32 %v597, %v1531
    %v1533 = vand.u32 %v1532, 4294901760
    %1534 = vmatmul.mubr.f32.gmra.mrb[0].mxu0 %v1533
    %v1535 = vpop.f32.mrb[0].mxu0
    %v1536 = vadd.f32 %v1295, %v1535
    %v1537 = vpop.f32.mrb[0].mxu0
    %1538 = vmatprep.mubr.f32.mxu0 0.0
    %v1539 = vand.u32 %v600, 4294901760
    %v1540 = vsub.f32 %v600, %v1539
    %v1541 = vand.u32 %v1540, 4294901760
    %1542 = vmatmul.mubr.f32.gmra.mrb[0].mxu0 %v1541
    %v1543 = vpop.f32.mrb[0].mxu0
    %v1544 = vadd.f32 %v1302, %v1543
    %v1545 = vpop.f32.mrb[0].mxu0
    %1546 = vmatprep.mubr.f32.mxu0 0.0
    %v1547 = vand.u32 %v603, 4294901760
    %v1548 = vsub.f32 %v603, %v1547
    %v1549 = vand.u32 %v1548, 4294901760
    %1550 = vmatmul.mubr.f32.gmra.mrb[0].mxu0 %v1549
    %v1551 = vpop.f32.mrb[0].mxu0
    %v1552 = vadd.f32 %v1309, %v1551
    %v1553 = vpop.f32.mrb[0].mxu0
    %1554 = vmatprep.mubr.f32.mxu0 0.0
    %v1555 = vand.u32 %v606, 4294901760
    %v1556 = vsub.f32 %v606, %v1555
    %v1557 = vand.u32 %v1556, 4294901760
    %1558 = vmatmul.mubr.f32.gmra.mrb[0].mxu0 %v1557
    %v1559 = vpop.f32.mrb[0].mxu0
    %v1560 = vadd.f32 %v1316, %v1559
    %v1561 = vpop.f32.mrb[0].mxu0
    %1562 = vmatprep.mubr.f32.mxu0 0.0
    %v1563 = vand.u32 %v609, 4294901760
    %v1564 = vsub.f32 %v609, %v1563
    %v1565 = vand.u32 %v1564, 4294901760
    %1566 = vmatmul.mubr.f32.gmra.mrb[0].mxu0 %v1565
    %v1567 = vpop.f32.mrb[0].mxu0
    %v1568 = vadd.f32 %v1323, %v1567
    %v1569 = vpop.f32.mrb[0].mxu0
    %1570 = vmatprep.mubr.f32.mxu0 0.0
    %v1571 = vand.u32 %v612, 4294901760
    %v1572 = vsub.f32 %v612, %v1571
    %v1573 = vand.u32 %v1572, 4294901760
    %1574 = vmatmul.mubr.f32.gmra.mrb[0].mxu0 %v1573
    %v1575 = vpop.f32.mrb[0].mxu0
    %v1576 = vadd.f32 %v1330, %v1575
    %v1577 = vpop.f32.mrb[0].mxu0
    %1578 = vmatprep.mubr.f32.mxu0 0.0
    %v1579 = vand.u32 %v615, 4294901760
    %v1580 = vsub.f32 %v615, %v1579
    %v1581 = vand.u32 %v1580, 4294901760
    %1582 = vmatmul.mubr.f32.gmra.mrb[0].mxu0 %v1581
    %v1583 = vpop.f32.mrb[0].mxu0
    %v1584 = vadd.f32 %v1337, %v1583
    %v1585 = vpop.f32.mrb[0].mxu0
    %1586 = vmatprep.mubr.f32.mxu0 0.0
    %v1587 = vand.u32 %v618, 4294901760
    %v1588 = vsub.f32 %v618, %v1587
    %v1589 = vand.u32 %v1588, 4294901760
    %1590 = vmatmul.mubr.f32.gmra.mrb[0].mxu0 %v1589
    %v1591 = vpop.f32.mrb[0].mxu0
    %v1592 = vadd.f32 %v1344, %v1591
    %v1593 = vpop.f32.mrb[0].mxu0
    %1594 = vmatprep.mubr.f32.mxu0 0.0
    %v1595 = vand.u32 %v621, 4294901760
    %v1596 = vsub.f32 %v621, %v1595
    %v1597 = vand.u32 %v1596, 4294901760
    %1598 = vmatmul.mubr.f32.gmra.mrb[0].mxu0 %v1597
    %v1599 = vpop.f32.mrb[0].mxu0
    %v1600 = vadd.f32 %v1351, %v1599
    %v1601 = vpop.f32.mrb[0].mxu0
    %1602 = vmatprep.mubr.f32.mxu0 0.0
    %v1603 = vand.u32 %v624, 4294901760
    %v1604 = vsub.f32 %v624, %v1603
    %v1605 = vand.u32 %v1604, 4294901760
    %1606 = vmatmul.mubr.f32.gmra.mrb[0].mxu0 %v1605
    %v1607 = vpop.f32.mrb[0].mxu0
    %v1608 = vadd.f32 %v1358, %v1607
    %v1609 = vpop.f32.mrb[0].mxu0
    %1610 = vmatprep.mubr.f32.mxu0 0.0
    %v1611 = vand.u32 %v627, 4294901760
    %v1612 = vsub.f32 %v627, %v1611
    %v1613 = vand.u32 %v1612, 4294901760
    %1614 = vmatmul.mubr.f32.gmra.mrb[0].mxu0 %v1613
    %v1615 = vpop.f32.mrb[0].mxu0
    %v1616 = vadd.f32 %v1365, %v1615
    %v1617 = vpop.f32.mrb[0].mxu0
    %1618 = vmatprep.mubr.f32.mxu0 0.0
    %v1619 = vand.u32 %v630, 4294901760
    %v1620 = vsub.f32 %v630, %v1619
    %v1621 = vand.u32 %v1620, 4294901760
    %1622 = vmatmul.mubr.f32.gmra.mrb[0].mxu0 %v1621
    %v1623 = vpop.f32.mrb[0].mxu0
    %v1624 = vadd.f32 %v1372, %v1623
    %v1625 = vpop.f32.mrb[0].mxu0
    %1626 = vmatprep.mubr.f32.mxu0 0.0
    %v1627 = vand.u32 %v633, 4294901760
    %v1628 = vsub.f32 %v633, %v1627
    %v1629 = vand.u32 %v1628, 4294901760
    %1630 = vmatmul.mubr.f32.gmra.mrb[0].mxu0 %v1629
    %v1631 = vpop.f32.mrb[0].mxu0
    %v1632 = vadd.f32 %v1379, %v1631
    %v1633 = vpop.f32.mrb[0].mxu0
    %1634 = vmatprep.mubr.f32.mxu0 0.0
    %v1635 = vand.u32 %v636, 4294901760
    %v1636 = vsub.f32 %v636, %v1635
    %v1637 = vand.u32 %v1636, 4294901760
    %1638 = vmatmul.mubr.f32.gmra.mrb[0].mxu0 %v1637
    %v1639 = vpop.f32.mrb[0].mxu0
    %v1640 = vadd.f32 %v1386, %v1639
    %v1641 = vpop.f32.mrb[0].mxu0
    %1642 = vmatprep.mubr.f32.mxu0 0.0
    %v1643 = vand.u32 %v639, 4294901760
    %v1644 = vsub.f32 %v639, %v1643
    %v1645 = vand.u32 %v1644, 4294901760
    %1646 = vmatmul.mubr.f32.gmra.mrb[0].mxu0 %v1645
    %v1647 = vpop.f32.mrb[0].mxu0
    %v1648 = vadd.f32 %v1393, %v1647
    %v1649 = vpop.f32.mrb[0].mxu0
    %1650 = vmatprep.mubr.f32.mxu0 0.0
    %v1651 = vand.u32 %v642, 4294901760
    %v1652 = vsub.f32 %v642, %v1651
    %v1653 = vand.u32 %v1652, 4294901760
    %1654 = vmatmul.mubr.f32.gmra.mrb[0].mxu0 %v1653
    %v1655 = vpop.f32.mrb[0].mxu0
    %v1656 = vadd.f32 %v1400, %v1655
    %v1657 = vpop.f32.mrb[0].mxu0
    %1658 = vmatprep.mubr.f32.mxu0 0.0
    %v1659 = vand.u32 %v645, 4294901760
    %v1660 = vsub.f32 %v645, %v1659
    %v1661 = vand.u32 %v1660, 4294901760
    %1662 = vmatmul.mubr.f32.gmra.mrb[0].mxu0 %v1661
    %v1663 = vpop.f32.mrb[0].mxu0
    %v1664 = vadd.f32 %v1407, %v1663
    %v1665 = vpop.f32.mrb[0].mxu0
    %1666 = vmatprep.mubr.f32.mxu0 0.0
    %v1667 = vand.u32 %v648, 4294901760
    %v1668 = vsub.f32 %v648, %v1667
    %v1669 = vand.u32 %v1668, 4294901760
    %1670 = vmatmul.mubr.f32.gmra.mrb[0].mxu0 %v1669
    %v1671 = vpop.f32.mrb[0].mxu0
    %v1672 = vadd.f32 %v1414, %v1671
    %v1673 = vpop.f32.mrb[0].mxu0
    %1674 = vmatprep.mubr.f32.mxu0 0.0
    %v1675 = vand.u32 %v651, 4294901760
    %v1676 = vsub.f32 %v651, %v1675
    %v1677 = vand.u32 %v1676, 4294901760
    %1678 = vmatmul.mubr.f32.gmra.mrb[0].mxu0 %v1677
    %v1679 = vpop.f32.mrb[0].mxu0
    %v1680 = vadd.f32 %v1421, %v1679
    %v1681 = vpop.f32.mrb[0].mxu0
    %1682 = vmatprep.mubr.f32.mxu0 0.0
    %v1683 = vand.u32 %v654, 4294901760
    %v1684 = vsub.f32 %v654, %v1683
    %v1685 = vand.u32 %v1684, 4294901760
    %1686 = vmatmul.mubr.f32.gmra.mrb[0].mxu0 %v1685
    %v1687 = vpop.f32.mrb[0].mxu0
    %v1688 = vadd.f32 %v1428, %v1687
    %v1689 = vpop.f32.mrb[0].mxu0
    %1690 = vmatprep.mubr.f32.mxu0 0.0
    %v1691 = vand.u32 %v657, 4294901760
    %v1692 = vsub.f32 %v657, %v1691
    %v1693 = vand.u32 %v1692, 4294901760
    %1694 = vmatmul.mubr.f32.gmra.mrb[0].mxu0 %v1693
    %v1695 = vpop.f32.mrb[0].mxu0
    %v1696 = vadd.f32 %v1435, %v1695
    %v1697 = vpop.f32.mrb[0].mxu0
    %1698 = vdwg.mxu0
    %1699 = vmatprep.subr.mxu0 0.0
    %v1700 = vand.u32 %v583, 4294901760
    %v1701 = vsub.f32 %v583, %v1700
    %v1702 = vand.u32 %v1701, 4294901760
    %1703 = vmatpush1.msra.mxu0 %v1702
    %1704 = vmatprep.subr.mxu0 0.0
    %v1705 = vand.u32 %v584, 4294901760
    %v1706 = vsub.f32 %v584, %v1705
    %v1707 = vand.u32 %v1706, 4294901760
    %1708 = vmatpush1.msra.mxu0 %v1707
    %1709 = vmatprep.subr.mxu0 0.0
    %v1710 = vand.u32 %v585, 4294901760
    %v1711 = vsub.f32 %v585, %v1710
    %v1712 = vand.u32 %v1711, 4294901760
    %1713 = vmatpush1.msra.mxu0 %v1712
    %1714 = vmatprep.subr.mxu0 0.0
    %v1715 = vand.u32 %v586, 4294901760
    %v1716 = vsub.f32 %v586, %v1715
    %v1717 = vand.u32 %v1716, 4294901760
    %1718 = vmatpush1.msra.mxu0 %v1717
    %1719 = vmatprep.subr.mxu0 0.0
    %1720 = vmatpush1.msra.mxu0 0.0
    %1721 = vmatprep.subr.mxu0 0.0
    %1722 = vmatpush1.msra.mxu0 0.0
    %1723 = vmatprep.subr.mxu0 0.0
    %1724 = vmatpush1.msra.mxu0 0.0
    %1725 = vmatprep.subr.mxu0 0.0
    %1726 = vmatpush1.msra.mxu0 0.0
    %1727 = vmatprep.subr.mxu0 0.0
    %1728 = vmatpush1.msra.mxu0 0.0
    %1729 = vmatprep.subr.mxu0 0.0
    %1730 = vmatpush1.msra.mxu0 0.0
    %1731 = vmatprep.subr.mxu0 0.0
    %1732 = vmatpush1.msra.mxu0 0.0
    %1733 = vmatprep.subr.mxu0 0.0
    %1734 = vmatpush1.msra.mxu0 0.0
    %1735 = vmatprep.subr.mxu0 0.0
    %1736 = vmatpush1.msra.mxu0 0.0
    %1737 = vmatprep.subr.mxu0 0.0
    %1738 = vmatpush1.msra.mxu0 0.0
    %1739 = vmatprep.subr.mxu0 0.0
    %1740 = vmatpush1.msra.mxu0 0.0
    %1741 = vmatprep.subr.mxu0 0.0
    %1742 = vmatpush1.msra.mxu0 0.0
    %1743 = vmatprep.subr.mxu0 0.0
    %1744 = vmatpush1.msra.mxu0 0.0
    %1745 = vmatprep.subr.mxu0 0.0
    %1746 = vmatpush1.msra.mxu0 0.0
    %1747 = vmatprep.subr.mxu0 0.0
    %1748 = vmatpush1.msra.mxu0 0.0
    %1749 = vmatprep.subr.mxu0 0.0
    %1750 = vmatpush1.msra.mxu0 0.0
    %1751 = vmatprep.subr.mxu0 0.0
    %1752 = vmatpush1.msra.mxu0 0.0
    %1753 = vmatprep.subr.mxu0 0.0
    %1754 = vmatpush1.msra.mxu0 0.0
    %1755 = vmatprep.subr.mxu0 0.0
    %1756 = vmatpush1.msra.mxu0 0.0
    %1757 = vmatprep.subr.mxu0 0.0
    %1758 = vmatpush1.msra.mxu0 0.0
    %1759 = vmatprep.subr.mxu0 0.0
    %1760 = vmatpush1.msra.mxu0 0.0
    %1761 = vmatprep.subr.mxu0 0.0
    %1762 = vmatpush1.msra.mxu0 0.0
    %1763 = vmatprep.subr.mxu0 0.0
    %1764 = vmatpush1.msra.mxu0 0.0
    %1765 = vmatprep.subr.mxu0 0.0
    %1766 = vmatpush1.msra.mxu0 0.0
    %1767 = vmatprep.subr.mxu0 0.0
    %1768 = vmatpush1.msra.mxu0 0.0
    %1769 = vmatprep.subr.mxu0 0.0
    %1770 = vmatpush1.msra.mxu0 0.0
    %1771 = vmatprep.subr.mxu0 0.0
    %1772 = vmatpush1.msra.mxu0 0.0
    %1773 = vmatprep.subr.mxu0 0.0
    %1774 = vmatpush1.msra.mxu0 0.0
    %1775 = vmatprep.mubr.f32.mxu0 0.0
    %v1776 = vand.u32 %v588, 4294901760
    %1777 = vmatmul.mubr.f32.gmra.mrb[0].mxu0 %v1776
    %v1778 = vpop.f32.mrb[0].mxu0
    %v1779 = vadd.f32 %v1512, %v1778
    %v1780 = vpop.f32.mrb[0].mxu0
    %1781 = vmatprep.mubr.f32.mxu0 0.0
    %v1782 = vand.u32 %v591, 4294901760
    %1783 = vmatmul.mubr.f32.gmra.mrb[0].mxu0 %v1782
    %v1784 = vpop.f32.mrb[0].mxu0
    %v1785 = vadd.f32 %v1520, %v1784
    %v1786 = vpop.f32.mrb[0].mxu0
    %1787 = vmatprep.mubr.f32.mxu0 0.0
    %v1788 = vand.u32 %v594, 4294901760
    %1789 = vmatmul.mubr.f32.gmra.mrb[0].mxu0 %v1788
    %v1790 = vpop.f32.mrb[0].mxu0
    %v1791 = vadd.f32 %v1528, %v1790
    %v1792 = vpop.f32.mrb[0].mxu0
    %1793 = vmatprep.mubr.f32.mxu0 0.0
    %v1794 = vand.u32 %v597, 4294901760
    %1795 = vmatmul.mubr.f32.gmra.mrb[0].mxu0 %v1794
    %v1796 = vpop.f32.mrb[0].mxu0
    %v1797 = vadd.f32 %v1536, %v1796
    %v1798 = vpop.f32.mrb[0].mxu0
    %1799 = vmatprep.mubr.f32.mxu0 0.0
    %v1800 = vand.u32 %v600, 4294901760
    %1801 = vmatmul.mubr.f32.gmra.mrb[0].mxu0 %v1800
    %v1802 = vpop.f32.mrb[0].mxu0
    %v1803 = vadd.f32 %v1544, %v1802
    %v1804 = vpop.f32.mrb[0].mxu0
    %1805 = vmatprep.mubr.f32.mxu0 0.0
    %v1806 = vand.u32 %v603, 4294901760
    %1807 = vmatmul.mubr.f32.gmra.mrb[0].mxu0 %v1806
    %v1808 = vpop.f32.mrb[0].mxu0
    %v1809 = vadd.f32 %v1552, %v1808
    %v1810 = vpop.f32.mrb[0].mxu0
    %1811 = vmatprep.mubr.f32.mxu0 0.0
    %v1812 = vand.u32 %v606, 4294901760
    %1813 = vmatmul.mubr.f32.gmra.mrb[0].mxu0 %v1812
    %v1814 = vpop.f32.mrb[0].mxu0
    %v1815 = vadd.f32 %v1560, %v1814
    %v1816 = vpop.f32.mrb[0].mxu0
    %1817 = vmatprep.mubr.f32.mxu0 0.0
    %v1818 = vand.u32 %v609, 4294901760
    %1819 = vmatmul.mubr.f32.gmra.mrb[0].mxu0 %v1818
    %v1820 = vpop.f32.mrb[0].mxu0
    %v1821 = vadd.f32 %v1568, %v1820
    %v1822 = vpop.f32.mrb[0].mxu0
    %1823 = vmatprep.mubr.f32.mxu0 0.0
    %v1824 = vand.u32 %v612, 4294901760
    %1825 = vmatmul.mubr.f32.gmra.mrb[0].mxu0 %v1824
    %v1826 = vpop.f32.mrb[0].mxu0
    %v1827 = vadd.f32 %v1576, %v1826
    %v1828 = vpop.f32.mrb[0].mxu0
    %1829 = vmatprep.mubr.f32.mxu0 0.0
    %v1830 = vand.u32 %v615, 4294901760
    %1831 = vmatmul.mubr.f32.gmra.mrb[0].mxu0 %v1830
    %v1832 = vpop.f32.mrb[0].mxu0
    %v1833 = vadd.f32 %v1584, %v1832
    %v1834 = vpop.f32.mrb[0].mxu0
    %1835 = vmatprep.mubr.f32.mxu0 0.0
    %v1836 = vand.u32 %v618, 4294901760
    %1837 = vmatmul.mubr.f32.gmra.mrb[0].mxu0 %v1836
    %v1838 = vpop.f32.mrb[0].mxu0
    %v1839 = vadd.f32 %v1592, %v1838
    %v1840 = vpop.f32.mrb[0].mxu0
    %1841 = vmatprep.mubr.f32.mxu0 0.0
    %v1842 = vand.u32 %v621, 4294901760
    %1843 = vmatmul.mubr.f32.gmra.mrb[0].mxu0 %v1842
    %v1844 = vpop.f32.mrb[0].mxu0
    %v1845 = vadd.f32 %v1600, %v1844
    %v1846 = vpop.f32.mrb[0].mxu0
    %1847 = vmatprep.mubr.f32.mxu0 0.0
    %v1848 = vand.u32 %v624, 4294901760
    %1849 = vmatmul.mubr.f32.gmra.mrb[0].mxu0 %v1848
    %v1850 = vpop.f32.mrb[0].mxu0
    %v1851 = vadd.f32 %v1608, %v1850
    %v1852 = vpop.f32.mrb[0].mxu0
    %1853 = vmatprep.mubr.f32.mxu0 0.0
    %v1854 = vand.u32 %v627, 4294901760
    %1855 = vmatmul.mubr.f32.gmra.mrb[0].mxu0 %v1854
    %v1856 = vpop.f32.mrb[0].mxu0
    %v1857 = vadd.f32 %v1616, %v1856
    %v1858 = vpop.f32.mrb[0].mxu0
    %1859 = vmatprep.mubr.f32.mxu0 0.0
    %v1860 = vand.u32 %v630, 4294901760
    %1861 = vmatmul.mubr.f32.gmra.mrb[0].mxu0 %v1860
    %v1862 = vpop.f32.mrb[0].mxu0
    %v1863 = vadd.f32 %v1624, %v1862
    %v1864 = vpop.f32.mrb[0].mxu0
    %1865 = vmatprep.mubr.f32.mxu0 0.0
    %v1866 = vand.u32 %v633, 4294901760
    %1867 = vmatmul.mubr.f32.gmra.mrb[0].mxu0 %v1866
    %v1868 = vpop.f32.mrb[0].mxu0
    %v1869 = vadd.f32 %v1632, %v1868
    %v1870 = vpop.f32.mrb[0].mxu0
    %1871 = vmatprep.mubr.f32.mxu0 0.0
    %v1872 = vand.u32 %v636, 4294901760
    %1873 = vmatmul.mubr.f32.gmra.mrb[0].mxu0 %v1872
    %v1874 = vpop.f32.mrb[0].mxu0
    %v1875 = vadd.f32 %v1640, %v1874
    %v1876 = vpop.f32.mrb[0].mxu0
    %1877 = vmatprep.mubr.f32.mxu0 0.0
    %v1878 = vand.u32 %v639, 4294901760
    %1879 = vmatmul.mubr.f32.gmra.mrb[0].mxu0 %v1878
    %v1880 = vpop.f32.mrb[0].mxu0
    %v1881 = vadd.f32 %v1648, %v1880
    %v1882 = vpop.f32.mrb[0].mxu0
    %1883 = vmatprep.mubr.f32.mxu0 0.0
    %v1884 = vand.u32 %v642, 4294901760
    %1885 = vmatmul.mubr.f32.gmra.mrb[0].mxu0 %v1884
    %v1886 = vpop.f32.mrb[0].mxu0
    %v1887 = vadd.f32 %v1656, %v1886
    %v1888 = vpop.f32.mrb[0].mxu0
    %1889 = vmatprep.mubr.f32.mxu0 0.0
    %v1890 = vand.u32 %v645, 4294901760
    %1891 = vmatmul.mubr.f32.gmra.mrb[0].mxu0 %v1890
    %v1892 = vpop.f32.mrb[0].mxu0
    %v1893 = vadd.f32 %v1664, %v1892
    %v1894 = vpop.f32.mrb[0].mxu0
    %1895 = vmatprep.mubr.f32.mxu0 0.0
    %v1896 = vand.u32 %v648, 4294901760
    %1897 = vmatmul.mubr.f32.gmra.mrb[0].mxu0 %v1896
    %v1898 = vpop.f32.mrb[0].mxu0
    %v1899 = vadd.f32 %v1672, %v1898
    %v1900 = vpop.f32.mrb[0].mxu0
    %1901 = vmatprep.mubr.f32.mxu0 0.0
    %v1902 = vand.u32 %v651, 4294901760
    %1903 = vmatmul.mubr.f32.gmra.mrb[0].mxu0 %v1902
    %v1904 = vpop.f32.mrb[0].mxu0
    %v1905 = vadd.f32 %v1680, %v1904
    %v1906 = vpop.f32.mrb[0].mxu0
    %1907 = vmatprep.mubr.f32.mxu0 0.0
    %v1908 = vand.u32 %v654, 4294901760
    %1909 = vmatmul.mubr.f32.gmra.mrb[0].mxu0 %v1908
    %v1910 = vpop.f32.mrb[0].mxu0
    %v1911 = vadd.f32 %v1688, %v1910
    %v1912 = vpop.f32.mrb[0].mxu0
    %1913 = vmatprep.mubr.f32.mxu0 0.0
    %v1914 = vand.u32 %v657, 4294901760
    %1915 = vmatmul.mubr.f32.gmra.mrb[0].mxu0 %v1914
    %v1916 = vpop.f32.mrb[0].mxu0
    %v1917 = vadd.f32 %v1696, %v1916
    %v1918 = vpop.f32.mrb[0].mxu0
    %1919 = vdwg.mxu0
    %1920 = vmatprep.subr.mxu0 0.0
    %v1921 = vand.u32 %v583, 4294901760
    %1922 = vmatpush1.msra.mxu0 %v1921
    %1923 = vmatprep.subr.mxu0 0.0
    %v1924 = vand.u32 %v584, 4294901760
    %1925 = vmatpush1.msra.mxu0 %v1924
    %1926 = vmatprep.subr.mxu0 0.0
    %v1927 = vand.u32 %v585, 4294901760
    %1928 = vmatpush1.msra.mxu0 %v1927
    %1929 = vmatprep.subr.mxu0 0.0
    %v1930 = vand.u32 %v586, 4294901760
    %1931 = vmatpush1.msra.mxu0 %v1930
    %1932 = vmatprep.subr.mxu0 0.0
    %1933 = vmatpush1.msra.mxu0 0.0
    %1934 = vmatprep.subr.mxu0 0.0
    %1935 = vmatpush1.msra.mxu0 0.0
    %1936 = vmatprep.subr.mxu0 0.0
    %1937 = vmatpush1.msra.mxu0 0.0
    %1938 = vmatprep.subr.mxu0 0.0
    %1939 = vmatpush1.msra.mxu0 0.0
    %1940 = vmatprep.subr.mxu0 0.0
    %1941 = vmatpush1.msra.mxu0 0.0
    %1942 = vmatprep.subr.mxu0 0.0
    %1943 = vmatpush1.msra.mxu0 0.0
    %1944 = vmatprep.subr.mxu0 0.0
    %1945 = vmatpush1.msra.mxu0 0.0
    %1946 = vmatprep.subr.mxu0 0.0
    %1947 = vmatpush1.msra.mxu0 0.0
    %1948 = vmatprep.subr.mxu0 0.0
    %1949 = vmatpush1.msra.mxu0 0.0
    %1950 = vmatprep.subr.mxu0 0.0
    %1951 = vmatpush1.msra.mxu0 0.0
    %1952 = vmatprep.subr.mxu0 0.0
    %1953 = vmatpush1.msra.mxu0 0.0
    %1954 = vmatprep.subr.mxu0 0.0
    %1955 = vmatpush1.msra.mxu0 0.0
    %1956 = vmatprep.subr.mxu0 0.0
    %1957 = vmatpush1.msra.mxu0 0.0
    %1958 = vmatprep.subr.mxu0 0.0
    %1959 = vmatpush1.msra.mxu0 0.0
    %1960 = vmatprep.subr.mxu0 0.0
    %1961 = vmatpush1.msra.mxu0 0.0
    %1962 = vmatprep.subr.mxu0 0.0
    %1963 = vmatpush1.msra.mxu0 0.0
    %1964 = vmatprep.subr.mxu0 0.0
    %1965 = vmatpush1.msra.mxu0 0.0
    %1966 = vmatprep.subr.mxu0 0.0
    %1967 = vmatpush1.msra.mxu0 0.0
    %1968 = vmatprep.subr.mxu0 0.0
    %1969 = vmatpush1.msra.mxu0 0.0
    %1970 = vmatprep.subr.mxu0 0.0
    %1971 = vmatpush1.msra.mxu0 0.0
    %1972 = vmatprep.subr.mxu0 0.0
    %1973 = vmatpush1.msra.mxu0 0.0
    %1974 = vmatprep.subr.mxu0 0.0
    %1975 = vmatpush1.msra.mxu0 0.0
    %1976 = vmatprep.subr.mxu0 0.0
    %1977 = vmatpush1.msra.mxu0 0.0
    %1978 = vmatprep.subr.mxu0 0.0
    %1979 = vmatpush1.msra.mxu0 0.0
    %1980 = vmatprep.subr.mxu0 0.0
    %1981 = vmatpush1.msra.mxu0 0.0
    %1982 = vmatprep.subr.mxu0 0.0
    %1983 = vmatpush1.msra.mxu0 0.0
    %1984 = vmatprep.subr.mxu0 0.0
    %1985 = vmatpush1.msra.mxu0 0.0
    %1986 = vmatprep.subr.mxu0 0.0
    %1987 = vmatpush1.msra.mxu0 0.0
    %1988 = vmatprep.mubr.f32.mxu0 0.0
    %v1989 = vand.u32 %v588, 4294901760
    %1990 = vmatmul.mubr.f32.gmra.mrb[0].mxu0 %v1989
    %v1991 = vpop.f32.mrb[0].mxu0
    %v1992 = vadd.f32 %v1779, %v1991
    %v1993 = vpop.f32.mrb[0].mxu0
    %1994 = vmatprep.mubr.f32.mxu0 0.0
    %v1995 = vand.u32 %v591, 4294901760
    %1996 = vmatmul.mubr.f32.gmra.mrb[0].mxu0 %v1995
    %v1997 = vpop.f32.mrb[0].mxu0
    %v1998 = vadd.f32 %v1785, %v1997
    %v1999 = vpop.f32.mrb[0].mxu0
    %2000 = vmatprep.mubr.f32.mxu0 0.0
    %v2001 = vand.u32 %v594, 4294901760
    %2002 = vmatmul.mubr.f32.gmra.mrb[0].mxu0 %v2001
    %v2003 = vpop.f32.mrb[0].mxu0
    %v2004 = vadd.f32 %v1791, %v2003
    %v2005 = vpop.f32.mrb[0].mxu0
    %2006 = vmatprep.mubr.f32.mxu0 0.0
    %v2007 = vand.u32 %v597, 4294901760
    %2008 = vmatmul.mubr.f32.gmra.mrb[0].mxu0 %v2007
    %v2009 = vpop.f32.mrb[0].mxu0
    %v2010 = vadd.f32 %v1797, %v2009
    %v2011 = vpop.f32.mrb[0].mxu0
    %2012 = vmatprep.mubr.f32.mxu0 0.0
    %v2013 = vand.u32 %v600, 4294901760
    %2014 = vmatmul.mubr.f32.gmra.mrb[0].mxu0 %v2013
    %v2015 = vpop.f32.mrb[0].mxu0
    %v2016 = vadd.f32 %v1803, %v2015
    %v2017 = vpop.f32.mrb[0].mxu0
    %2018 = vmatprep.mubr.f32.mxu0 0.0
    %v2019 = vand.u32 %v603, 4294901760
    %2020 = vmatmul.mubr.f32.gmra.mrb[0].mxu0 %v2019
    %v2021 = vpop.f32.mrb[0].mxu0
    %v2022 = vadd.f32 %v1809, %v2021
    %v2023 = vpop.f32.mrb[0].mxu0
    %2024 = vmatprep.mubr.f32.mxu0 0.0
    %v2025 = vand.u32 %v606, 4294901760
    %2026 = vmatmul.mubr.f32.gmra.mrb[0].mxu0 %v2025
    %v2027 = vpop.f32.mrb[0].mxu0
    %v2028 = vadd.f32 %v1815, %v2027
    %v2029 = vpop.f32.mrb[0].mxu0
    %2030 = vmatprep.mubr.f32.mxu0 0.0
    %v2031 = vand.u32 %v609, 4294901760
    %2032 = vmatmul.mubr.f32.gmra.mrb[0].mxu0 %v2031
    %v2033 = vpop.f32.mrb[0].mxu0
    %v2034 = vadd.f32 %v1821, %v2033
    %v2035 = vpop.f32.mrb[0].mxu0
    %2036 = vmatprep.mubr.f32.mxu0 0.0
    %v2037 = vand.u32 %v612, 4294901760
    %2038 = vmatmul.mubr.f32.gmra.mrb[0].mxu0 %v2037
    %v2039 = vpop.f32.mrb[0].mxu0
    %v2040 = vadd.f32 %v1827, %v2039
    %v2041 = vpop.f32.mrb[0].mxu0
    %2042 = vmatprep.mubr.f32.mxu0 0.0
    %v2043 = vand.u32 %v615, 4294901760
    %2044 = vmatmul.mubr.f32.gmra.mrb[0].mxu0 %v2043
    %v2045 = vpop.f32.mrb[0].mxu0
    %v2046 = vadd.f32 %v1833, %v2045
    %v2047 = vpop.f32.mrb[0].mxu0
    %2048 = vmatprep.mubr.f32.mxu0 0.0
    %v2049 = vand.u32 %v618, 4294901760
    %2050 = vmatmul.mubr.f32.gmra.mrb[0].mxu0 %v2049
    %v2051 = vpop.f32.mrb[0].mxu0
    %v2052 = vadd.f32 %v1839, %v2051
    %v2053 = vpop.f32.mrb[0].mxu0
    %2054 = vmatprep.mubr.f32.mxu0 0.0
    %v2055 = vand.u32 %v621, 4294901760
    %2056 = vmatmul.mubr.f32.gmra.mrb[0].mxu0 %v2055
    %v2057 = vpop.f32.mrb[0].mxu0
    %v2058 = vadd.f32 %v1845, %v2057
    %v2059 = vpop.f32.mrb[0].mxu0
    %2060 = vmatprep.mubr.f32.mxu0 0.0
    %v2061 = vand.u32 %v624, 4294901760
    %2062 = vmatmul.mubr.f32.gmra.mrb[0].mxu0 %v2061
    %v2063 = vpop.f32.mrb[0].mxu0
    %v2064 = vadd.f32 %v1851, %v2063
    %v2065 = vpop.f32.mrb[0].mxu0
    %2066 = vmatprep.mubr.f32.mxu0 0.0
    %v2067 = vand.u32 %v627, 4294901760
    %2068 = vmatmul.mubr.f32.gmra.mrb[0].mxu0 %v2067
    %v2069 = vpop.f32.mrb[0].mxu0
    %v2070 = vadd.f32 %v1857, %v2069
    %v2071 = vpop.f32.mrb[0].mxu0
    %2072 = vmatprep.mubr.f32.mxu0 0.0
    %v2073 = vand.u32 %v630, 4294901760
    %2074 = vmatmul.mubr.f32.gmra.mrb[0].mxu0 %v2073
    %v2075 = vpop.f32.mrb[0].mxu0
    %v2076 = vadd.f32 %v1863, %v2075
    %v2077 = vpop.f32.mrb[0].mxu0
    %2078 = vmatprep.mubr.f32.mxu0 0.0
    %v2079 = vand.u32 %v633, 4294901760
    %2080 = vmatmul.mubr.f32.gmra.mrb[0].mxu0 %v2079
    %v2081 = vpop.f32.mrb[0].mxu0
    %v2082 = vadd.f32 %v1869, %v2081
    %v2083 = vpop.f32.mrb[0].mxu0
    %2084 = vmatprep.mubr.f32.mxu0 0.0
    %v2085 = vand.u32 %v636, 4294901760
    %2086 = vmatmul.mubr.f32.gmra.mrb[0].mxu0 %v2085
    %v2087 = vpop.f32.mrb[0].mxu0
    %v2088 = vadd.f32 %v1875, %v2087
    %v2089 = vpop.f32.mrb[0].mxu0
    %2090 = vmatprep.mubr.f32.mxu0 0.0
    %v2091 = vand.u32 %v639, 4294901760
    %2092 = vmatmul.mubr.f32.gmra.mrb[0].mxu0 %v2091
    %v2093 = vpop.f32.mrb[0].mxu0
    %v2094 = vadd.f32 %v1881, %v2093
    %v2095 = vpop.f32.mrb[0].mxu0
    %2096 = vmatprep.mubr.f32.mxu0 0.0
    %v2097 = vand.u32 %v642, 4294901760
    %2098 = vmatmul.mubr.f32.gmra.mrb[0].mxu0 %v2097
    %v2099 = vpop.f32.mrb[0].mxu0
    %v2100 = vadd.f32 %v1887, %v2099
    %v2101 = vpop.f32.mrb[0].mxu0
    %2102 = vmatprep.mubr.f32.mxu0 0.0
    %v2103 = vand.u32 %v645, 4294901760
    %2104 = vmatmul.mubr.f32.gmra.mrb[0].mxu0 %v2103
    %v2105 = vpop.f32.mrb[0].mxu0
    %v2106 = vadd.f32 %v1893, %v2105
    %v2107 = vpop.f32.mrb[0].mxu0
    %2108 = vmatprep.mubr.f32.mxu0 0.0
    %v2109 = vand.u32 %v648, 4294901760
    %2110 = vmatmul.mubr.f32.gmra.mrb[0].mxu0 %v2109
    %v2111 = vpop.f32.mrb[0].mxu0
    %v2112 = vadd.f32 %v1899, %v2111
    %v2113 = vpop.f32.mrb[0].mxu0
    %2114 = vmatprep.mubr.f32.mxu0 0.0
    %v2115 = vand.u32 %v651, 4294901760
    %2116 = vmatmul.mubr.f32.gmra.mrb[0].mxu0 %v2115
    %v2117 = vpop.f32.mrb[0].mxu0
    %v2118 = vadd.f32 %v1905, %v2117
    %v2119 = vpop.f32.mrb[0].mxu0
    %2120 = vmatprep.mubr.f32.mxu0 0.0
    %v2121 = vand.u32 %v654, 4294901760
    %2122 = vmatmul.mubr.f32.gmra.mrb[0].mxu0 %v2121
    %v2123 = vpop.f32.mrb[0].mxu0
    %v2124 = vadd.f32 %v1911, %v2123
    %v2125 = vpop.f32.mrb[0].mxu0
    %2126 = vmatprep.mubr.f32.mxu0 0.0
    %v2127 = vand.u32 %v657, 4294901760
    %2128 = vmatmul.mubr.f32.gmra.mrb[0].mxu0 %v2127
    %v2129 = vpop.f32.mrb[0].mxu0
    %v2130 = vadd.f32 %v1917, %v2129
    %v2131 = vpop.f32.mrb[0].mxu0
    %2132 = vdwg.mxu0
    %v2133 = vld [vmem:[#allocation6] sm:$0xff]
    %v2134 = vld [vmem:[#allocation6 + $0x8] sm:$0xff]
    %v2135 = vld [vmem:[#allocation6 + $0x10] sm:$0xff]
    %v2136 = vld [vmem:[#allocation6 + $0x18] sm:$0xff]
    %v2137 = vld [vmem:[#allocation6 + $0x20] sm:$0xff]
    %v2138 = vld [vmem:[#allocation6 + $0x28] sm:$0xff]
    %v2139 = vld [vmem:[#allocation6 + $0x30] sm:$0xff]
    %v2140 = vld [vmem:[#allocation6 + $0x38] sm:$0xff]
    %v2141 = vld [vmem:[#allocation6 + $0x40] sm:$0xff]
    %v2142 = vld [vmem:[#allocation6 + $0x48] sm:$0xff]
    %v2143 = vld [vmem:[#allocation6 + $0x50] sm:$0xff]
    %v2144 = vld [vmem:[#allocation6 + $0x58] sm:$0xff]
    %v2145 = vld [vmem:[#allocation6 + $0x60] sm:$0xff]
    %v2146 = vld [vmem:[#allocation6 + $0x68] sm:$0xff]
    %v2147 = vld [vmem:[#allocation6 + $0x70] sm:$0xff]
    %v2148 = vld [vmem:[#allocation6 + $0x78] sm:$0xff]
    %v2149 = vld [vmem:[#allocation6 + $0x80] sm:$0xff]
    %v2150 = vld [vmem:[#allocation6 + $0x88] sm:$0xff]
    %v2151 = vld [vmem:[#allocation6 + $0x90] sm:$0xff]
    %v2152 = vld [vmem:[#allocation6 + $0x98] sm:$0xff]
    %v2153 = vld [vmem:[#allocation6 + $0xa0] sm:$0xff]
    %v2154 = vld [vmem:[#allocation6 + $0xa8] sm:$0xff]
    %v2155 = vld [vmem:[#allocation6 + $0xb0] sm:$0xff]
    %v2156 = vld [vmem:[#allocation6 + $0xb8] sm:$0xff]
    %v2157 = vld [vmem:[#allocation6 + $0xc0] sm:$0xff]
    %v2158 = vld [vmem:[#allocation6 + $0xc8] sm:$0xff]
    %v2159 = vld [vmem:[#allocation6 + $0xd0] sm:$0xff]
    %v2160 = vld [vmem:[#allocation6 + $0xd8] sm:$0xff]
    %v2161 = vld [vmem:[#allocation6 + $0xe0] sm:$0xff]
    %v2162 = vld [vmem:[#allocation6 + $0xe8] sm:$0xff]
    %v2163 = vld [vmem:[#allocation6 + $0xf0] sm:$0xff]
    %v2164 = vld [vmem:[#allocation6 + $0xf8] sm:$0xff]
    %v2165 = vld [vmem:[#allocation6 + $0x100] sm:$0xff]
    %v2166 = vld [vmem:[#allocation6 + $0x108] sm:$0xff]
    %v2167 = vld [vmem:[#allocation6 + $0x110] sm:$0xff]
    %v2168 = vld [vmem:[#allocation6 + $0x118] sm:$0xff]
    %v2169 = vld [vmem:[#allocation6 + $0x120] sm:$0xff]
    %v2170 = vld [vmem:[#allocation6 + $0x128] sm:$0xff]
    %v2171 = vld [vmem:[#allocation6 + $0x130] sm:$0xff]
    %v2172 = vld [vmem:[#allocation6 + $0x138] sm:$0xff]
    %v2173 = vld [vmem:[#allocation6 + $0x140] sm:$0xff]
    %v2174 = vld [vmem:[#allocation6 + $0x148] sm:$0xff]
    %v2175 = vld [vmem:[#allocation6 + $0x150] sm:$0xff]
    %v2176 = vld [vmem:[#allocation6 + $0x158] sm:$0xff]
    %v2177 = vld [vmem:[#allocation6 + $0x160] sm:$0xff]
    %v2178 = vld [vmem:[#allocation6 + $0x168] sm:$0xff]
    %v2179 = vld [vmem:[#allocation6 + $0x170] sm:$0xff]
    %v2180 = vld [vmem:[#allocation6 + $0x178] sm:$0xff]
    %v2181 = vld [vmem:[#allocation6 + $0x180] sm:$0xff]
    %v2182 = vld [vmem:[#allocation6 + $0x188] sm:$0xff]
    %v2183 = vld [vmem:[#allocation6 + $0x190] sm:$0xff]
    %v2184 = vld [vmem:[#allocation6 + $0x198] sm:$0xff]
    %v2185 = vld [vmem:[#allocation6 + $0x1a0] sm:$0xff]
    %v2186 = vld [vmem:[#allocation6 + $0x1a8] sm:$0xff]
    %v2187 = vld [vmem:[#allocation6 + $0x1b0] sm:$0xff]
    %v2188 = vld [vmem:[#allocation6 + $0x1b8] sm:$0xff]
    %v2189 = vld [vmem:[#allocation6 + $0x1c0] sm:$0xff]
    %v2190 = vld [vmem:[#allocation6 + $0x1c8] sm:$0xff]
    %v2191 = vld [vmem:[#allocation6 + $0x1d0] sm:$0xff]
    %v2192 = vld [vmem:[#allocation6 + $0x1d8] sm:$0xff]
    %v2193 = vld [vmem:[#allocation6 + $0x1e0] sm:$0xff]
    %v2194 = vld [vmem:[#allocation6 + $0x1e8] sm:$0xff]
    %v2195 = vld [vmem:[#allocation6 + $0x1f0] sm:$0xff]
    %v2196 = vld [vmem:[#allocation6 + $0x1f8] sm:$0xff]
    %v2197 = vld [vmem:[#allocation6 + $0x200] sm:$0xff]
    %v2198 = vld [vmem:[#allocation6 + $0x208] sm:$0xff]
    %v2199 = vld [vmem:[#allocation6 + $0x210] sm:$0xff]
    %v2200 = vld [vmem:[#allocation6 + $0x218] sm:$0xff]
    %v2201 = vld [vmem:[#allocation6 + $0x220] sm:$0xff]
    %v2202 = vld [vmem:[#allocation6 + $0x228] sm:$0xff]
    %v2203 = vld [vmem:[#allocation6 + $0x230] sm:$0xff]
    %v2204 = vld [vmem:[#allocation6 + $0x238] sm:$0xff]
    %vm2205 = vcmask 523264
    %v2207 = vsel %vm2205, %v2134, 0
    %v2210 = vsel %vm2205, %v2136, 0
    %v2213 = vsel %vm2205, %v2138, 0
    %v2216 = vsel %vm2205, %v2140, 0
    %v2219 = vsel %vm2205, %v2142, 0
    %v2222 = vsel %vm2205, %v2144, 0
    %v2225 = vsel %vm2205, %v2146, 0
    %v2228 = vsel %vm2205, %v2148, 0
    %v2231 = vsel %vm2205, %v2150, 0
    %v2234 = vsel %vm2205, %v2152, 0
    %v2237 = vsel %vm2205, %v2154, 0
    %v2240 = vsel %vm2205, %v2156, 0
    %v2243 = vsel %vm2205, %v2158, 0
    %v2246 = vsel %vm2205, %v2160, 0
    %v2249 = vsel %vm2205, %v2162, 0
    %v2252 = vsel %vm2205, %v2164, 0
    %v2255 = vsel %vm2205, %v2166, 0
    %v2258 = vsel %vm2205, %v2168, 0
    %v2261 = vsel %vm2205, %v2170, 0
    %v2264 = vsel %vm2205, %v2172, 0
    %v2267 = vsel %vm2205, %v2174, 0
    %v2270 = vsel %vm2205, %v2176, 0
    %v2273 = vsel %vm2205, %v2178, 0
    %v2276 = vsel %vm2205, %v2180, 0
    %v2279 = vsel %vm2205, %v2182, 0
    %v2282 = vsel %vm2205, %v2184, 0
    %v2285 = vsel %vm2205, %v2186, 0
    %v2288 = vsel %vm2205, %v2188, 0
    %v2291 = vsel %vm2205, %v2190, 0
    %v2294 = vsel %vm2205, %v2192, 0
    %v2297 = vsel %vm2205, %v2194, 0
    %v2300 = vsel %vm2205, %v2196, 0
    %v2303 = vsel %vm2205, %v2198, 0
    %v2306 = vsel %vm2205, %v2200, 0
    %v2309 = vsel %vm2205, %v2202, 0
    %v2312 = vsel %vm2205, %v2204, 0
    %2314 = vmatprep.subr.mxu0 0.0
    %v2315 = vand.u32 %v1992, 4294901760
    %2316 = vmatpush1.msra.mxu0 %v2315
    %2317 = vmatprep.subr.mxu0 0.0
    %v2318 = vand.u32 %v1998, 4294901760
    %2319 = vmatpush1.msra.mxu0 %v2318
    %2320 = vmatprep.subr.mxu0 0.0
    %v2321 = vand.u32 %v2004, 4294901760
    %2322 = vmatpush1.msra.mxu0 %v2321
    %2323 = vmatprep.subr.mxu0 0.0
    %v2324 = vand.u32 %v2010, 4294901760
    %2325 = vmatpush1.msra.mxu0 %v2324
    %2326 = vmatprep.subr.mxu0 0.0
    %v2327 = vand.u32 %v2016, 4294901760
    %2328 = vmatpush1.msra.mxu0 %v2327
    %2329 = vmatprep.subr.mxu0 0.0
    %v2330 = vand.u32 %v2022, 4294901760
    %2331 = vmatpush1.msra.mxu0 %v2330
    %2332 = vmatprep.subr.mxu0 0.0
    %v2333 = vand.u32 %v2028, 4294901760
    %2334 = vmatpush1.msra.mxu0 %v2333
    %2335 = vmatprep.subr.mxu0 0.0
    %v2336 = vand.u32 %v2034, 4294901760
    %2337 = vmatpush1.msra.mxu0 %v2336
    %2338 = vmatprep.subr.mxu0 0.0
    %v2339 = vand.u32 %v2040, 4294901760
    %2340 = vmatpush1.msra.mxu0 %v2339
    %2341 = vmatprep.subr.mxu0 0.0
    %v2342 = vand.u32 %v2046, 4294901760
    %2343 = vmatpush1.msra.mxu0 %v2342
    %2344 = vmatprep.subr.mxu0 0.0
    %v2345 = vand.u32 %v2052, 4294901760
    %2346 = vmatpush1.msra.mxu0 %v2345
    %2347 = vmatprep.subr.mxu0 0.0
    %v2348 = vand.u32 %v2058, 4294901760
    %2349 = vmatpush1.msra.mxu0 %v2348
    %2350 = vmatprep.subr.mxu0 0.0
    %v2351 = vand.u32 %v2064, 4294901760
    %2352 = vmatpush1.msra.mxu0 %v2351
    %2353 = vmatprep.subr.mxu0 0.0
    %v2354 = vand.u32 %v2070, 4294901760
    %2355 = vmatpush1.msra.mxu0 %v2354
    %2356 = vmatprep.subr.mxu0 0.0
    %v2357 = vand.u32 %v2076, 4294901760
    %2358 = vmatpush1.msra.mxu0 %v2357
    %2359 = vmatprep.subr.mxu0 0.0
    %v2360 = vand.u32 %v2082, 4294901760
    %2361 = vmatpush1.msra.mxu0 %v2360
    %2362 = vmatprep.subr.mxu0 0.0
    %v2363 = vand.u32 %v2088, 4294901760
    %2364 = vmatpush1.msra.mxu0 %v2363
    %2365 = vmatprep.subr.mxu0 0.0
    %v2366 = vand.u32 %v2094, 4294901760
    %2367 = vmatpush1.msra.mxu0 %v2366
    %2368 = vmatprep.subr.mxu0 0.0
    %v2369 = vand.u32 %v2100, 4294901760
    %2370 = vmatpush1.msra.mxu0 %v2369
    %2371 = vmatprep.subr.mxu0 0.0
    %v2372 = vand.u32 %v2106, 4294901760
    %2373 = vmatpush1.msra.mxu0 %v2372
    %2374 = vmatprep.subr.mxu0 0.0
    %v2375 = vand.u32 %v2112, 4294901760
    %2376 = vmatpush1.msra.mxu0 %v2375
    %2377 = vmatprep.subr.mxu0 0.0
    %v2378 = vand.u32 %v2118, 4294901760
    %2379 = vmatpush1.msra.mxu0 %v2378
    %2380 = vmatprep.subr.mxu0 0.0
    %v2381 = vand.u32 %v2124, 4294901760
    %2382 = vmatpush1.msra.mxu0 %v2381
    %2383 = vmatprep.subr.mxu0 0.0
    %v2384 = vand.u32 %v2130, 4294901760
    %2385 = vmatpush1.msra.mxu0 %v2384
    %2386 = vmatprep.subr.mxu0 0.0
    %2387 = vmatpush1.msra.mxu0 0.0
    %2388 = vmatprep.subr.mxu0 0.0
    %2389 = vmatpush1.msra.mxu0 0.0
    %2390 = vmatprep.subr.mxu0 0.0
    %2391 = vmatpush1.msra.mxu0 0.0
    %2392 = vmatprep.subr.mxu0 0.0
    %2393 = vmatpush1.msra.mxu0 0.0
    %2394 = vmatprep.subr.mxu0 0.0
    %2395 = vmatpush1.msra.mxu0 0.0
    %2396 = vmatprep.subr.mxu0 0.0
    %2397 = vmatpush1.msra.mxu0 0.0
    %2398 = vmatprep.subr.mxu0 0.0
    %2399 = vmatpush1.msra.mxu0 0.0
    %2400 = vmatprep.subr.mxu0 0.0
    %2401 = vmatpush1.msra.mxu0 0.0
    %v2402 = vand.u32 %v2207, 4294901760
    %v2403 = vsub.f32 %v2207, %v2402
    %v2404 = vand.u32 %v2403, 4294901760
    %v2405 = vsub.f32 %v2403, %v2404
    %v2406 = vand.u32 %v2405, 4294901760
    %2407 = vmatprep.mubr.f32.mxu0 %v2406
    %v2408 = vand.u32 %v2133, 4294901760
    %v2409 = vsub.f32 %v2133, %v2408
    %v2410 = vand.u32 %v2409, 4294901760
    %v2411 = vsub.f32 %v2409, %v2410
    %v2412 = vand.u32 %v2411, 4294901760
    %2413 = vmatmul.mubr.f32.gmra.mrb[0].mxu0 %v2412
    %v2414 = vpop.f32.mrb[0].mxu0
    %v2415 = vadd.f32 0.0, %v2414
    %v2416 = vpop.f32.mrb[0].mxu0
    %v2417 = vand.u32 %v2210, 4294901760
    %v2418 = vsub.f32 %v2210, %v2417
    %v2419 = vand.u32 %v2418, 4294901760
    %v2420 = vsub.f32 %v2418, %v2419
    %v2421 = vand.u32 %v2420, 4294901760
    %2422 = vmatprep.mubr.f32.mxu0 %v2421
    %v2423 = vand.u32 %v2135, 4294901760
    %v2424 = vsub.f32 %v2135, %v2423
    %v2425 = vand.u32 %v2424, 4294901760
    %v2426 = vsub.f32 %v2424, %v2425
    %v2427 = vand.u32 %v2426, 4294901760
    %2428 = vmatmul.mubr.f32.gmra.mrb[0].mxu0 %v2427
    %v2429 = vpop.f32.mrb[0].mxu0
    %v2430 = vadd.f32 0.0, %v2429
    %v2431 = vpop.f32.mrb[0].mxu0
    %v2432 = vand.u32 %v2213, 4294901760
    %v2433 = vsub.f32 %v2213, %v2432
    %v2434 = vand.u32 %v2433, 4294901760
    %v2435 = vsub.f32 %v2433, %v2434
    %v2436 = vand.u32 %v2435, 4294901760
    %2437 = vmatprep.mubr.f32.mxu0 %v2436
    %v2438 = vand.u32 %v2137, 4294901760
    %v2439 = vsub.f32 %v2137, %v2438
    %v2440 = vand.u32 %v2439, 4294901760
    %v2441 = vsub.f32 %v2439, %v2440
    %v2442 = vand.u32 %v2441, 4294901760
    %2443 = vmatmul.mubr.f32.gmra.mrb[0].mxu0 %v2442
    %v2444 = vpop.f32.mrb[0].mxu0
    %v2445 = vadd.f32 0.0, %v2444
    %v2446 = vpop.f32.mrb[0].mxu0
    %v2447 = vand.u32 %v2216, 4294901760
    %v2448 = vsub.f32 %v2216, %v2447
    %v2449 = vand.u32 %v2448, 4294901760
    %v2450 = vsub.f32 %v2448, %v2449
    %v2451 = vand.u32 %v2450, 4294901760
    %2452 = vmatprep.mubr.f32.mxu0 %v2451
    %v2453 = vand.u32 %v2139, 4294901760
    %v2454 = vsub.f32 %v2139, %v2453
    %v2455 = vand.u32 %v2454, 4294901760
    %v2456 = vsub.f32 %v2454, %v2455
    %v2457 = vand.u32 %v2456, 4294901760
    %2458 = vmatmul.mubr.f32.gmra.mrb[0].mxu0 %v2457
    %v2459 = vpop.f32.mrb[0].mxu0
    %v2460 = vadd.f32 0.0, %v2459
    %v2461 = vpop.f32.mrb[0].mxu0
    %v2462 = vand.u32 %v2219, 4294901760
    %v2463 = vsub.f32 %v2219, %v2462
    %v2464 = vand.u32 %v2463, 4294901760
    %v2465 = vsub.f32 %v2463, %v2464
    %v2466 = vand.u32 %v2465, 4294901760
    %2467 = vmatprep.mubr.f32.mxu0 %v2466
    %v2468 = vand.u32 %v2141, 4294901760
    %v2469 = vsub.f32 %v2141, %v2468
    %v2470 = vand.u32 %v2469, 4294901760
    %v2471 = vsub.f32 %v2469, %v2470
    %v2472 = vand.u32 %v2471, 4294901760
    %2473 = vmatmul.mubr.f32.gmra.mrb[0].mxu0 %v2472
    %v2474 = vpop.f32.mrb[0].mxu0
    %v2475 = vadd.f32 0.0, %v2474
    %v2476 = vpop.f32.mrb[0].mxu0
    %v2477 = vand.u32 %v2222, 4294901760
    %v2478 = vsub.f32 %v2222, %v2477
    %v2479 = vand.u32 %v2478, 4294901760
    %v2480 = vsub.f32 %v2478, %v2479
    %v2481 = vand.u32 %v2480, 4294901760
    %2482 = vmatprep.mubr.f32.mxu0 %v2481
    %v2483 = vand.u32 %v2143, 4294901760
    %v2484 = vsub.f32 %v2143, %v2483
    %v2485 = vand.u32 %v2484, 4294901760
    %v2486 = vsub.f32 %v2484, %v2485
    %v2487 = vand.u32 %v2486, 4294901760
    %2488 = vmatmul.mubr.f32.gmra.mrb[0].mxu0 %v2487
    %v2489 = vpop.f32.mrb[0].mxu0
    %v2490 = vadd.f32 0.0, %v2489
    %v2491 = vpop.f32.mrb[0].mxu0
    %v2492 = vand.u32 %v2225, 4294901760
    %v2493 = vsub.f32 %v2225, %v2492
    %v2494 = vand.u32 %v2493, 4294901760
    %v2495 = vsub.f32 %v2493, %v2494
    %v2496 = vand.u32 %v2495, 4294901760
    %2497 = vmatprep.mubr.f32.mxu0 %v2496
    %v2498 = vand.u32 %v2145, 4294901760
    %v2499 = vsub.f32 %v2145, %v2498
    %v2500 = vand.u32 %v2499, 4294901760
    %v2501 = vsub.f32 %v2499, %v2500
    %v2502 = vand.u32 %v2501, 4294901760
    %2503 = vmatmul.mubr.f32.gmra.mrb[0].mxu0 %v2502
    %v2504 = vpop.f32.mrb[0].mxu0
    %v2505 = vadd.f32 0.0, %v2504
    %v2506 = vpop.f32.mrb[0].mxu0
    %v2507 = vand.u32 %v2228, 4294901760
    %v2508 = vsub.f32 %v2228, %v2507
    %v2509 = vand.u32 %v2508, 4294901760
    %v2510 = vsub.f32 %v2508, %v2509
    %v2511 = vand.u32 %v2510, 4294901760
    %2512 = vmatprep.mubr.f32.mxu0 %v2511
    %v2513 = vand.u32 %v2147, 4294901760
    %v2514 = vsub.f32 %v2147, %v2513
    %v2515 = vand.u32 %v2514, 4294901760
    %v2516 = vsub.f32 %v2514, %v2515
    %v2517 = vand.u32 %v2516, 4294901760
    %2518 = vmatmul.mubr.f32.gmra.mrb[0].mxu0 %v2517
    %v2519 = vpop.f32.mrb[0].mxu0
    %v2520 = vadd.f32 0.0, %v2519
    %v2521 = vpop.f32.mrb[0].mxu0
    %v2522 = vand.u32 %v2231, 4294901760
    %v2523 = vsub.f32 %v2231, %v2522
    %v2524 = vand.u32 %v2523, 4294901760
    %v2525 = vsub.f32 %v2523, %v2524
    %v2526 = vand.u32 %v2525, 4294901760
    %2527 = vmatprep.mubr.f32.mxu0 %v2526
    %v2528 = vand.u32 %v2149, 4294901760
    %v2529 = vsub.f32 %v2149, %v2528
    %v2530 = vand.u32 %v2529, 4294901760
    %v2531 = vsub.f32 %v2529, %v2530
    %v2532 = vand.u32 %v2531, 4294901760
    %2533 = vmatmul.mubr.f32.gmra.mrb[0].mxu0 %v2532
    %v2534 = vpop.f32.mrb[0].mxu0
    %v2535 = vadd.f32 0.0, %v2534
    %v2536 = vpop.f32.mrb[0].mxu0
    %v2537 = vand.u32 %v2234, 4294901760
    %v2538 = vsub.f32 %v2234, %v2537
    %v2539 = vand.u32 %v2538, 4294901760
    %v2540 = vsub.f32 %v2538, %v2539
    %v2541 = vand.u32 %v2540, 4294901760
    %2542 = vmatprep.mubr.f32.mxu0 %v2541
    %v2543 = vand.u32 %v2151, 4294901760
    %v2544 = vsub.f32 %v2151, %v2543
    %v2545 = vand.u32 %v2544, 4294901760
    %v2546 = vsub.f32 %v2544, %v2545
    %v2547 = vand.u32 %v2546, 4294901760
    %2548 = vmatmul.mubr.f32.gmra.mrb[0].mxu0 %v2547
    %v2549 = vpop.f32.mrb[0].mxu0
    %v2550 = vadd.f32 0.0, %v2549
    %v2551 = vpop.f32.mrb[0].mxu0
    %v2552 = vand.u32 %v2237, 4294901760
    %v2553 = vsub.f32 %v2237, %v2552
    %v2554 = vand.u32 %v2553, 4294901760
    %v2555 = vsub.f32 %v2553, %v2554
    %v2556 = vand.u32 %v2555, 4294901760
    %2557 = vmatprep.mubr.f32.mxu0 %v2556
    %v2558 = vand.u32 %v2153, 4294901760
    %v2559 = vsub.f32 %v2153, %v2558
    %v2560 = vand.u32 %v2559, 4294901760
    %v2561 = vsub.f32 %v2559, %v2560
    %v2562 = vand.u32 %v2561, 4294901760
    %2563 = vmatmul.mubr.f32.gmra.mrb[0].mxu0 %v2562
    %v2564 = vpop.f32.mrb[0].mxu0
    %v2565 = vadd.f32 0.0, %v2564
    %v2566 = vpop.f32.mrb[0].mxu0
    %v2567 = vand.u32 %v2240, 4294901760
    %v2568 = vsub.f32 %v2240, %v2567
    %v2569 = vand.u32 %v2568, 4294901760
    %v2570 = vsub.f32 %v2568, %v2569
    %v2571 = vand.u32 %v2570, 4294901760
    %2572 = vmatprep.mubr.f32.mxu0 %v2571
    %v2573 = vand.u32 %v2155, 4294901760
    %v2574 = vsub.f32 %v2155, %v2573
    %v2575 = vand.u32 %v2574, 4294901760
    %v2576 = vsub.f32 %v2574, %v2575
    %v2577 = vand.u32 %v2576, 4294901760
    %2578 = vmatmul.mubr.f32.gmra.mrb[0].mxu0 %v2577
    %v2579 = vpop.f32.mrb[0].mxu0
    %v2580 = vadd.f32 0.0, %v2579
    %v2581 = vpop.f32.mrb[0].mxu0
    %v2582 = vand.u32 %v2243, 4294901760
    %v2583 = vsub.f32 %v2243, %v2582
    %v2584 = vand.u32 %v2583, 4294901760
    %v2585 = vsub.f32 %v2583, %v2584
    %v2586 = vand.u32 %v2585, 4294901760
    %2587 = vmatprep.mubr.f32.mxu0 %v2586
    %v2588 = vand.u32 %v2157, 4294901760
    %v2589 = vsub.f32 %v2157, %v2588
    %v2590 = vand.u32 %v2589, 4294901760
    %v2591 = vsub.f32 %v2589, %v2590
    %v2592 = vand.u32 %v2591, 4294901760
    %2593 = vmatmul.mubr.f32.gmra.mrb[0].mxu0 %v2592
    %v2594 = vpop.f32.mrb[0].mxu0
    %v2595 = vadd.f32 0.0, %v2594
    %v2596 = vpop.f32.mrb[0].mxu0
    %v2597 = vand.u32 %v2246, 4294901760
    %v2598 = vsub.f32 %v2246, %v2597
    %v2599 = vand.u32 %v2598, 4294901760
    %v2600 = vsub.f32 %v2598, %v2599
    %v2601 = vand.u32 %v2600, 4294901760
    %2602 = vmatprep.mubr.f32.mxu0 %v2601
    %v2603 = vand.u32 %v2159, 4294901760
    %v2604 = vsub.f32 %v2159, %v2603
    %v2605 = vand.u32 %v2604, 4294901760
    %v2606 = vsub.f32 %v2604, %v2605
    %v2607 = vand.u32 %v2606, 4294901760
    %2608 = vmatmul.mubr.f32.gmra.mrb[0].mxu0 %v2607
    %v2609 = vpop.f32.mrb[0].mxu0
    %v2610 = vadd.f32 0.0, %v2609
    %v2611 = vpop.f32.mrb[0].mxu0
    %v2612 = vand.u32 %v2249, 4294901760
    %v2613 = vsub.f32 %v2249, %v2612
    %v2614 = vand.u32 %v2613, 4294901760
    %v2615 = vsub.f32 %v2613, %v2614
    %v2616 = vand.u32 %v2615, 4294901760
    %2617 = vmatprep.mubr.f32.mxu0 %v2616
    %v2618 = vand.u32 %v2161, 4294901760
    %v2619 = vsub.f32 %v2161, %v2618
    %v2620 = vand.u32 %v2619, 4294901760
    %v2621 = vsub.f32 %v2619, %v2620
    %v2622 = vand.u32 %v2621, 4294901760
    %2623 = vmatmul.mubr.f32.gmra.mrb[0].mxu0 %v2622
    %v2624 = vpop.f32.mrb[0].mxu0
    %v2625 = vadd.f32 0.0, %v2624
    %v2626 = vpop.f32.mrb[0].mxu0
    %v2627 = vand.u32 %v2252, 4294901760
    %v2628 = vsub.f32 %v2252, %v2627
    %v2629 = vand.u32 %v2628, 4294901760
    %v2630 = vsub.f32 %v2628, %v2629
    %v2631 = vand.u32 %v2630, 4294901760
    %2632 = vmatprep.mubr.f32.mxu0 %v2631
    %v2633 = vand.u32 %v2163, 4294901760
    %v2634 = vsub.f32 %v2163, %v2633
    %v2635 = vand.u32 %v2634, 4294901760
    %v2636 = vsub.f32 %v2634, %v2635
    %v2637 = vand.u32 %v2636, 4294901760
    %2638 = vmatmul.mubr.f32.gmra.mrb[0].mxu0 %v2637
    %v2639 = vpop.f32.mrb[0].mxu0
    %v2640 = vadd.f32 0.0, %v2639
    %v2641 = vpop.f32.mrb[0].mxu0
    %v2642 = vand.u32 %v2255, 4294901760
    %v2643 = vsub.f32 %v2255, %v2642
    %v2644 = vand.u32 %v2643, 4294901760
    %v2645 = vsub.f32 %v2643, %v2644
    %v2646 = vand.u32 %v2645, 4294901760
    %2647 = vmatprep.mubr.f32.mxu0 %v2646
    %v2648 = vand.u32 %v2165, 4294901760
    %v2649 = vsub.f32 %v2165, %v2648
    %v2650 = vand.u32 %v2649, 4294901760
    %v2651 = vsub.f32 %v2649, %v2650
    %v2652 = vand.u32 %v2651, 4294901760
    %2653 = vmatmul.mubr.f32.gmra.mrb[0].mxu0 %v2652
    %v2654 = vpop.f32.mrb[0].mxu0
    %v2655 = vadd.f32 0.0, %v2654
    %v2656 = vpop.f32.mrb[0].mxu0
    %v2657 = vand.u32 %v2258, 4294901760
    %v2658 = vsub.f32 %v2258, %v2657
    %v2659 = vand.u32 %v2658, 4294901760
    %v2660 = vsub.f32 %v2658, %v2659
    %v2661 = vand.u32 %v2660, 4294901760
    %2662 = vmatprep.mubr.f32.mxu0 %v2661
    %v2663 = vand.u32 %v2167, 4294901760
    %v2664 = vsub.f32 %v2167, %v2663
    %v2665 = vand.u32 %v2664, 4294901760
    %v2666 = vsub.f32 %v2664, %v2665
    %v2667 = vand.u32 %v2666, 4294901760
    %2668 = vmatmul.mubr.f32.gmra.mrb[0].mxu0 %v2667
    %v2669 = vpop.f32.mrb[0].mxu0
    %v2670 = vadd.f32 0.0, %v2669
    %v2671 = vpop.f32.mrb[0].mxu0
    %v2672 = vand.u32 %v2261, 4294901760
    %v2673 = vsub.f32 %v2261, %v2672
    %v2674 = vand.u32 %v2673, 4294901760
    %v2675 = vsub.f32 %v2673, %v2674
    %v2676 = vand.u32 %v2675, 4294901760
    %2677 = vmatprep.mubr.f32.mxu0 %v2676
    %v2678 = vand.u32 %v2169, 4294901760
    %v2679 = vsub.f32 %v2169, %v2678
    %v2680 = vand.u32 %v2679, 4294901760
    %v2681 = vsub.f32 %v2679, %v2680
    %v2682 = vand.u32 %v2681, 4294901760
    %2683 = vmatmul.mubr.f32.gmra.mrb[0].mxu0 %v2682
    %v2684 = vpop.f32.mrb[0].mxu0
    %v2685 = vadd.f32 0.0, %v2684
    %v2686 = vpop.f32.mrb[0].mxu0
    %v2687 = vand.u32 %v2264, 4294901760
    %v2688 = vsub.f32 %v2264, %v2687
    %v2689 = vand.u32 %v2688, 4294901760
    %v2690 = vsub.f32 %v2688, %v2689
    %v2691 = vand.u32 %v2690, 4294901760
    %2692 = vmatprep.mubr.f32.mxu0 %v2691
    %v2693 = vand.u32 %v2171, 4294901760
    %v2694 = vsub.f32 %v2171, %v2693
    %v2695 = vand.u32 %v2694, 4294901760
    %v2696 = vsub.f32 %v2694, %v2695
    %v2697 = vand.u32 %v2696, 4294901760
    %2698 = vmatmul.mubr.f32.gmra.mrb[0].mxu0 %v2697
    %v2699 = vpop.f32.mrb[0].mxu0
    %v2700 = vadd.f32 0.0, %v2699
    %v2701 = vpop.f32.mrb[0].mxu0
    %v2702 = vand.u32 %v2267, 4294901760
    %v2703 = vsub.f32 %v2267, %v2702
    %v2704 = vand.u32 %v2703, 4294901760
    %v2705 = vsub.f32 %v2703, %v2704
    %v2706 = vand.u32 %v2705, 4294901760
    %2707 = vmatprep.mubr.f32.mxu0 %v2706
    %v2708 = vand.u32 %v2173, 4294901760
    %v2709 = vsub.f32 %v2173, %v2708
    %v2710 = vand.u32 %v2709, 4294901760
    %v2711 = vsub.f32 %v2709, %v2710
    %v2712 = vand.u32 %v2711, 4294901760
    %2713 = vmatmul.mubr.f32.gmra.mrb[0].mxu0 %v2712
    %v2714 = vpop.f32.mrb[0].mxu0
    %v2715 = vadd.f32 0.0, %v2714
    %v2716 = vpop.f32.mrb[0].mxu0
    %v2717 = vand.u32 %v2270, 4294901760
    %v2718 = vsub.f32 %v2270, %v2717
    %v2719 = vand.u32 %v2718, 4294901760
    %v2720 = vsub.f32 %v2718, %v2719
    %v2721 = vand.u32 %v2720, 4294901760
    %2722 = vmatprep.mubr.f32.mxu0 %v2721
    %v2723 = vand.u32 %v2175, 4294901760
    %v2724 = vsub.f32 %v2175, %v2723
    %v2725 = vand.u32 %v2724, 4294901760
    %v2726 = vsub.f32 %v2724, %v2725
    %v2727 = vand.u32 %v2726, 4294901760
    %2728 = vmatmul.mubr.f32.gmra.mrb[0].mxu0 %v2727
    %v2729 = vpop.f32.mrb[0].mxu0
    %v2730 = vadd.f32 0.0, %v2729
    %v2731 = vpop.f32.mrb[0].mxu0
    %v2732 = vand.u32 %v2273, 4294901760
    %v2733 = vsub.f32 %v2273, %v2732
    %v2734 = vand.u32 %v2733, 4294901760
    %v2735 = vsub.f32 %v2733, %v2734
    %v2736 = vand.u32 %v2735, 4294901760
    %2737 = vmatprep.mubr.f32.mxu0 %v2736
    %v2738 = vand.u32 %v2177, 4294901760
    %v2739 = vsub.f32 %v2177, %v2738
    %v2740 = vand.u32 %v2739, 4294901760
    %v2741 = vsub.f32 %v2739, %v2740
    %v2742 = vand.u32 %v2741, 4294901760
    %2743 = vmatmul.mubr.f32.gmra.mrb[0].mxu0 %v2742
    %v2744 = vpop.f32.mrb[0].mxu0
    %v2745 = vadd.f32 0.0, %v2744
    %v2746 = vpop.f32.mrb[0].mxu0
    %v2747 = vand.u32 %v2276, 4294901760
    %v2748 = vsub.f32 %v2276, %v2747
    %v2749 = vand.u32 %v2748, 4294901760
    %v2750 = vsub.f32 %v2748, %v2749
    %v2751 = vand.u32 %v2750, 4294901760
    %2752 = vmatprep.mubr.f32.mxu0 %v2751
    %v2753 = vand.u32 %v2179, 4294901760
    %v2754 = vsub.f32 %v2179, %v2753
    %v2755 = vand.u32 %v2754, 4294901760
    %v2756 = vsub.f32 %v2754, %v2755
    %v2757 = vand.u32 %v2756, 4294901760
    %2758 = vmatmul.mubr.f32.gmra.mrb[0].mxu0 %v2757
    %v2759 = vpop.f32.mrb[0].mxu0
    %v2760 = vadd.f32 0.0, %v2759
    %v2761 = vpop.f32.mrb[0].mxu0
    %v2762 = vand.u32 %v2279, 4294901760
    %v2763 = vsub.f32 %v2279, %v2762
    %v2764 = vand.u32 %v2763, 4294901760
    %v2765 = vsub.f32 %v2763, %v2764
    %v2766 = vand.u32 %v2765, 4294901760
    %2767 = vmatprep.mubr.f32.mxu0 %v2766
    %v2768 = vand.u32 %v2181, 4294901760
    %v2769 = vsub.f32 %v2181, %v2768
    %v2770 = vand.u32 %v2769, 4294901760
    %v2771 = vsub.f32 %v2769, %v2770
    %v2772 = vand.u32 %v2771, 4294901760
    %2773 = vmatmul.mubr.f32.gmra.mrb[0].mxu0 %v2772
    %v2774 = vpop.f32.mrb[0].mxu0
    %v2775 = vadd.f32 0.0, %v2774
    %v2776 = vpop.f32.mrb[0].mxu0
    %v2777 = vand.u32 %v2282, 4294901760
    %v2778 = vsub.f32 %v2282, %v2777
    %v2779 = vand.u32 %v2778, 4294901760
    %v2780 = vsub.f32 %v2778, %v2779
    %v2781 = vand.u32 %v2780, 4294901760
    %2782 = vmatprep.mubr.f32.mxu0 %v2781
    %v2783 = vand.u32 %v2183, 4294901760
    %v2784 = vsub.f32 %v2183, %v2783
    %v2785 = vand.u32 %v2784, 4294901760
    %v2786 = vsub.f32 %v2784, %v2785
    %v2787 = vand.u32 %v2786, 4294901760
    %2788 = vmatmul.mubr.f32.gmra.mrb[0].mxu0 %v2787
    %v2789 = vpop.f32.mrb[0].mxu0
    %v2790 = vadd.f32 0.0, %v2789
    %v2791 = vpop.f32.mrb[0].mxu0
    %v2792 = vand.u32 %v2285, 4294901760
    %v2793 = vsub.f32 %v2285, %v2792
    %v2794 = vand.u32 %v2793, 4294901760
    %v2795 = vsub.f32 %v2793, %v2794
    %v2796 = vand.u32 %v2795, 4294901760
    %2797 = vmatprep.mubr.f32.mxu0 %v2796
    %v2798 = vand.u32 %v2185, 4294901760
    %v2799 = vsub.f32 %v2185, %v2798
    %v2800 = vand.u32 %v2799, 4294901760
    %v2801 = vsub.f32 %v2799, %v2800
    %v2802 = vand.u32 %v2801, 4294901760
    %2803 = vmatmul.mubr.f32.gmra.mrb[0].mxu0 %v2802
    %v2804 = vpop.f32.mrb[0].mxu0
    %v2805 = vadd.f32 0.0, %v2804
    %v2806 = vpop.f32.mrb[0].mxu0
    %v2807 = vand.u32 %v2288, 4294901760
    %v2808 = vsub.f32 %v2288, %v2807
    %v2809 = vand.u32 %v2808, 4294901760
    %v2810 = vsub.f32 %v2808, %v2809
    %v2811 = vand.u32 %v2810, 4294901760
    %2812 = vmatprep.mubr.f32.mxu0 %v2811
    %v2813 = vand.u32 %v2187, 4294901760
    %v2814 = vsub.f32 %v2187, %v2813
    %v2815 = vand.u32 %v2814, 4294901760
    %v2816 = vsub.f32 %v2814, %v2815
    %v2817 = vand.u32 %v2816, 4294901760
    %2818 = vmatmul.mubr.f32.gmra.mrb[0].mxu0 %v2817
    %v2819 = vpop.f32.mrb[0].mxu0
    %v2820 = vadd.f32 0.0, %v2819
    %v2821 = vpop.f32.mrb[0].mxu0
    %v2822 = vand.u32 %v2291, 4294901760
    %v2823 = vsub.f32 %v2291, %v2822
    %v2824 = vand.u32 %v2823, 4294901760
    %v2825 = vsub.f32 %v2823, %v2824
    %v2826 = vand.u32 %v2825, 4294901760
    %2827 = vmatprep.mubr.f32.mxu0 %v2826
    %v2828 = vand.u32 %v2189, 4294901760
    %v2829 = vsub.f32 %v2189, %v2828
    %v2830 = vand.u32 %v2829, 4294901760
    %v2831 = vsub.f32 %v2829, %v2830
    %v2832 = vand.u32 %v2831, 4294901760
    %2833 = vmatmul.mubr.f32.gmra.mrb[0].mxu0 %v2832
    %v2834 = vpop.f32.mrb[0].mxu0
    %v2835 = vadd.f32 0.0, %v2834
    %v2836 = vpop.f32.mrb[0].mxu0
    %v2837 = vand.u32 %v2294, 4294901760
    %v2838 = vsub.f32 %v2294, %v2837
    %v2839 = vand.u32 %v2838, 4294901760
    %v2840 = vsub.f32 %v2838, %v2839
    %v2841 = vand.u32 %v2840, 4294901760
    %2842 = vmatprep.mubr.f32.mxu0 %v2841
    %v2843 = vand.u32 %v2191, 4294901760
    %v2844 = vsub.f32 %v2191, %v2843
    %v2845 = vand.u32 %v2844, 4294901760
    %v2846 = vsub.f32 %v2844, %v2845
    %v2847 = vand.u32 %v2846, 4294901760
    %2848 = vmatmul.mubr.f32.gmra.mrb[0].mxu0 %v2847
    %v2849 = vpop.f32.mrb[0].mxu0
    %v2850 = vadd.f32 0.0, %v2849
    %v2851 = vpop.f32.mrb[0].mxu0
    %v2852 = vand.u32 %v2297, 4294901760
    %v2853 = vsub.f32 %v2297, %v2852
    %v2854 = vand.u32 %v2853, 4294901760
    %v2855 = vsub.f32 %v2853, %v2854
    %v2856 = vand.u32 %v2855, 4294901760
    %2857 = vmatprep.mubr.f32.mxu0 %v2856
    %v2858 = vand.u32 %v2193, 4294901760
    %v2859 = vsub.f32 %v2193, %v2858
    %v2860 = vand.u32 %v2859, 4294901760
    %v2861 = vsub.f32 %v2859, %v2860
    %v2862 = vand.u32 %v2861, 4294901760
    %2863 = vmatmul.mubr.f32.gmra.mrb[0].mxu0 %v2862
    %v2864 = vpop.f32.mrb[0].mxu0
    %v2865 = vadd.f32 0.0, %v2864
    %v2866 = vpop.f32.mrb[0].mxu0
    %v2867 = vand.u32 %v2300, 4294901760
    %v2868 = vsub.f32 %v2300, %v2867
    %v2869 = vand.u32 %v2868, 4294901760
    %v2870 = vsub.f32 %v2868, %v2869
    %v2871 = vand.u32 %v2870, 4294901760
    %2872 = vmatprep.mubr.f32.mxu0 %v2871
    %v2873 = vand.u32 %v2195, 4294901760
    %v2874 = vsub.f32 %v2195, %v2873
    %v2875 = vand.u32 %v2874, 4294901760
    %v2876 = vsub.f32 %v2874, %v2875
    %v2877 = vand.u32 %v2876, 4294901760
    %2878 = vmatmul.mubr.f32.gmra.mrb[0].mxu0 %v2877
    %v2879 = vpop.f32.mrb[0].mxu0
    %v2880 = vadd.f32 0.0, %v2879
    %v2881 = vpop.f32.mrb[0].mxu0
    %v2882 = vand.u32 %v2303, 4294901760
    %v2883 = vsub.f32 %v2303, %v2882
    %v2884 = vand.u32 %v2883, 4294901760
    %v2885 = vsub.f32 %v2883, %v2884
    %v2886 = vand.u32 %v2885, 4294901760
    %2887 = vmatprep.mubr.f32.mxu0 %v2886
    %v2888 = vand.u32 %v2197, 4294901760
    %v2889 = vsub.f32 %v2197, %v2888
    %v2890 = vand.u32 %v2889, 4294901760
    %v2891 = vsub.f32 %v2889, %v2890
    %v2892 = vand.u32 %v2891, 4294901760
    %2893 = vmatmul.mubr.f32.gmra.mrb[0].mxu0 %v2892
    %v2894 = vpop.f32.mrb[0].mxu0
    %v2895 = vadd.f32 0.0, %v2894
    %v2896 = vpop.f32.mrb[0].mxu0
    %v2897 = vand.u32 %v2306, 4294901760
    %v2898 = vsub.f32 %v2306, %v2897
    %v2899 = vand.u32 %v2898, 4294901760
    %v2900 = vsub.f32 %v2898, %v2899
    %v2901 = vand.u32 %v2900, 4294901760
    %2902 = vmatprep.mubr.f32.mxu0 %v2901
    %v2903 = vand.u32 %v2199, 4294901760
    %v2904 = vsub.f32 %v2199, %v2903
    %v2905 = vand.u32 %v2904, 4294901760
    %v2906 = vsub.f32 %v2904, %v2905
    %v2907 = vand.u32 %v2906, 4294901760
    %2908 = vmatmul.mubr.f32.gmra.mrb[0].mxu0 %v2907
    %v2909 = vpop.f32.mrb[0].mxu0
    %v2910 = vadd.f32 0.0, %v2909
    %v2911 = vpop.f32.mrb[0].mxu0
    %v2912 = vand.u32 %v2309, 4294901760
    %v2913 = vsub.f32 %v2309, %v2912
    %v2914 = vand.u32 %v2913, 4294901760
    %v2915 = vsub.f32 %v2913, %v2914
    %v2916 = vand.u32 %v2915, 4294901760
    %2917 = vmatprep.mubr.f32.mxu0 %v2916
    %v2918 = vand.u32 %v2201, 4294901760
    %v2919 = vsub.f32 %v2201, %v2918
    %v2920 = vand.u32 %v2919, 4294901760
    %v2921 = vsub.f32 %v2919, %v2920
    %v2922 = vand.u32 %v2921, 4294901760
    %2923 = vmatmul.mubr.f32.gmra.mrb[0].mxu0 %v2922
    %v2924 = vpop.f32.mrb[0].mxu0
    %v2925 = vadd.f32 0.0, %v2924
    %v2926 = vpop.f32.mrb[0].mxu0
    %v2927 = vand.u32 %v2312, 4294901760
    %v2928 = vsub.f32 %v2312, %v2927
    %v2929 = vand.u32 %v2928, 4294901760
    %v2930 = vsub.f32 %v2928, %v2929
    %v2931 = vand.u32 %v2930, 4294901760
    %2932 = vmatprep.mubr.f32.mxu0 %v2931
    %v2933 = vand.u32 %v2203, 4294901760
    %v2934 = vsub.f32 %v2203, %v2933
    %v2935 = vand.u32 %v2934, 4294901760
    %v2936 = vsub.f32 %v2934, %v2935
    %v2937 = vand.u32 %v2936, 4294901760
    %2938 = vmatmul.mubr.f32.gmra.mrb[0].mxu0 %v2937
    %v2939 = vpop.f32.mrb[0].mxu0
    %v2940 = vadd.f32 0.0, %v2939
    %v2941 = vpop.f32.mrb[0].mxu0
    %2942 = vdwg.mxu0
    %2943 = vmatprep.subr.mxu0 0.0
    %v2944 = vand.u32 %v1992, 4294901760
    %v2945 = vsub.f32 %v1992, %v2944
    %v2946 = vand.u32 %v2945, 4294901760
    %v2947 = vsub.f32 %v2945, %v2946
    %v2948 = vand.u32 %v2947, 4294901760
    %2949 = vmatpush1.msra.mxu0 %v2948
    %2950 = vmatprep.subr.mxu0 0.0
    %v2951 = vand.u32 %v1998, 4294901760
    %v2952 = vsub.f32 %v1998, %v2951
    %v2953 = vand.u32 %v2952, 4294901760
    %v2954 = vsub.f32 %v2952, %v2953
    %v2955 = vand.u32 %v2954, 4294901760
    %2956 = vmatpush1.msra.mxu0 %v2955
    %2957 = vmatprep.subr.mxu0 0.0
    %v2958 = vand.u32 %v2004, 4294901760
    %v2959 = vsub.f32 %v2004, %v2958
    %v2960 = vand.u32 %v2959, 4294901760
    %v2961 = vsub.f32 %v2959, %v2960
    %v2962 = vand.u32 %v2961, 4294901760
    %2963 = vmatpush1.msra.mxu0 %v2962
    %2964 = vmatprep.subr.mxu0 0.0
    %v2965 = vand.u32 %v2010, 4294901760
    %v2966 = vsub.f32 %v2010, %v2965
    %v2967 = vand.u32 %v2966, 4294901760
    %v2968 = vsub.f32 %v2966, %v2967
    %v2969 = vand.u32 %v2968, 4294901760
    %2970 = vmatpush1.msra.mxu0 %v2969
    %2971 = vmatprep.subr.mxu0 0.0
    %v2972 = vand.u32 %v2016, 4294901760
    %v2973 = vsub.f32 %v2016, %v2972
    %v2974 = vand.u32 %v2973, 4294901760
    %v2975 = vsub.f32 %v2973, %v2974
    %v2976 = vand.u32 %v2975, 4294901760
    %2977 = vmatpush1.msra.mxu0 %v2976
    %2978 = vmatprep.subr.mxu0 0.0
    %v2979 = vand.u32 %v2022, 4294901760
    %v2980 = vsub.f32 %v2022, %v2979
    %v2981 = vand.u32 %v2980, 4294901760
    %v2982 = vsub.f32 %v2980, %v2981
    %v2983 = vand.u32 %v2982, 4294901760
    %2984 = vmatpush1.msra.mxu0 %v2983
    %2985 = vmatprep.subr.mxu0 0.0
    %v2986 = vand.u32 %v2028, 4294901760
    %v2987 = vsub.f32 %v2028, %v2986
    %v2988 = vand.u32 %v2987, 4294901760
    %v2989 = vsub.f32 %v2987, %v2988
    %v2990 = vand.u32 %v2989, 4294901760
    %2991 = vmatpush1.msra.mxu0 %v2990
    %2992 = vmatprep.subr.mxu0 0.0
    %v2993 = vand.u32 %v2034, 4294901760
    %v2994 = vsub.f32 %v2034, %v2993
    %v2995 = vand.u32 %v2994, 4294901760
    %v2996 = vsub.f32 %v2994, %v2995
    %v2997 = vand.u32 %v2996, 4294901760
    %2998 = vmatpush1.msra.mxu0 %v2997
    %2999 = vmatprep.subr.mxu0 0.0
    %v3000 = vand.u32 %v2040, 4294901760
    %v3001 = vsub.f32 %v2040, %v3000
    %v3002 = vand.u32 %v3001, 4294901760
    %v3003 = vsub.f32 %v3001, %v3002
    %v3004 = vand.u32 %v3003, 4294901760
    %3005 = vmatpush1.msra.mxu0 %v3004
    %3006 = vmatprep.subr.mxu0 0.0
    %v3007 = vand.u32 %v2046, 4294901760
    %v3008 = vsub.f32 %v2046, %v3007
    %v3009 = vand.u32 %v3008, 4294901760
    %v3010 = vsub.f32 %v3008, %v3009
    %v3011 = vand.u32 %v3010, 4294901760
    %3012 = vmatpush1.msra.mxu0 %v3011
    %3013 = vmatprep.subr.mxu0 0.0
    %v3014 = vand.u32 %v2052, 4294901760
    %v3015 = vsub.f32 %v2052, %v3014
    %v3016 = vand.u32 %v3015, 4294901760
    %v3017 = vsub.f32 %v3015, %v3016
    %v3018 = vand.u32 %v3017, 4294901760
    %3019 = vmatpush1.msra.mxu0 %v3018
    %3020 = vmatprep.subr.mxu0 0.0
    %v3021 = vand.u32 %v2058, 4294901760
    %v3022 = vsub.f32 %v2058, %v3021
    %v3023 = vand.u32 %v3022, 4294901760
    %v3024 = vsub.f32 %v3022, %v3023
    %v3025 = vand.u32 %v3024, 4294901760
    %3026 = vmatpush1.msra.mxu0 %v3025
    %3027 = vmatprep.subr.mxu0 0.0
    %v3028 = vand.u32 %v2064, 4294901760
    %v3029 = vsub.f32 %v2064, %v3028
    %v3030 = vand.u32 %v3029, 4294901760
    %v3031 = vsub.f32 %v3029, %v3030
    %v3032 = vand.u32 %v3031, 4294901760
    %3033 = vmatpush1.msra.mxu0 %v3032
    %3034 = vmatprep.subr.mxu0 0.0
    %v3035 = vand.u32 %v2070, 4294901760
    %v3036 = vsub.f32 %v2070, %v3035
    %v3037 = vand.u32 %v3036, 4294901760
    %v3038 = vsub.f32 %v3036, %v3037
    %v3039 = vand.u32 %v3038, 4294901760
    %3040 = vmatpush1.msra.mxu0 %v3039
    %3041 = vmatprep.subr.mxu0 0.0
    %v3042 = vand.u32 %v2076, 4294901760
    %v3043 = vsub.f32 %v2076, %v3042
    %v3044 = vand.u32 %v3043, 4294901760
    %v3045 = vsub.f32 %v3043, %v3044
    %v3046 = vand.u32 %v3045, 4294901760
    %3047 = vmatpush1.msra.mxu0 %v3046
    %3048 = vmatprep.subr.mxu0 0.0
    %v3049 = vand.u32 %v2082, 4294901760
    %v3050 = vsub.f32 %v2082, %v3049
    %v3051 = vand.u32 %v3050, 4294901760
    %v3052 = vsub.f32 %v3050, %v3051
    %v3053 = vand.u32 %v3052, 4294901760
    %3054 = vmatpush1.msra.mxu0 %v3053
    %3055 = vmatprep.subr.mxu0 0.0
    %v3056 = vand.u32 %v2088, 4294901760
    %v3057 = vsub.f32 %v2088, %v3056
    %v3058 = vand.u32 %v3057, 4294901760
    %v3059 = vsub.f32 %v3057, %v3058
    %v3060 = vand.u32 %v3059, 4294901760
    %3061 = vmatpush1.msra.mxu0 %v3060
    %3062 = vmatprep.subr.mxu0 0.0
    %v3063 = vand.u32 %v2094, 4294901760
    %v3064 = vsub.f32 %v2094, %v3063
    %v3065 = vand.u32 %v3064, 4294901760
    %v3066 = vsub.f32 %v3064, %v3065
    %v3067 = vand.u32 %v3066, 4294901760
    %3068 = vmatpush1.msra.mxu0 %v3067
    %3069 = vmatprep.subr.mxu0 0.0
    %v3070 = vand.u32 %v2100, 4294901760
    %v3071 = vsub.f32 %v2100, %v3070
    %v3072 = vand.u32 %v3071, 4294901760
    %v3073 = vsub.f32 %v3071, %v3072
    %v3074 = vand.u32 %v3073, 4294901760
    %3075 = vmatpush1.msra.mxu0 %v3074
    %3076 = vmatprep.subr.mxu0 0.0
    %v3077 = vand.u32 %v2106, 4294901760
    %v3078 = vsub.f32 %v2106, %v3077
    %v3079 = vand.u32 %v3078, 4294901760
    %v3080 = vsub.f32 %v3078, %v3079
    %v3081 = vand.u32 %v3080, 4294901760
    %3082 = vmatpush1.msra.mxu0 %v3081
    %3083 = vmatprep.subr.mxu0 0.0
    %v3084 = vand.u32 %v2112, 4294901760
    %v3085 = vsub.f32 %v2112, %v3084
    %v3086 = vand.u32 %v3085, 4294901760
    %v3087 = vsub.f32 %v3085, %v3086
    %v3088 = vand.u32 %v3087, 4294901760
    %3089 = vmatpush1.msra.mxu0 %v3088
    %3090 = vmatprep.subr.mxu0 0.0
    %v3091 = vand.u32 %v2118, 4294901760
    %v3092 = vsub.f32 %v2118, %v3091
    %v3093 = vand.u32 %v3092, 4294901760
    %v3094 = vsub.f32 %v3092, %v3093
    %v3095 = vand.u32 %v3094, 4294901760
    %3096 = vmatpush1.msra.mxu0 %v3095
    %3097 = vmatprep.subr.mxu0 0.0
    %v3098 = vand.u32 %v2124, 4294901760
    %v3099 = vsub.f32 %v2124, %v3098
    %v3100 = vand.u32 %v3099, 4294901760
    %v3101 = vsub.f32 %v3099, %v3100
    %v3102 = vand.u32 %v3101, 4294901760
    %3103 = vmatpush1.msra.mxu0 %v3102
    %3104 = vmatprep.subr.mxu0 0.0
    %v3105 = vand.u32 %v2130, 4294901760
    %v3106 = vsub.f32 %v2130, %v3105
    %v3107 = vand.u32 %v3106, 4294901760
    %v3108 = vsub.f32 %v3106, %v3107
    %v3109 = vand.u32 %v3108, 4294901760
    %3110 = vmatpush1.msra.mxu0 %v3109
    %3111 = vmatprep.subr.mxu0 0.0
    %3112 = vmatpush1.msra.mxu0 0.0
    %3113 = vmatprep.subr.mxu0 0.0
    %3114 = vmatpush1.msra.mxu0 0.0
    %3115 = vmatprep.subr.mxu0 0.0
    %3116 = vmatpush1.msra.mxu0 0.0
    %3117 = vmatprep.subr.mxu0 0.0
    %3118 = vmatpush1.msra.mxu0 0.0
    %3119 = vmatprep.subr.mxu0 0.0
    %3120 = vmatpush1.msra.mxu0 0.0
    %3121 = vmatprep.subr.mxu0 0.0
    %3122 = vmatpush1.msra.mxu0 0.0
    %3123 = vmatprep.subr.mxu0 0.0
    %3124 = vmatpush1.msra.mxu0 0.0
    %3125 = vmatprep.subr.mxu0 0.0
    %3126 = vmatpush1.msra.mxu0 0.0
    %v3127 = vand.u32 %v2207, 4294901760
    %3128 = vmatprep.mubr.f32.mxu0 %v3127
    %v3129 = vand.u32 %v2133, 4294901760
    %3130 = vmatmul.mubr.f32.gmra.mrb[0].mxu0 %v3129
    %v3131 = vpop.f32.mrb[0].mxu0
    %v3132 = vadd.f32 %v2415, %v3131
    %v3133 = vpop.f32.mrb[0].mxu0
    %v3134 = vand.u32 %v2210, 4294901760
    %3135 = vmatprep.mubr.f32.mxu0 %v3134
    %v3136 = vand.u32 %v2135, 4294901760
    %3137 = vmatmul.mubr.f32.gmra.mrb[0].mxu0 %v3136
    %v3138 = vpop.f32.mrb[0].mxu0
    %v3139 = vadd.f32 %v2430, %v3138
    %v3140 = vpop.f32.mrb[0].mxu0
    %v3141 = vand.u32 %v2213, 4294901760
    %3142 = vmatprep.mubr.f32.mxu0 %v3141
    %v3143 = vand.u32 %v2137, 4294901760
    %3144 = vmatmul.mubr.f32.gmra.mrb[0].mxu0 %v3143
    %v3145 = vpop.f32.mrb[0].mxu0
    %v3146 = vadd.f32 %v2445, %v3145
    %v3147 = vpop.f32.mrb[0].mxu0
    %v3148 = vand.u32 %v2216, 4294901760
    %3149 = vmatprep.mubr.f32.mxu0 %v3148
    %v3150 = vand.u32 %v2139, 4294901760
    %3151 = vmatmul.mubr.f32.gmra.mrb[0].mxu0 %v3150
    %v3152 = vpop.f32.mrb[0].mxu0
    %v3153 = vadd.f32 %v2460, %v3152
    %v3154 = vpop.f32.mrb[0].mxu0
    %v3155 = vand.u32 %v2219, 4294901760
    %3156 = vmatprep.mubr.f32.mxu0 %v3155
    %v3157 = vand.u32 %v2141, 4294901760
    %3158 = vmatmul.mubr.f32.gmra.mrb[0].mxu0 %v3157
    %v3159 = vpop.f32.mrb[0].mxu0
    %v3160 = vadd.f32 %v2475, %v3159
    %v3161 = vpop.f32.mrb[0].mxu0
    %v3162 = vand.u32 %v2222, 4294901760
    %3163 = vmatprep.mubr.f32.mxu0 %v3162
    %v3164 = vand.u32 %v2143, 4294901760
    %3165 = vmatmul.mubr.f32.gmra.mrb[0].mxu0 %v3164
    %v3166 = vpop.f32.mrb[0].mxu0
    %v3167 = vadd.f32 %v2490, %v3166
    %v3168 = vpop.f32.mrb[0].mxu0
    %v3169 = vand.u32 %v2225, 4294901760
    %3170 = vmatprep.mubr.f32.mxu0 %v3169
    %v3171 = vand.u32 %v2145, 4294901760
    %3172 = vmatmul.mubr.f32.gmra.mrb[0].mxu0 %v3171
    %v3173 = vpop.f32.mrb[0].mxu0
    %v3174 = vadd.f32 %v2505, %v3173
    %v3175 = vpop.f32.mrb[0].mxu0
    %v3176 = vand.u32 %v2228, 4294901760
    %3177 = vmatprep.mubr.f32.mxu0 %v3176
    %v3178 = vand.u32 %v2147, 4294901760
    %3179 = vmatmul.mubr.f32.gmra.mrb[0].mxu0 %v3178
    %v3180 = vpop.f32.mrb[0].mxu0
    %v3181 = vadd.f32 %v2520, %v3180
    %v3182 = vpop.f32.mrb[0].mxu0
    %v3183 = vand.u32 %v2231, 4294901760
    %3184 = vmatprep.mubr.f32.mxu0 %v3183
    %v3185 = vand.u32 %v2149, 4294901760
    %3186 = vmatmul.mubr.f32.gmra.mrb[0].mxu0 %v3185
    %v3187 = vpop.f32.mrb[0].mxu0
    %v3188 = vadd.f32 %v2535, %v3187
    %v3189 = vpop.f32.mrb[0].mxu0
    %v3190 = vand.u32 %v2234, 4294901760
    %3191 = vmatprep.mubr.f32.mxu0 %v3190
    %v3192 = vand.u32 %v2151, 4294901760
    %3193 = vmatmul.mubr.f32.gmra.mrb[0].mxu0 %v3192
    %v3194 = vpop.f32.mrb[0].mxu0
    %v3195 = vadd.f32 %v2550, %v3194
    %v3196 = vpop.f32.mrb[0].mxu0
    %v3197 = vand.u32 %v2237, 4294901760
    %3198 = vmatprep.mubr.f32.mxu0 %v3197
    %v3199 = vand.u32 %v2153, 4294901760
    %3200 = vmatmul.mubr.f32.gmra.mrb[0].mxu0 %v3199
    %v3201 = vpop.f32.mrb[0].mxu0
    %v3202 = vadd.f32 %v2565, %v3201
    %v3203 = vpop.f32.mrb[0].mxu0
    %v3204 = vand.u32 %v2240, 4294901760
    %3205 = vmatprep.mubr.f32.mxu0 %v3204
    %v3206 = vand.u32 %v2155, 4294901760
    %3207 = vmatmul.mubr.f32.gmra.mrb[0].mxu0 %v3206
    %v3208 = vpop.f32.mrb[0].mxu0
    %v3209 = vadd.f32 %v2580, %v3208
    %v3210 = vpop.f32.mrb[0].mxu0
    %v3211 = vand.u32 %v2243, 4294901760
    %3212 = vmatprep.mubr.f32.mxu0 %v3211
    %v3213 = vand.u32 %v2157, 4294901760
    %3214 = vmatmul.mubr.f32.gmra.mrb[0].mxu0 %v3213
    %v3215 = vpop.f32.mrb[0].mxu0
    %v3216 = vadd.f32 %v2595, %v3215
    %v3217 = vpop.f32.mrb[0].mxu0
    %v3218 = vand.u32 %v2246, 4294901760
    %3219 = vmatprep.mubr.f32.mxu0 %v3218
    %v3220 = vand.u32 %v2159, 4294901760
    %3221 = vmatmul.mubr.f32.gmra.mrb[0].mxu0 %v3220
    %v3222 = vpop.f32.mrb[0].mxu0
    %v3223 = vadd.f32 %v2610, %v3222
    %v3224 = vpop.f32.mrb[0].mxu0
    %v3225 = vand.u32 %v2249, 4294901760
    %3226 = vmatprep.mubr.f32.mxu0 %v3225
    %v3227 = vand.u32 %v2161, 4294901760
    %3228 = vmatmul.mubr.f32.gmra.mrb[0].mxu0 %v3227
    %v3229 = vpop.f32.mrb[0].mxu0
    %v3230 = vadd.f32 %v2625, %v3229
    %v3231 = vpop.f32.mrb[0].mxu0
    %v3232 = vand.u32 %v2252, 4294901760
    %3233 = vmatprep.mubr.f32.mxu0 %v3232
    %v3234 = vand.u32 %v2163, 4294901760
    %3235 = vmatmul.mubr.f32.gmra.mrb[0].mxu0 %v3234
    %v3236 = vpop.f32.mrb[0].mxu0
    %v3237 = vadd.f32 %v2640, %v3236
    %v3238 = vpop.f32.mrb[0].mxu0
    %v3239 = vand.u32 %v2255, 4294901760
    %3240 = vmatprep.mubr.f32.mxu0 %v3239
    %v3241 = vand.u32 %v2165, 4294901760
    %3242 = vmatmul.mubr.f32.gmra.mrb[0].mxu0 %v3241
    %v3243 = vpop.f32.mrb[0].mxu0
    %v3244 = vadd.f32 %v2655, %v3243
    %v3245 = vpop.f32.mrb[0].mxu0
    %v3246 = vand.u32 %v2258, 4294901760
    %3247 = vmatprep.mubr.f32.mxu0 %v3246
    %v3248 = vand.u32 %v2167, 4294901760
    %3249 = vmatmul.mubr.f32.gmra.mrb[0].mxu0 %v3248
    %v3250 = vpop.f32.mrb[0].mxu0
    %v3251 = vadd.f32 %v2670, %v3250
    %v3252 = vpop.f32.mrb[0].mxu0
    %v3253 = vand.u32 %v2261, 4294901760
    %3254 = vmatprep.mubr.f32.mxu0 %v3253
    %v3255 = vand.u32 %v2169, 4294901760
    %3256 = vmatmul.mubr.f32.gmra.mrb[0].mxu0 %v3255
    %v3257 = vpop.f32.mrb[0].mxu0
    %v3258 = vadd.f32 %v2685, %v3257
    %v3259 = vpop.f32.mrb[0].mxu0
    %v3260 = vand.u32 %v2264, 4294901760
    %3261 = vmatprep.mubr.f32.mxu0 %v3260
    %v3262 = vand.u32 %v2171, 4294901760
    %3263 = vmatmul.mubr.f32.gmra.mrb[0].mxu0 %v3262
    %v3264 = vpop.f32.mrb[0].mxu0
    %v3265 = vadd.f32 %v2700, %v3264
    %v3266 = vpop.f32.mrb[0].mxu0
    %v3267 = vand.u32 %v2267, 4294901760
    %3268 = vmatprep.mubr.f32.mxu0 %v3267
    %v3269 = vand.u32 %v2173, 4294901760
    %3270 = vmatmul.mubr.f32.gmra.mrb[0].mxu0 %v3269
    %v3271 = vpop.f32.mrb[0].mxu0
    %v3272 = vadd.f32 %v2715, %v3271
    %v3273 = vpop.f32.mrb[0].mxu0
    %v3274 = vand.u32 %v2270, 4294901760
    %3275 = vmatprep.mubr.f32.mxu0 %v3274
    %v3276 = vand.u32 %v2175, 4294901760
    %3277 = vmatmul.mubr.f32.gmra.mrb[0].mxu0 %v3276
    %v3278 = vpop.f32.mrb[0].mxu0
    %v3279 = vadd.f32 %v2730, %v3278
    %v3280 = vpop.f32.mrb[0].mxu0
    %v3281 = vand.u32 %v2273, 4294901760
    %3282 = vmatprep.mubr.f32.mxu0 %v3281
    %v3283 = vand.u32 %v2177, 4294901760
    %3284 = vmatmul.mubr.f32.gmra.mrb[0].mxu0 %v3283
    %v3285 = vpop.f32.mrb[0].mxu0
    %v3286 = vadd.f32 %v2745, %v3285
    %v3287 = vpop.f32.mrb[0].mxu0
    %v3288 = vand.u32 %v2276, 4294901760
    %3289 = vmatprep.mubr.f32.mxu0 %v3288
    %v3290 = vand.u32 %v2179, 4294901760
    %3291 = vmatmul.mubr.f32.gmra.mrb[0].mxu0 %v3290
    %v3292 = vpop.f32.mrb[0].mxu0
    %v3293 = vadd.f32 %v2760, %v3292
    %v3294 = vpop.f32.mrb[0].mxu0
    %v3295 = vand.u32 %v2279, 4294901760
    %3296 = vmatprep.mubr.f32.mxu0 %v3295
    %v3297 = vand.u32 %v2181, 4294901760
    %3298 = vmatmul.mubr.f32.gmra.mrb[0].mxu0 %v3297
    %v3299 = vpop.f32.mrb[0].mxu0
    %v3300 = vadd.f32 %v2775, %v3299
    %v3301 = vpop.f32.mrb[0].mxu0
    %v3302 = vand.u32 %v2282, 4294901760
    %3303 = vmatprep.mubr.f32.mxu0 %v3302
    %v3304 = vand.u32 %v2183, 4294901760
    %3305 = vmatmul.mubr.f32.gmra.mrb[0].mxu0 %v3304
    %v3306 = vpop.f32.mrb[0].mxu0
    %v3307 = vadd.f32 %v2790, %v3306
    %v3308 = vpop.f32.mrb[0].mxu0
    %v3309 = vand.u32 %v2285, 4294901760
    %3310 = vmatprep.mubr.f32.mxu0 %v3309
    %v3311 = vand.u32 %v2185, 4294901760
    %3312 = vmatmul.mubr.f32.gmra.mrb[0].mxu0 %v3311
    %v3313 = vpop.f32.mrb[0].mxu0
    %v3314 = vadd.f32 %v2805, %v3313
    %v3315 = vpop.f32.mrb[0].mxu0
    %v3316 = vand.u32 %v2288, 4294901760
    %3317 = vmatprep.mubr.f32.mxu0 %v3316
    %v3318 = vand.u32 %v2187, 4294901760
    %3319 = vmatmul.mubr.f32.gmra.mrb[0].mxu0 %v3318
    %v3320 = vpop.f32.mrb[0].mxu0
    %v3321 = vadd.f32 %v2820, %v3320
    %v3322 = vpop.f32.mrb[0].mxu0
    %v3323 = vand.u32 %v2291, 4294901760
    %3324 = vmatprep.mubr.f32.mxu0 %v3323
    %v3325 = vand.u32 %v2189, 4294901760
    %3326 = vmatmul.mubr.f32.gmra.mrb[0].mxu0 %v3325
    %v3327 = vpop.f32.mrb[0].mxu0
    %v3328 = vadd.f32 %v2835, %v3327
    %v3329 = vpop.f32.mrb[0].mxu0
    %v3330 = vand.u32 %v2294, 4294901760
    %3331 = vmatprep.mubr.f32.mxu0 %v3330
    %v3332 = vand.u32 %v2191, 4294901760
    %3333 = vmatmul.mubr.f32.gmra.mrb[0].mxu0 %v3332
    %v3334 = vpop.f32.mrb[0].mxu0
    %v3335 = vadd.f32 %v2850, %v3334
    %v3336 = vpop.f32.mrb[0].mxu0
    %v3337 = vand.u32 %v2297, 4294901760
    %3338 = vmatprep.mubr.f32.mxu0 %v3337
    %v3339 = vand.u32 %v2193, 4294901760
    %3340 = vmatmul.mubr.f32.gmra.mrb[0].mxu0 %v3339
    %v3341 = vpop.f32.mrb[0].mxu0
    %v3342 = vadd.f32 %v2865, %v3341
    %v3343 = vpop.f32.mrb[0].mxu0
    %v3344 = vand.u32 %v2300, 4294901760
    %3345 = vmatprep.mubr.f32.mxu0 %v3344
    %v3346 = vand.u32 %v2195, 4294901760
    %3347 = vmatmul.mubr.f32.gmra.mrb[0].mxu0 %v3346
    %v3348 = vpop.f32.mrb[0].mxu0
    %v3349 = vadd.f32 %v2880, %v3348
    %v3350 = vpop.f32.mrb[0].mxu0
    %v3351 = vand.u32 %v2303, 4294901760
    %3352 = vmatprep.mubr.f32.mxu0 %v3351
    %v3353 = vand.u32 %v2197, 4294901760
    %3354 = vmatmul.mubr.f32.gmra.mrb[0].mxu0 %v3353
    %v3355 = vpop.f32.mrb[0].mxu0
    %v3356 = vadd.f32 %v2895, %v3355
    %v3357 = vpop.f32.mrb[0].mxu0
    %v3358 = vand.u32 %v2306, 4294901760
    %3359 = vmatprep.mubr.f32.mxu0 %v3358
    %v3360 = vand.u32 %v2199, 4294901760
    %3361 = vmatmul.mubr.f32.gmra.mrb[0].mxu0 %v3360
    %v3362 = vpop.f32.mrb[0].mxu0
    %v3363 = vadd.f32 %v2910, %v3362
    %v3364 = vpop.f32.mrb[0].mxu0
    %v3365 = vand.u32 %v2309, 4294901760
    %3366 = vmatprep.mubr.f32.mxu0 %v3365
    %v3367 = vand.u32 %v2201, 4294901760
    %3368 = vmatmul.mubr.f32.gmra.mrb[0].mxu0 %v3367
    %v3369 = vpop.f32.mrb[0].mxu0
    %v3370 = vadd.f32 %v2925, %v3369
    %v3371 = vpop.f32.mrb[0].mxu0
    %v3372 = vand.u32 %v2312, 4294901760
    %3373 = vmatprep.mubr.f32.mxu0 %v3372
    %v3374 = vand.u32 %v2203, 4294901760
    %3375 = vmatmul.mubr.f32.gmra.mrb[0].mxu0 %v3374
    %v3376 = vpop.f32.mrb[0].mxu0
    %v3377 = vadd.f32 %v2940, %v3376
    %v3378 = vpop.f32.mrb[0].mxu0
    %3379 = vdwg.mxu0
    %3380 = vmatprep.subr.mxu0 0.0
    %v3381 = vand.u32 %v1992, 4294901760
    %v3382 = vsub.f32 %v1992, %v3381
    %3383 = vmatpush1.msra.mxu0 %v3382
    %3384 = vmatprep.subr.mxu0 0.0
    %v3385 = vand.u32 %v1998, 4294901760
    %v3386 = vsub.f32 %v1998, %v3385
    %3387 = vmatpush1.msra.mxu0 %v3386
    %3388 = vmatprep.subr.mxu0 0.0
    %v3389 = vand.u32 %v2004, 4294901760
    %v3390 = vsub.f32 %v2004, %v3389
    %3391 = vmatpush1.msra.mxu0 %v3390
    %3392 = vmatprep.subr.mxu0 0.0
    %v3393 = vand.u32 %v2010, 4294901760
    %v3394 = vsub.f32 %v2010, %v3393
    %3395 = vmatpush1.msra.mxu0 %v3394
    %3396 = vmatprep.subr.mxu0 0.0
    %v3397 = vand.u32 %v2016, 4294901760
    %v3398 = vsub.f32 %v2016, %v3397
    %3399 = vmatpush1.msra.mxu0 %v3398
    %3400 = vmatprep.subr.mxu0 0.0
    %v3401 = vand.u32 %v2022, 4294901760
    %v3402 = vsub.f32 %v2022, %v3401
    %3403 = vmatpush1.msra.mxu0 %v3402
    %3404 = vmatprep.subr.mxu0 0.0
    %v3405 = vand.u32 %v2028, 4294901760
    %v3406 = vsub.f32 %v2028, %v3405
    %3407 = vmatpush1.msra.mxu0 %v3406
    %3408 = vmatprep.subr.mxu0 0.0
    %v3409 = vand.u32 %v2034, 4294901760
    %v3410 = vsub.f32 %v2034, %v3409
    %3411 = vmatpush1.msra.mxu0 %v3410
    %3412 = vmatprep.subr.mxu0 0.0
    %v3413 = vand.u32 %v2040, 4294901760
    %v3414 = vsub.f32 %v2040, %v3413
    %3415 = vmatpush1.msra.mxu0 %v3414
    %3416 = vmatprep.subr.mxu0 0.0
    %v3417 = vand.u32 %v2046, 4294901760
    %v3418 = vsub.f32 %v2046, %v3417
    %3419 = vmatpush1.msra.mxu0 %v3418
    %3420 = vmatprep.subr.mxu0 0.0
    %v3421 = vand.u32 %v2052, 4294901760
    %v3422 = vsub.f32 %v2052, %v3421
    %3423 = vmatpush1.msra.mxu0 %v3422
    %3424 = vmatprep.subr.mxu0 0.0
    %v3425 = vand.u32 %v2058, 4294901760
    %v3426 = vsub.f32 %v2058, %v3425
    %3427 = vmatpush1.msra.mxu0 %v3426
    %3428 = vmatprep.subr.mxu0 0.0
    %v3429 = vand.u32 %v2064, 4294901760
    %v3430 = vsub.f32 %v2064, %v3429
    %3431 = vmatpush1.msra.mxu0 %v3430
    %3432 = vmatprep.subr.mxu0 0.0
    %v3433 = vand.u32 %v2070, 4294901760
    %v3434 = vsub.f32 %v2070, %v3433
    %3435 = vmatpush1.msra.mxu0 %v3434
    %3436 = vmatprep.subr.mxu0 0.0
    %v3437 = vand.u32 %v2076, 4294901760
    %v3438 = vsub.f32 %v2076, %v3437
    %3439 = vmatpush1.msra.mxu0 %v3438
    %3440 = vmatprep.subr.mxu0 0.0
    %v3441 = vand.u32 %v2082, 4294901760
    %v3442 = vsub.f32 %v2082, %v3441
    %3443 = vmatpush1.msra.mxu0 %v3442
    %3444 = vmatprep.subr.mxu0 0.0
    %v3445 = vand.u32 %v2088, 4294901760
    %v3446 = vsub.f32 %v2088, %v3445
    %3447 = vmatpush1.msra.mxu0 %v3446
    %3448 = vmatprep.subr.mxu0 0.0
    %v3449 = vand.u32 %v2094, 4294901760
    %v3450 = vsub.f32 %v2094, %v3449
    %3451 = vmatpush1.msra.mxu0 %v3450
    %3452 = vmatprep.subr.mxu0 0.0
    %v3453 = vand.u32 %v2100, 4294901760
    %v3454 = vsub.f32 %v2100, %v3453
    %3455 = vmatpush1.msra.mxu0 %v3454
    %3456 = vmatprep.subr.mxu0 0.0
    %v3457 = vand.u32 %v2106, 4294901760
    %v3458 = vsub.f32 %v2106, %v3457
    %3459 = vmatpush1.msra.mxu0 %v3458
    %3460 = vmatprep.subr.mxu0 0.0
    %v3461 = vand.u32 %v2112, 4294901760
    %v3462 = vsub.f32 %v2112, %v3461
    %3463 = vmatpush1.msra.mxu0 %v3462
    %3464 = vmatprep.subr.mxu0 0.0
    %v3465 = vand.u32 %v2118, 4294901760
    %v3466 = vsub.f32 %v2118, %v3465
    %3467 = vmatpush1.msra.mxu0 %v3466
    %3468 = vmatprep.subr.mxu0 0.0
    %v3469 = vand.u32 %v2124, 4294901760
    %v3470 = vsub.f32 %v2124, %v3469
    %3471 = vmatpush1.msra.mxu0 %v3470
    %3472 = vmatprep.subr.mxu0 0.0
    %v3473 = vand.u32 %v2130, 4294901760
    %v3474 = vsub.f32 %v2130, %v3473
    %3475 = vmatpush1.msra.mxu0 %v3474
    %3476 = vmatprep.subr.mxu0 0.0
    %3477 = vmatpush1.msra.mxu0 0.0
    %3478 = vmatprep.subr.mxu0 0.0
    %3479 = vmatpush1.msra.mxu0 0.0
    %3480 = vmatprep.subr.mxu0 0.0
    %3481 = vmatpush1.msra.mxu0 0.0
    %3482 = vmatprep.subr.mxu0 0.0
    %3483 = vmatpush1.msra.mxu0 0.0
    %3484 = vmatprep.subr.mxu0 0.0
    %3485 = vmatpush1.msra.mxu0 0.0
    %3486 = vmatprep.subr.mxu0 0.0
    %3487 = vmatpush1.msra.mxu0 0.0
    %3488 = vmatprep.subr.mxu0 0.0
    %3489 = vmatpush1.msra.mxu0 0.0
    %3490 = vmatprep.subr.mxu0 0.0
    %3491 = vmatpush1.msra.mxu0 0.0
    %v3492 = vand.u32 %v2207, 4294901760
    %v3493 = vsub.f32 %v2207, %v3492
    %3494 = vmatprep.mubr.f32.mxu0 %v3493
    %v3495 = vand.u32 %v2133, 4294901760
    %v3496 = vsub.f32 %v2133, %v3495
    %3497 = vmatmul.mubr.f32.gmra.mrb[0].mxu0 %v3496
    %v3498 = vpop.f32.mrb[0].mxu0
    %v3499 = vadd.f32 %v3132, %v3498
    %v3500 = vpop.f32.mrb[0].mxu0
    %v3501 = vand.u32 %v2210, 4294901760
    %v3502 = vsub.f32 %v2210, %v3501
    %3503 = vmatprep.mubr.f32.mxu0 %v3502
    %v3504 = vand.u32 %v2135, 4294901760
    %v3505 = vsub.f32 %v2135, %v3504
    %3506 = vmatmul.mubr.f32.gmra.mrb[0].mxu0 %v3505
    %v3507 = vpop.f32.mrb[0].mxu0
    %v3508 = vadd.f32 %v3139, %v3507
    %v3509 = vpop.f32.mrb[0].mxu0
    %v3510 = vand.u32 %v2213, 4294901760
    %v3511 = vsub.f32 %v2213, %v3510
    %3512 = vmatprep.mubr.f32.mxu0 %v3511
    %v3513 = vand.u32 %v2137, 4294901760
    %v3514 = vsub.f32 %v2137, %v3513
    %3515 = vmatmul.mubr.f32.gmra.mrb[0].mxu0 %v3514
    %v3516 = vpop.f32.mrb[0].mxu0
    %v3517 = vadd.f32 %v3146, %v3516
    %v3518 = vpop.f32.mrb[0].mxu0
    %v3519 = vand.u32 %v2216, 4294901760
    %v3520 = vsub.f32 %v2216, %v3519
    %3521 = vmatprep.mubr.f32.mxu0 %v3520
    %v3522 = vand.u32 %v2139, 4294901760
    %v3523 = vsub.f32 %v2139, %v3522
    %3524 = vmatmul.mubr.f32.gmra.mrb[0].mxu0 %v3523
    %v3525 = vpop.f32.mrb[0].mxu0
    %v3526 = vadd.f32 %v3153, %v3525
    %v3527 = vpop.f32.mrb[0].mxu0
    %v3528 = vand.u32 %v2219, 4294901760
    %v3529 = vsub.f32 %v2219, %v3528
    %3530 = vmatprep.mubr.f32.mxu0 %v3529
    %v3531 = vand.u32 %v2141, 4294901760
    %v3532 = vsub.f32 %v2141, %v3531
    %3533 = vmatmul.mubr.f32.gmra.mrb[0].mxu0 %v3532
    %v3534 = vpop.f32.mrb[0].mxu0
    %v3535 = vadd.f32 %v3160, %v3534
    %v3536 = vpop.f32.mrb[0].mxu0
    %v3537 = vand.u32 %v2222, 4294901760
    %v3538 = vsub.f32 %v2222, %v3537
    %3539 = vmatprep.mubr.f32.mxu0 %v3538
    %v3540 = vand.u32 %v2143, 4294901760
    %v3541 = vsub.f32 %v2143, %v3540
    %3542 = vmatmul.mubr.f32.gmra.mrb[0].mxu0 %v3541
    %v3543 = vpop.f32.mrb[0].mxu0
    %v3544 = vadd.f32 %v3167, %v3543
    %v3545 = vpop.f32.mrb[0].mxu0
    %v3546 = vand.u32 %v2225, 4294901760
    %v3547 = vsub.f32 %v2225, %v3546
    %3548 = vmatprep.mubr.f32.mxu0 %v3547
    %v3549 = vand.u32 %v2145, 4294901760
    %v3550 = vsub.f32 %v2145, %v3549
    %3551 = vmatmul.mubr.f32.gmra.mrb[0].mxu0 %v3550
    %v3552 = vpop.f32.mrb[0].mxu0
    %v3553 = vadd.f32 %v3174, %v3552
    %v3554 = vpop.f32.mrb[0].mxu0
    %v3555 = vand.u32 %v2228, 4294901760
    %v3556 = vsub.f32 %v2228, %v3555
    %3557 = vmatprep.mubr.f32.mxu0 %v3556
    %v3558 = vand.u32 %v2147, 4294901760
    %v3559 = vsub.f32 %v2147, %v3558
    %3560 = vmatmul.mubr.f32.gmra.mrb[0].mxu0 %v3559
    %v3561 = vpop.f32.mrb[0].mxu0
    %v3562 = vadd.f32 %v3181, %v3561
    %v3563 = vpop.f32.mrb[0].mxu0
    %v3564 = vand.u32 %v2231, 4294901760
    %v3565 = vsub.f32 %v2231, %v3564
    %3566 = vmatprep.mubr.f32.mxu0 %v3565
    %v3567 = vand.u32 %v2149, 4294901760
    %v3568 = vsub.f32 %v2149, %v3567
    %3569 = vmatmul.mubr.f32.gmra.mrb[0].mxu0 %v3568
    %v3570 = vpop.f32.mrb[0].mxu0
    %v3571 = vadd.f32 %v3188, %v3570
    %v3572 = vpop.f32.mrb[0].mxu0
    %v3573 = vand.u32 %v2234, 4294901760
    %v3574 = vsub.f32 %v2234, %v3573
    %3575 = vmatprep.mubr.f32.mxu0 %v3574
    %v3576 = vand.u32 %v2151, 4294901760
    %v3577 = vsub.f32 %v2151, %v3576
    %3578 = vmatmul.mubr.f32.gmra.mrb[0].mxu0 %v3577
    %v3579 = vpop.f32.mrb[0].mxu0
    %v3580 = vadd.f32 %v3195, %v3579
    %v3581 = vpop.f32.mrb[0].mxu0
    %v3582 = vand.u32 %v2237, 4294901760
    %v3583 = vsub.f32 %v2237, %v3582
    %3584 = vmatprep.mubr.f32.mxu0 %v3583
    %v3585 = vand.u32 %v2153, 4294901760
    %v3586 = vsub.f32 %v2153, %v3585
    %3587 = vmatmul.mubr.f32.gmra.mrb[0].mxu0 %v3586
    %v3588 = vpop.f32.mrb[0].mxu0
    %v3589 = vadd.f32 %v3202, %v3588
    %v3590 = vpop.f32.mrb[0].mxu0
    %v3591 = vand.u32 %v2240, 4294901760
    %v3592 = vsub.f32 %v2240, %v3591
    %3593 = vmatprep.mubr.f32.mxu0 %v3592
    %v3594 = vand.u32 %v2155, 4294901760
    %v3595 = vsub.f32 %v2155, %v3594
    %3596 = vmatmul.mubr.f32.gmra.mrb[0].mxu0 %v3595
    %v3597 = vpop.f32.mrb[0].mxu0
    %v3598 = vadd.f32 %v3209, %v3597
    %v3599 = vpop.f32.mrb[0].mxu0
    %v3600 = vand.u32 %v2243, 4294901760
    %v3601 = vsub.f32 %v2243, %v3600
    %3602 = vmatprep.mubr.f32.mxu0 %v3601
    %v3603 = vand.u32 %v2157, 4294901760
    %v3604 = vsub.f32 %v2157, %v3603
    %3605 = vmatmul.mubr.f32.gmra.mrb[0].mxu0 %v3604
    %v3606 = vpop.f32.mrb[0].mxu0
    %v3607 = vadd.f32 %v3216, %v3606
    %v3608 = vpop.f32.mrb[0].mxu0
    %v3609 = vand.u32 %v2246, 4294901760
    %v3610 = vsub.f32 %v2246, %v3609
    %3611 = vmatprep.mubr.f32.mxu0 %v3610
    %v3612 = vand.u32 %v2159, 4294901760
    %v3613 = vsub.f32 %v2159, %v3612
    %3614 = vmatmul.mubr.f32.gmra.mrb[0].mxu0 %v3613
    %v3615 = vpop.f32.mrb[0].mxu0
    %v3616 = vadd.f32 %v3223, %v3615
    %v3617 = vpop.f32.mrb[0].mxu0
    %v3618 = vand.u32 %v2249, 4294901760
    %v3619 = vsub.f32 %v2249, %v3618
    %3620 = vmatprep.mubr.f32.mxu0 %v3619
    %v3621 = vand.u32 %v2161, 4294901760
    %v3622 = vsub.f32 %v2161, %v3621
    %3623 = vmatmul.mubr.f32.gmra.mrb[0].mxu0 %v3622
    %v3624 = vpop.f32.mrb[0].mxu0
    %v3625 = vadd.f32 %v3230, %v3624
    %v3626 = vpop.f32.mrb[0].mxu0
    %v3627 = vand.u32 %v2252, 4294901760
    %v3628 = vsub.f32 %v2252, %v3627
    %3629 = vmatprep.mubr.f32.mxu0 %v3628
    %v3630 = vand.u32 %v2163, 4294901760
    %v3631 = vsub.f32 %v2163, %v3630
    %3632 = vmatmul.mubr.f32.gmra.mrb[0].mxu0 %v3631
    %v3633 = vpop.f32.mrb[0].mxu0
    %v3634 = vadd.f32 %v3237, %v3633
    %v3635 = vpop.f32.mrb[0].mxu0
    %v3636 = vand.u32 %v2255, 4294901760
    %v3637 = vsub.f32 %v2255, %v3636
    %3638 = vmatprep.mubr.f32.mxu0 %v3637
    %v3639 = vand.u32 %v2165, 4294901760
    %v3640 = vsub.f32 %v2165, %v3639
    %3641 = vmatmul.mubr.f32.gmra.mrb[0].mxu0 %v3640
    %v3642 = vpop.f32.mrb[0].mxu0
    %v3643 = vadd.f32 %v3244, %v3642
    %v3644 = vpop.f32.mrb[0].mxu0
    %v3645 = vand.u32 %v2258, 4294901760
    %v3646 = vsub.f32 %v2258, %v3645
    %3647 = vmatprep.mubr.f32.mxu0 %v3646
    %v3648 = vand.u32 %v2167, 4294901760
    %v3649 = vsub.f32 %v2167, %v3648
    %3650 = vmatmul.mubr.f32.gmra.mrb[0].mxu0 %v3649
    %v3651 = vpop.f32.mrb[0].mxu0
    %v3652 = vadd.f32 %v3251, %v3651
    %v3653 = vpop.f32.mrb[0].mxu0
    %v3654 = vand.u32 %v2261, 4294901760
    %v3655 = vsub.f32 %v2261, %v3654
    %3656 = vmatprep.mubr.f32.mxu0 %v3655
    %v3657 = vand.u32 %v2169, 4294901760
    %v3658 = vsub.f32 %v2169, %v3657
    %3659 = vmatmul.mubr.f32.gmra.mrb[0].mxu0 %v3658
    %v3660 = vpop.f32.mrb[0].mxu0
    %v3661 = vadd.f32 %v3258, %v3660
    %v3662 = vpop.f32.mrb[0].mxu0
    %v3663 = vand.u32 %v2264, 4294901760
    %v3664 = vsub.f32 %v2264, %v3663
    %3665 = vmatprep.mubr.f32.mxu0 %v3664
    %v3666 = vand.u32 %v2171, 4294901760
    %v3667 = vsub.f32 %v2171, %v3666
    %3668 = vmatmul.mubr.f32.gmra.mrb[0].mxu0 %v3667
    %v3669 = vpop.f32.mrb[0].mxu0
    %v3670 = vadd.f32 %v3265, %v3669
    %v3671 = vpop.f32.mrb[0].mxu0
    %v3672 = vand.u32 %v2267, 4294901760
    %v3673 = vsub.f32 %v2267, %v3672
    %3674 = vmatprep.mubr.f32.mxu0 %v3673
    %v3675 = vand.u32 %v2173, 4294901760
    %v3676 = vsub.f32 %v2173, %v3675
    %3677 = vmatmul.mubr.f32.gmra.mrb[0].mxu0 %v3676
    %v3678 = vpop.f32.mrb[0].mxu0
    %v3679 = vadd.f32 %v3272, %v3678
    %v3680 = vpop.f32.mrb[0].mxu0
    %v3681 = vand.u32 %v2270, 4294901760
    %v3682 = vsub.f32 %v2270, %v3681
    %3683 = vmatprep.mubr.f32.mxu0 %v3682
    %v3684 = vand.u32 %v2175, 4294901760
    %v3685 = vsub.f32 %v2175, %v3684
    %3686 = vmatmul.mubr.f32.gmra.mrb[0].mxu0 %v3685
    %v3687 = vpop.f32.mrb[0].mxu0
    %v3688 = vadd.f32 %v3279, %v3687
    %v3689 = vpop.f32.mrb[0].mxu0
    %v3690 = vand.u32 %v2273, 4294901760
    %v3691 = vsub.f32 %v2273, %v3690
    %3692 = vmatprep.mubr.f32.mxu0 %v3691
    %v3693 = vand.u32 %v2177, 4294901760
    %v3694 = vsub.f32 %v2177, %v3693
    %3695 = vmatmul.mubr.f32.gmra.mrb[0].mxu0 %v3694
    %v3696 = vpop.f32.mrb[0].mxu0
    %v3697 = vadd.f32 %v3286, %v3696
    %v3698 = vpop.f32.mrb[0].mxu0
    %v3699 = vand.u32 %v2276, 4294901760
    %v3700 = vsub.f32 %v2276, %v3699
    %3701 = vmatprep.mubr.f32.mxu0 %v3700
    %v3702 = vand.u32 %v2179, 4294901760
    %v3703 = vsub.f32 %v2179, %v3702
    %3704 = vmatmul.mubr.f32.gmra.mrb[0].mxu0 %v3703
    %v3705 = vpop.f32.mrb[0].mxu0
    %v3706 = vadd.f32 %v3293, %v3705
    %v3707 = vpop.f32.mrb[0].mxu0
    %v3708 = vand.u32 %v2279, 4294901760
    %v3709 = vsub.f32 %v2279, %v3708
    %3710 = vmatprep.mubr.f32.mxu0 %v3709
    %v3711 = vand.u32 %v2181, 4294901760
    %v3712 = vsub.f32 %v2181, %v3711
    %3713 = vmatmul.mubr.f32.gmra.mrb[0].mxu0 %v3712
    %v3714 = vpop.f32.mrb[0].mxu0
    %v3715 = vadd.f32 %v3300, %v3714
    %v3716 = vpop.f32.mrb[0].mxu0
    %v3717 = vand.u32 %v2282, 4294901760
    %v3718 = vsub.f32 %v2282, %v3717
    %3719 = vmatprep.mubr.f32.mxu0 %v3718
    %v3720 = vand.u32 %v2183, 4294901760
    %v3721 = vsub.f32 %v2183, %v3720
    %3722 = vmatmul.mubr.f32.gmra.mrb[0].mxu0 %v3721
    %v3723 = vpop.f32.mrb[0].mxu0
    %v3724 = vadd.f32 %v3307, %v3723
    %v3725 = vpop.f32.mrb[0].mxu0
    %v3726 = vand.u32 %v2285, 4294901760
    %v3727 = vsub.f32 %v2285, %v3726
    %3728 = vmatprep.mubr.f32.mxu0 %v3727
    %v3729 = vand.u32 %v2185, 4294901760
    %v3730 = vsub.f32 %v2185, %v3729
    %3731 = vmatmul.mubr.f32.gmra.mrb[0].mxu0 %v3730
    %v3732 = vpop.f32.mrb[0].mxu0
    %v3733 = vadd.f32 %v3314, %v3732
    %v3734 = vpop.f32.mrb[0].mxu0
    %v3735 = vand.u32 %v2288, 4294901760
    %v3736 = vsub.f32 %v2288, %v3735
    %3737 = vmatprep.mubr.f32.mxu0 %v3736
    %v3738 = vand.u32 %v2187, 4294901760
    %v3739 = vsub.f32 %v2187, %v3738
    %3740 = vmatmul.mubr.f32.gmra.mrb[0].mxu0 %v3739
    %v3741 = vpop.f32.mrb[0].mxu0
    %v3742 = vadd.f32 %v3321, %v3741
    %v3743 = vpop.f32.mrb[0].mxu0
    %v3744 = vand.u32 %v2291, 4294901760
    %v3745 = vsub.f32 %v2291, %v3744
    %3746 = vmatprep.mubr.f32.mxu0 %v3745
    %v3747 = vand.u32 %v2189, 4294901760
    %v3748 = vsub.f32 %v2189, %v3747
    %3749 = vmatmul.mubr.f32.gmra.mrb[0].mxu0 %v3748
    %v3750 = vpop.f32.mrb[0].mxu0
    %v3751 = vadd.f32 %v3328, %v3750
    %v3752 = vpop.f32.mrb[0].mxu0
    %v3753 = vand.u32 %v2294, 4294901760
    %v3754 = vsub.f32 %v2294, %v3753
    %3755 = vmatprep.mubr.f32.mxu0 %v3754
    %v3756 = vand.u32 %v2191, 4294901760
    %v3757 = vsub.f32 %v2191, %v3756
    %3758 = vmatmul.mubr.f32.gmra.mrb[0].mxu0 %v3757
    %v3759 = vpop.f32.mrb[0].mxu0
    %v3760 = vadd.f32 %v3335, %v3759
    %v3761 = vpop.f32.mrb[0].mxu0
    %v3762 = vand.u32 %v2297, 4294901760
    %v3763 = vsub.f32 %v2297, %v3762
    %3764 = vmatprep.mubr.f32.mxu0 %v3763
    %v3765 = vand.u32 %v2193, 4294901760
    %v3766 = vsub.f32 %v2193, %v3765
    %3767 = vmatmul.mubr.f32.gmra.mrb[0].mxu0 %v3766
    %v3768 = vpop.f32.mrb[0].mxu0
    %v3769 = vadd.f32 %v3342, %v3768
    %v3770 = vpop.f32.mrb[0].mxu0
    %v3771 = vand.u32 %v2300, 4294901760
    %v3772 = vsub.f32 %v2300, %v3771
    %3773 = vmatprep.mubr.f32.mxu0 %v3772
    %v3774 = vand.u32 %v2195, 4294901760
    %v3775 = vsub.f32 %v2195, %v3774
    %3776 = vmatmul.mubr.f32.gmra.mrb[0].mxu0 %v3775
    %v3777 = vpop.f32.mrb[0].mxu0
    %v3778 = vadd.f32 %v3349, %v3777
    %v3779 = vpop.f32.mrb[0].mxu0
    %v3780 = vand.u32 %v2303, 4294901760
    %v3781 = vsub.f32 %v2303, %v3780
    %3782 = vmatprep.mubr.f32.mxu0 %v3781
    %v3783 = vand.u32 %v2197, 4294901760
    %v3784 = vsub.f32 %v2197, %v3783
    %3785 = vmatmul.mubr.f32.gmra.mrb[0].mxu0 %v3784
    %v3786 = vpop.f32.mrb[0].mxu0
    %v3787 = vadd.f32 %v3356, %v3786
    %v3788 = vpop.f32.mrb[0].mxu0
    %v3789 = vand.u32 %v2306, 4294901760
    %v3790 = vsub.f32 %v2306, %v3789
    %3791 = vmatprep.mubr.f32.mxu0 %v3790
    %v3792 = vand.u32 %v2199, 4294901760
    %v3793 = vsub.f32 %v2199, %v3792
    %3794 = vmatmul.mubr.f32.gmra.mrb[0].mxu0 %v3793
    %v3795 = vpop.f32.mrb[0].mxu0
    %v3796 = vadd.f32 %v3363, %v3795
    %v3797 = vpop.f32.mrb[0].mxu0
    %v3798 = vand.u32 %v2309, 4294901760
    %v3799 = vsub.f32 %v2309, %v3798
    %3800 = vmatprep.mubr.f32.mxu0 %v3799
    %v3801 = vand.u32 %v2201, 4294901760
    %v3802 = vsub.f32 %v2201, %v3801
    %3803 = vmatmul.mubr.f32.gmra.mrb[0].mxu0 %v3802
    %v3804 = vpop.f32.mrb[0].mxu0
    %v3805 = vadd.f32 %v3370, %v3804
    %v3806 = vpop.f32.mrb[0].mxu0
    %v3807 = vand.u32 %v2312, 4294901760
    %v3808 = vsub.f32 %v2312, %v3807
    %3809 = vmatprep.mubr.f32.mxu0 %v3808
    %v3810 = vand.u32 %v2203, 4294901760
    %v3811 = vsub.f32 %v2203, %v3810
    %3812 = vmatmul.mubr.f32.gmra.mrb[0].mxu0 %v3811
    %v3813 = vpop.f32.mrb[0].mxu0
    %v3814 = vadd.f32 %v3377, %v3813
    %v3815 = vpop.f32.mrb[0].mxu0
    %3816 = vdwg.mxu0
    %3817 = vmatprep.subr.mxu0 0.0
    %v3818 = vand.u32 %v1992, 4294901760
    %3819 = vmatpush1.msra.mxu0 %v3818
    %3820 = vmatprep.subr.mxu0 0.0
    %v3821 = vand.u32 %v1998, 4294901760
    %3822 = vmatpush1.msra.mxu0 %v3821
    %3823 = vmatprep.subr.mxu0 0.0
    %v3824 = vand.u32 %v2004, 4294901760
    %3825 = vmatpush1.msra.mxu0 %v3824
    %3826 = vmatprep.subr.mxu0 0.0
    %v3827 = vand.u32 %v2010, 4294901760
    %3828 = vmatpush1.msra.mxu0 %v3827
    %3829 = vmatprep.subr.mxu0 0.0
    %v3830 = vand.u32 %v2016, 4294901760
    %3831 = vmatpush1.msra.mxu0 %v3830
    %3832 = vmatprep.subr.mxu0 0.0
    %v3833 = vand.u32 %v2022, 4294901760
    %3834 = vmatpush1.msra.mxu0 %v3833
    %3835 = vmatprep.subr.mxu0 0.0
    %v3836 = vand.u32 %v2028, 4294901760
    %3837 = vmatpush1.msra.mxu0 %v3836
    %3838 = vmatprep.subr.mxu0 0.0
    %v3839 = vand.u32 %v2034, 4294901760
    %3840 = vmatpush1.msra.mxu0 %v3839
    %3841 = vmatprep.subr.mxu0 0.0
    %v3842 = vand.u32 %v2040, 4294901760
    %3843 = vmatpush1.msra.mxu0 %v3842
    %3844 = vmatprep.subr.mxu0 0.0
    %v3845 = vand.u32 %v2046, 4294901760
    %3846 = vmatpush1.msra.mxu0 %v3845
    %3847 = vmatprep.subr.mxu0 0.0
    %v3848 = vand.u32 %v2052, 4294901760
    %3849 = vmatpush1.msra.mxu0 %v3848
    %3850 = vmatprep.subr.mxu0 0.0
    %v3851 = vand.u32 %v2058, 4294901760
    %3852 = vmatpush1.msra.mxu0 %v3851
    %3853 = vmatprep.subr.mxu0 0.0
    %v3854 = vand.u32 %v2064, 4294901760
    %3855 = vmatpush1.msra.mxu0 %v3854
    %3856 = vmatprep.subr.mxu0 0.0
    %v3857 = vand.u32 %v2070, 4294901760
    %3858 = vmatpush1.msra.mxu0 %v3857
    %3859 = vmatprep.subr.mxu0 0.0
    %v3860 = vand.u32 %v2076, 4294901760
    %3861 = vmatpush1.msra.mxu0 %v3860
    %3862 = vmatprep.subr.mxu0 0.0
    %v3863 = vand.u32 %v2082, 4294901760
    %3864 = vmatpush1.msra.mxu0 %v3863
    %3865 = vmatprep.subr.mxu0 0.0
    %v3866 = vand.u32 %v2088, 4294901760
    %3867 = vmatpush1.msra.mxu0 %v3866
    %3868 = vmatprep.subr.mxu0 0.0
    %v3869 = vand.u32 %v2094, 4294901760
    %3870 = vmatpush1.msra.mxu0 %v3869
    %3871 = vmatprep.subr.mxu0 0.0
    %v3872 = vand.u32 %v2100, 4294901760
    %3873 = vmatpush1.msra.mxu0 %v3872
    %3874 = vmatprep.subr.mxu0 0.0
    %v3875 = vand.u32 %v2106, 4294901760
    %3876 = vmatpush1.msra.mxu0 %v3875
    %3877 = vmatprep.subr.mxu0 0.0
    %v3878 = vand.u32 %v2112, 4294901760
    %3879 = vmatpush1.msra.mxu0 %v3878
    %3880 = vmatprep.subr.mxu0 0.0
    %v3881 = vand.u32 %v2118, 4294901760
    %3882 = vmatpush1.msra.mxu0 %v3881
    %3883 = vmatprep.subr.mxu0 0.0
    %v3884 = vand.u32 %v2124, 4294901760
    %3885 = vmatpush1.msra.mxu0 %v3884
    %3886 = vmatprep.subr.mxu0 0.0
    %v3887 = vand.u32 %v2130, 4294901760
    %3888 = vmatpush1.msra.mxu0 %v3887
    %3889 = vmatprep.subr.mxu0 0.0
    %3890 = vmatpush1.msra.mxu0 0.0
    %3891 = vmatprep.subr.mxu0 0.0
    %3892 = vmatpush1.msra.mxu0 0.0
    %3893 = vmatprep.subr.mxu0 0.0
    %3894 = vmatpush1.msra.mxu0 0.0
    %3895 = vmatprep.subr.mxu0 0.0
    %3896 = vmatpush1.msra.mxu0 0.0
    %3897 = vmatprep.subr.mxu0 0.0
    %3898 = vmatpush1.msra.mxu0 0.0
    %3899 = vmatprep.subr.mxu0 0.0
    %3900 = vmatpush1.msra.mxu0 0.0
    %3901 = vmatprep.subr.mxu0 0.0
    %3902 = vmatpush1.msra.mxu0 0.0
    %3903 = vmatprep.subr.mxu0 0.0
    %3904 = vmatpush1.msra.mxu0 0.0
    %v3905 = vand.u32 %v2207, 4294901760
    %v3906 = vsub.f32 %v2207, %v3905
    %v3907 = vand.u32 %v3906, 4294901760
    %3908 = vmatprep.mubr.f32.mxu0 %v3907
    %v3909 = vand.u32 %v2133, 4294901760
    %v3910 = vsub.f32 %v2133, %v3909
    %v3911 = vand.u32 %v3910, 4294901760
    %3912 = vmatmul.mubr.f32.gmra.mrb[0].mxu0 %v3911
    %v3913 = vpop.f32.mrb[0].mxu0
    %v3914 = vadd.f32 %v3499, %v3913
    %v3915 = vpop.f32.mrb[0].mxu0
    %v3916 = vand.u32 %v2210, 4294901760
    %v3917 = vsub.f32 %v2210, %v3916
    %v3918 = vand.u32 %v3917, 4294901760
    %3919 = vmatprep.mubr.f32.mxu0 %v3918
    %v3920 = vand.u32 %v2135, 4294901760
    %v3921 = vsub.f32 %v2135, %v3920
    %v3922 = vand.u32 %v3921, 4294901760
    %3923 = vmatmul.mubr.f32.gmra.mrb[0].mxu0 %v3922
    %v3924 = vpop.f32.mrb[0].mxu0
    %v3925 = vadd.f32 %v3508, %v3924
    %v3926 = vpop.f32.mrb[0].mxu0
    %v3927 = vand.u32 %v2213, 4294901760
    %v3928 = vsub.f32 %v2213, %v3927
    %v3929 = vand.u32 %v3928, 4294901760
    %3930 = vmatprep.mubr.f32.mxu0 %v3929
    %v3931 = vand.u32 %v2137, 4294901760
    %v3932 = vsub.f32 %v2137, %v3931
    %v3933 = vand.u32 %v3932, 4294901760
    %3934 = vmatmul.mubr.f32.gmra.mrb[0].mxu0 %v3933
    %v3935 = vpop.f32.mrb[0].mxu0
    %v3936 = vadd.f32 %v3517, %v3935
    %v3937 = vpop.f32.mrb[0].mxu0
    %v3938 = vand.u32 %v2216, 4294901760
    %v3939 = vsub.f32 %v2216, %v3938
    %v3940 = vand.u32 %v3939, 4294901760
    %3941 = vmatprep.mubr.f32.mxu0 %v3940
    %v3942 = vand.u32 %v2139, 4294901760
    %v3943 = vsub.f32 %v2139, %v3942
    %v3944 = vand.u32 %v3943, 4294901760
    %3945 = vmatmul.mubr.f32.gmra.mrb[0].mxu0 %v3944
    %v3946 = vpop.f32.mrb[0].mxu0
    %v3947 = vadd.f32 %v3526, %v3946
    %v3948 = vpop.f32.mrb[0].mxu0
    %v3949 = vand.u32 %v2219, 4294901760
    %v3950 = vsub.f32 %v2219, %v3949
    %v3951 = vand.u32 %v3950, 4294901760
    %3952 = vmatprep.mubr.f32.mxu0 %v3951
    %v3953 = vand.u32 %v2141, 4294901760
    %v3954 = vsub.f32 %v2141, %v3953
    %v3955 = vand.u32 %v3954, 4294901760
    %3956 = vmatmul.mubr.f32.gmra.mrb[0].mxu0 %v3955
    %v3957 = vpop.f32.mrb[0].mxu0
    %v3958 = vadd.f32 %v3535, %v3957
    %v3959 = vpop.f32.mrb[0].mxu0
    %v3960 = vand.u32 %v2222, 4294901760
    %v3961 = vsub.f32 %v2222, %v3960
    %v3962 = vand.u32 %v3961, 4294901760
    %3963 = vmatprep.mubr.f32.mxu0 %v3962
    %v3964 = vand.u32 %v2143, 4294901760
    %v3965 = vsub.f32 %v2143, %v3964
    %v3966 = vand.u32 %v3965, 4294901760
    %3967 = vmatmul.mubr.f32.gmra.mrb[0].mxu0 %v3966
    %v3968 = vpop.f32.mrb[0].mxu0
    %v3969 = vadd.f32 %v3544, %v3968
    %v3970 = vpop.f32.mrb[0].mxu0
    %v3971 = vand.u32 %v2225, 4294901760
    %v3972 = vsub.f32 %v2225, %v3971
    %v3973 = vand.u32 %v3972, 4294901760
    %3974 = vmatprep.mubr.f32.mxu0 %v3973
    %v3975 = vand.u32 %v2145, 4294901760
    %v3976 = vsub.f32 %v2145, %v3975
    %v3977 = vand.u32 %v3976, 4294901760
    %3978 = vmatmul.mubr.f32.gmra.mrb[0].mxu0 %v3977
    %v3979 = vpop.f32.mrb[0].mxu0
    %v3980 = vadd.f32 %v3553, %v3979
    %v3981 = vpop.f32.mrb[0].mxu0
    %v3982 = vand.u32 %v2228, 4294901760
    %v3983 = vsub.f32 %v2228, %v3982
    %v3984 = vand.u32 %v3983, 4294901760
    %3985 = vmatprep.mubr.f32.mxu0 %v3984
    %v3986 = vand.u32 %v2147, 4294901760
    %v3987 = vsub.f32 %v2147, %v3986
    %v3988 = vand.u32 %v3987, 4294901760
    %3989 = vmatmul.mubr.f32.gmra.mrb[0].mxu0 %v3988
    %v3990 = vpop.f32.mrb[0].mxu0
    %v3991 = vadd.f32 %v3562, %v3990
    %v3992 = vpop.f32.mrb[0].mxu0
    %v3993 = vand.u32 %v2231, 4294901760
    %v3994 = vsub.f32 %v2231, %v3993
    %v3995 = vand.u32 %v3994, 4294901760
    %3996 = vmatprep.mubr.f32.mxu0 %v3995
    %v3997 = vand.u32 %v2149, 4294901760
    %v3998 = vsub.f32 %v2149, %v3997
    %v3999 = vand.u32 %v3998, 4294901760
    %4000 = vmatmul.mubr.f32.gmra.mrb[0].mxu0 %v3999
    %v4001 = vpop.f32.mrb[0].mxu0
    %v4002 = vadd.f32 %v3571, %v4001
    %v4003 = vpop.f32.mrb[0].mxu0
    %v4004 = vand.u32 %v2234, 4294901760
    %v4005 = vsub.f32 %v2234, %v4004
    %v4006 = vand.u32 %v4005, 4294901760
    %4007 = vmatprep.mubr.f32.mxu0 %v4006
    %v4008 = vand.u32 %v2151, 4294901760
    %v4009 = vsub.f32 %v2151, %v4008
    %v4010 = vand.u32 %v4009, 4294901760
    %4011 = vmatmul.mubr.f32.gmra.mrb[0].mxu0 %v4010
    %v4012 = vpop.f32.mrb[0].mxu0
    %v4013 = vadd.f32 %v3580, %v4012
    %v4014 = vpop.f32.mrb[0].mxu0
    %v4015 = vand.u32 %v2237, 4294901760
    %v4016 = vsub.f32 %v2237, %v4015
    %v4017 = vand.u32 %v4016, 4294901760
    %4018 = vmatprep.mubr.f32.mxu0 %v4017
    %v4019 = vand.u32 %v2153, 4294901760
    %v4020 = vsub.f32 %v2153, %v4019
    %v4021 = vand.u32 %v4020, 4294901760
    %4022 = vmatmul.mubr.f32.gmra.mrb[0].mxu0 %v4021
    %v4023 = vpop.f32.mrb[0].mxu0
    %v4024 = vadd.f32 %v3589, %v4023
    %v4025 = vpop.f32.mrb[0].mxu0
    %v4026 = vand.u32 %v2240, 4294901760
    %v4027 = vsub.f32 %v2240, %v4026
    %v4028 = vand.u32 %v4027, 4294901760
    %4029 = vmatprep.mubr.f32.mxu0 %v4028
    %v4030 = vand.u32 %v2155, 4294901760
    %v4031 = vsub.f32 %v2155, %v4030
    %v4032 = vand.u32 %v4031, 4294901760
    %4033 = vmatmul.mubr.f32.gmra.mrb[0].mxu0 %v4032
    %v4034 = vpop.f32.mrb[0].mxu0
    %v4035 = vadd.f32 %v3598, %v4034
    %v4036 = vpop.f32.mrb[0].mxu0
    %v4037 = vand.u32 %v2243, 4294901760
    %v4038 = vsub.f32 %v2243, %v4037
    %v4039 = vand.u32 %v4038, 4294901760
    %4040 = vmatprep.mubr.f32.mxu0 %v4039
    %v4041 = vand.u32 %v2157, 4294901760
    %v4042 = vsub.f32 %v2157, %v4041
    %v4043 = vand.u32 %v4042, 4294901760
    %4044 = vmatmul.mubr.f32.gmra.mrb[0].mxu0 %v4043
    %v4045 = vpop.f32.mrb[0].mxu0
    %v4046 = vadd.f32 %v3607, %v4045
    %v4047 = vpop.f32.mrb[0].mxu0
    %v4048 = vand.u32 %v2246, 4294901760
    %v4049 = vsub.f32 %v2246, %v4048
    %v4050 = vand.u32 %v4049, 4294901760
    %4051 = vmatprep.mubr.f32.mxu0 %v4050
    %v4052 = vand.u32 %v2159, 4294901760
    %v4053 = vsub.f32 %v2159, %v4052
    %v4054 = vand.u32 %v4053, 4294901760
    %4055 = vmatmul.mubr.f32.gmra.mrb[0].mxu0 %v4054
    %v4056 = vpop.f32.mrb[0].mxu0
    %v4057 = vadd.f32 %v3616, %v4056
    %v4058 = vpop.f32.mrb[0].mxu0
    %v4059 = vand.u32 %v2249, 4294901760
    %v4060 = vsub.f32 %v2249, %v4059
    %v4061 = vand.u32 %v4060, 4294901760
    %4062 = vmatprep.mubr.f32.mxu0 %v4061
    %v4063 = vand.u32 %v2161, 4294901760
    %v4064 = vsub.f32 %v2161, %v4063
    %v4065 = vand.u32 %v4064, 4294901760
    %4066 = vmatmul.mubr.f32.gmra.mrb[0].mxu0 %v4065
    %v4067 = vpop.f32.mrb[0].mxu0
    %v4068 = vadd.f32 %v3625, %v4067
    %v4069 = vpop.f32.mrb[0].mxu0
    %v4070 = vand.u32 %v2252, 4294901760
    %v4071 = vsub.f32 %v2252, %v4070
    %v4072 = vand.u32 %v4071, 4294901760
    %4073 = vmatprep.mubr.f32.mxu0 %v4072
    %v4074 = vand.u32 %v2163, 4294901760
    %v4075 = vsub.f32 %v2163, %v4074
    %v4076 = vand.u32 %v4075, 4294901760
    %4077 = vmatmul.mubr.f32.gmra.mrb[0].mxu0 %v4076
    %v4078 = vpop.f32.mrb[0].mxu0
    %v4079 = vadd.f32 %v3634, %v4078
    %v4080 = vpop.f32.mrb[0].mxu0
    %v4081 = vand.u32 %v2255, 4294901760
    %v4082 = vsub.f32 %v2255, %v4081
    %v4083 = vand.u32 %v4082, 4294901760
    %4084 = vmatprep.mubr.f32.mxu0 %v4083
    %v4085 = vand.u32 %v2165, 4294901760
    %v4086 = vsub.f32 %v2165, %v4085
    %v4087 = vand.u32 %v4086, 4294901760
    %4088 = vmatmul.mubr.f32.gmra.mrb[0].mxu0 %v4087
    %v4089 = vpop.f32.mrb[0].mxu0
    %v4090 = vadd.f32 %v3643, %v4089
    %v4091 = vpop.f32.mrb[0].mxu0
    %v4092 = vand.u32 %v2258, 4294901760
    %v4093 = vsub.f32 %v2258, %v4092
    %v4094 = vand.u32 %v4093, 4294901760
    %4095 = vmatprep.mubr.f32.mxu0 %v4094
    %v4096 = vand.u32 %v2167, 4294901760
    %v4097 = vsub.f32 %v2167, %v4096
    %v4098 = vand.u32 %v4097, 4294901760
    %4099 = vmatmul.mubr.f32.gmra.mrb[0].mxu0 %v4098
    %v4100 = vpop.f32.mrb[0].mxu0
    %v4101 = vadd.f32 %v3652, %v4100
    %v4102 = vpop.f32.mrb[0].mxu0
    %v4103 = vand.u32 %v2261, 4294901760
    %v4104 = vsub.f32 %v2261, %v4103
    %v4105 = vand.u32 %v4104, 4294901760
    %4106 = vmatprep.mubr.f32.mxu0 %v4105
    %v4107 = vand.u32 %v2169, 4294901760
    %v4108 = vsub.f32 %v2169, %v4107
    %v4109 = vand.u32 %v4108, 4294901760
    %4110 = vmatmul.mubr.f32.gmra.mrb[0].mxu0 %v4109
    %v4111 = vpop.f32.mrb[0].mxu0
    %v4112 = vadd.f32 %v3661, %v4111
    %v4113 = vpop.f32.mrb[0].mxu0
    %v4114 = vand.u32 %v2264, 4294901760
    %v4115 = vsub.f32 %v2264, %v4114
    %v4116 = vand.u32 %v4115, 4294901760
    %4117 = vmatprep.mubr.f32.mxu0 %v4116
    %v4118 = vand.u32 %v2171, 4294901760
    %v4119 = vsub.f32 %v2171, %v4118
    %v4120 = vand.u32 %v4119, 4294901760
    %4121 = vmatmul.mubr.f32.gmra.mrb[0].mxu0 %v4120
    %v4122 = vpop.f32.mrb[0].mxu0
    %v4123 = vadd.f32 %v3670, %v4122
    %v4124 = vpop.f32.mrb[0].mxu0
    %v4125 = vand.u32 %v2267, 4294901760
    %v4126 = vsub.f32 %v2267, %v4125
    %v4127 = vand.u32 %v4126, 4294901760
    %4128 = vmatprep.mubr.f32.mxu0 %v4127
    %v4129 = vand.u32 %v2173, 4294901760
    %v4130 = vsub.f32 %v2173, %v4129
    %v4131 = vand.u32 %v4130, 4294901760
    %4132 = vmatmul.mubr.f32.gmra.mrb[0].mxu0 %v4131
    %v4133 = vpop.f32.mrb[0].mxu0
    %v4134 = vadd.f32 %v3679, %v4133
    %v4135 = vpop.f32.mrb[0].mxu0
    %v4136 = vand.u32 %v2270, 4294901760
    %v4137 = vsub.f32 %v2270, %v4136
    %v4138 = vand.u32 %v4137, 4294901760
    %4139 = vmatprep.mubr.f32.mxu0 %v4138
    %v4140 = vand.u32 %v2175, 4294901760
    %v4141 = vsub.f32 %v2175, %v4140
    %v4142 = vand.u32 %v4141, 4294901760
    %4143 = vmatmul.mubr.f32.gmra.mrb[0].mxu0 %v4142
    %v4144 = vpop.f32.mrb[0].mxu0
    %v4145 = vadd.f32 %v3688, %v4144
    %v4146 = vpop.f32.mrb[0].mxu0
    %v4147 = vand.u32 %v2273, 4294901760
    %v4148 = vsub.f32 %v2273, %v4147
    %v4149 = vand.u32 %v4148, 4294901760
    %4150 = vmatprep.mubr.f32.mxu0 %v4149
    %v4151 = vand.u32 %v2177, 4294901760
    %v4152 = vsub.f32 %v2177, %v4151
    %v4153 = vand.u32 %v4152, 4294901760
    %4154 = vmatmul.mubr.f32.gmra.mrb[0].mxu0 %v4153
    %v4155 = vpop.f32.mrb[0].mxu0
    %v4156 = vadd.f32 %v3697, %v4155
    %v4157 = vpop.f32.mrb[0].mxu0
    %v4158 = vand.u32 %v2276, 4294901760
    %v4159 = vsub.f32 %v2276, %v4158
    %v4160 = vand.u32 %v4159, 4294901760
    %4161 = vmatprep.mubr.f32.mxu0 %v4160
    %v4162 = vand.u32 %v2179, 4294901760
    %v4163 = vsub.f32 %v2179, %v4162
    %v4164 = vand.u32 %v4163, 4294901760
    %4165 = vmatmul.mubr.f32.gmra.mrb[0].mxu0 %v4164
    %v4166 = vpop.f32.mrb[0].mxu0
    %v4167 = vadd.f32 %v3706, %v4166
    %v4168 = vpop.f32.mrb[0].mxu0
    %v4169 = vand.u32 %v2279, 4294901760
    %v4170 = vsub.f32 %v2279, %v4169
    %v4171 = vand.u32 %v4170, 4294901760
    %4172 = vmatprep.mubr.f32.mxu0 %v4171
    %v4173 = vand.u32 %v2181, 4294901760
    %v4174 = vsub.f32 %v2181, %v4173
    %v4175 = vand.u32 %v4174, 4294901760
    %4176 = vmatmul.mubr.f32.gmra.mrb[0].mxu0 %v4175
    %v4177 = vpop.f32.mrb[0].mxu0
    %v4178 = vadd.f32 %v3715, %v4177
    %v4179 = vpop.f32.mrb[0].mxu0
    %v4180 = vand.u32 %v2282, 4294901760
    %v4181 = vsub.f32 %v2282, %v4180
    %v4182 = vand.u32 %v4181, 4294901760
    %4183 = vmatprep.mubr.f32.mxu0 %v4182
    %v4184 = vand.u32 %v2183, 4294901760
    %v4185 = vsub.f32 %v2183, %v4184
    %v4186 = vand.u32 %v4185, 4294901760
    %4187 = vmatmul.mubr.f32.gmra.mrb[0].mxu0 %v4186
    %v4188 = vpop.f32.mrb[0].mxu0
    %v4189 = vadd.f32 %v3724, %v4188
    %v4190 = vpop.f32.mrb[0].mxu0
    %v4191 = vand.u32 %v2285, 4294901760
    %v4192 = vsub.f32 %v2285, %v4191
    %v4193 = vand.u32 %v4192, 4294901760
    %4194 = vmatprep.mubr.f32.mxu0 %v4193
    %v4195 = vand.u32 %v2185, 4294901760
    %v4196 = vsub.f32 %v2185, %v4195
    %v4197 = vand.u32 %v4196, 4294901760
    %4198 = vmatmul.mubr.f32.gmra.mrb[0].mxu0 %v4197
    %v4199 = vpop.f32.mrb[0].mxu0
    %v4200 = vadd.f32 %v3733, %v4199
    %v4201 = vpop.f32.mrb[0].mxu0
    %v4202 = vand.u32 %v2288, 4294901760
    %v4203 = vsub.f32 %v2288, %v4202
    %v4204 = vand.u32 %v4203, 4294901760
    %4205 = vmatprep.mubr.f32.mxu0 %v4204
    %v4206 = vand.u32 %v2187, 4294901760
    %v4207 = vsub.f32 %v2187, %v4206
    %v4208 = vand.u32 %v4207, 4294901760
    %4209 = vmatmul.mubr.f32.gmra.mrb[0].mxu0 %v4208
    %v4210 = vpop.f32.mrb[0].mxu0
    %v4211 = vadd.f32 %v3742, %v4210
    %v4212 = vpop.f32.mrb[0].mxu0
    %v4213 = vand.u32 %v2291, 4294901760
    %v4214 = vsub.f32 %v2291, %v4213
    %v4215 = vand.u32 %v4214, 4294901760
    %4216 = vmatprep.mubr.f32.mxu0 %v4215
    %v4217 = vand.u32 %v2189, 4294901760
    %v4218 = vsub.f32 %v2189, %v4217
    %v4219 = vand.u32 %v4218, 4294901760
    %4220 = vmatmul.mubr.f32.gmra.mrb[0].mxu0 %v4219
    %v4221 = vpop.f32.mrb[0].mxu0
    %v4222 = vadd.f32 %v3751, %v4221
    %v4223 = vpop.f32.mrb[0].mxu0
    %v4224 = vand.u32 %v2294, 4294901760
    %v4225 = vsub.f32 %v2294, %v4224
    %v4226 = vand.u32 %v4225, 4294901760
    %4227 = vmatprep.mubr.f32.mxu0 %v4226
    %v4228 = vand.u32 %v2191, 4294901760
    %v4229 = vsub.f32 %v2191, %v4228
    %v4230 = vand.u32 %v4229, 4294901760
    %4231 = vmatmul.mubr.f32.gmra.mrb[0].mxu0 %v4230
    %v4232 = vpop.f32.mrb[0].mxu0
    %v4233 = vadd.f32 %v3760, %v4232
    %v4234 = vpop.f32.mrb[0].mxu0
    %v4235 = vand.u32 %v2297, 4294901760
    %v4236 = vsub.f32 %v2297, %v4235
    %v4237 = vand.u32 %v4236, 4294901760
    %4238 = vmatprep.mubr.f32.mxu0 %v4237
    %v4239 = vand.u32 %v2193, 4294901760
    %v4240 = vsub.f32 %v2193, %v4239
    %v4241 = vand.u32 %v4240, 4294901760
    %4242 = vmatmul.mubr.f32.gmra.mrb[0].mxu0 %v4241
    %v4243 = vpop.f32.mrb[0].mxu0
    %v4244 = vadd.f32 %v3769, %v4243
    %v4245 = vpop.f32.mrb[0].mxu0
    %v4246 = vand.u32 %v2300, 4294901760
    %v4247 = vsub.f32 %v2300, %v4246
    %v4248 = vand.u32 %v4247, 4294901760
    %4249 = vmatprep.mubr.f32.mxu0 %v4248
    %v4250 = vand.u32 %v2195, 4294901760
    %v4251 = vsub.f32 %v2195, %v4250
    %v4252 = vand.u32 %v4251, 4294901760
    %4253 = vmatmul.mubr.f32.gmra.mrb[0].mxu0 %v4252
    %v4254 = vpop.f32.mrb[0].mxu0
    %v4255 = vadd.f32 %v3778, %v4254
    %v4256 = vpop.f32.mrb[0].mxu0
    %v4257 = vand.u32 %v2303, 4294901760
    %v4258 = vsub.f32 %v2303, %v4257
    %v4259 = vand.u32 %v4258, 4294901760
    %4260 = vmatprep.mubr.f32.mxu0 %v4259
    %v4261 = vand.u32 %v2197, 4294901760
    %v4262 = vsub.f32 %v2197, %v4261
    %v4263 = vand.u32 %v4262, 4294901760
    %4264 = vmatmul.mubr.f32.gmra.mrb[0].mxu0 %v4263
    %v4265 = vpop.f32.mrb[0].mxu0
    %v4266 = vadd.f32 %v3787, %v4265
    %v4267 = vpop.f32.mrb[0].mxu0
    %v4268 = vand.u32 %v2306, 4294901760
    %v4269 = vsub.f32 %v2306, %v4268
    %v4270 = vand.u32 %v4269, 4294901760
    %4271 = vmatprep.mubr.f32.mxu0 %v4270
    %v4272 = vand.u32 %v2199, 4294901760
    %v4273 = vsub.f32 %v2199, %v4272
    %v4274 = vand.u32 %v4273, 4294901760
    %4275 = vmatmul.mubr.f32.gmra.mrb[0].mxu0 %v4274
    %v4276 = vpop.f32.mrb[0].mxu0
    %v4277 = vadd.f32 %v3796, %v4276
    %v4278 = vpop.f32.mrb[0].mxu0
    %v4279 = vand.u32 %v2309, 4294901760
    %v4280 = vsub.f32 %v2309, %v4279
    %v4281 = vand.u32 %v4280, 4294901760
    %4282 = vmatprep.mubr.f32.mxu0 %v4281
    %v4283 = vand.u32 %v2201, 4294901760
    %v4284 = vsub.f32 %v2201, %v4283
    %v4285 = vand.u32 %v4284, 4294901760
    %4286 = vmatmul.mubr.f32.gmra.mrb[0].mxu0 %v4285
    %v4287 = vpop.f32.mrb[0].mxu0
    %v4288 = vadd.f32 %v3805, %v4287
    %v4289 = vpop.f32.mrb[0].mxu0
    %v4290 = vand.u32 %v2312, 4294901760
    %v4291 = vsub.f32 %v2312, %v4290
    %v4292 = vand.u32 %v4291, 4294901760
    %4293 = vmatprep.mubr.f32.mxu0 %v4292
    %v4294 = vand.u32 %v2203, 4294901760
    %v4295 = vsub.f32 %v2203, %v4294
    %v4296 = vand.u32 %v4295, 4294901760
    %4297 = vmatmul.mubr.f32.gmra.mrb[0].mxu0 %v4296
    %v4298 = vpop.f32.mrb[0].mxu0
    %v4299 = vadd.f32 %v3814, %v4298
    %v4300 = vpop.f32.mrb[0].mxu0
    %4301 = vdwg.mxu0
    %4302 = vmatprep.subr.mxu0 0.0
    %v4303 = vand.u32 %v1992, 4294901760
    %v4304 = vsub.f32 %v1992, %v4303
    %v4305 = vand.u32 %v4304, 4294901760
    %4306 = vmatpush1.msra.mxu0 %v4305
    %4307 = vmatprep.subr.mxu0 0.0
    %v4308 = vand.u32 %v1998, 4294901760
    %v4309 = vsub.f32 %v1998, %v4308
    %v4310 = vand.u32 %v4309, 4294901760
    %4311 = vmatpush1.msra.mxu0 %v4310
    %4312 = vmatprep.subr.mxu0 0.0
    %v4313 = vand.u32 %v2004, 4294901760
    %v4314 = vsub.f32 %v2004, %v4313
    %v4315 = vand.u32 %v4314, 4294901760
    %4316 = vmatpush1.msra.mxu0 %v4315
    %4317 = vmatprep.subr.mxu0 0.0
    %v4318 = vand.u32 %v2010, 4294901760
    %v4319 = vsub.f32 %v2010, %v4318
    %v4320 = vand.u32 %v4319, 4294901760
    %4321 = vmatpush1.msra.mxu0 %v4320
    %4322 = vmatprep.subr.mxu0 0.0
    %v4323 = vand.u32 %v2016, 4294901760
    %v4324 = vsub.f32 %v2016, %v4323
    %v4325 = vand.u32 %v4324, 4294901760
    %4326 = vmatpush1.msra.mxu0 %v4325
    %4327 = vmatprep.subr.mxu0 0.0
    %v4328 = vand.u32 %v2022, 4294901760
    %v4329 = vsub.f32 %v2022, %v4328
    %v4330 = vand.u32 %v4329, 4294901760
    %4331 = vmatpush1.msra.mxu0 %v4330
    %4332 = vmatprep.subr.mxu0 0.0
    %v4333 = vand.u32 %v2028, 4294901760
    %v4334 = vsub.f32 %v2028, %v4333
    %v4335 = vand.u32 %v4334, 4294901760
    %4336 = vmatpush1.msra.mxu0 %v4335
    %4337 = vmatprep.subr.mxu0 0.0
    %v4338 = vand.u32 %v2034, 4294901760
    %v4339 = vsub.f32 %v2034, %v4338
    %v4340 = vand.u32 %v4339, 4294901760
    %4341 = vmatpush1.msra.mxu0 %v4340
    %4342 = vmatprep.subr.mxu0 0.0
    %v4343 = vand.u32 %v2040, 4294901760
    %v4344 = vsub.f32 %v2040, %v4343
    %v4345 = vand.u32 %v4344, 4294901760
    %4346 = vmatpush1.msra.mxu0 %v4345
    %4347 = vmatprep.subr.mxu0 0.0
    %v4348 = vand.u32 %v2046, 4294901760
    %v4349 = vsub.f32 %v2046, %v4348
    %v4350 = vand.u32 %v4349, 4294901760
    %4351 = vmatpush1.msra.mxu0 %v4350
    %4352 = vmatprep.subr.mxu0 0.0
    %v4353 = vand.u32 %v2052, 4294901760
    %v4354 = vsub.f32 %v2052, %v4353
    %v4355 = vand.u32 %v4354, 4294901760
    %4356 = vmatpush1.msra.mxu0 %v4355
    %4357 = vmatprep.subr.mxu0 0.0
    %v4358 = vand.u32 %v2058, 4294901760
    %v4359 = vsub.f32 %v2058, %v4358
    %v4360 = vand.u32 %v4359, 4294901760
    %4361 = vmatpush1.msra.mxu0 %v4360
    %4362 = vmatprep.subr.mxu0 0.0
    %v4363 = vand.u32 %v2064, 4294901760
    %v4364 = vsub.f32 %v2064, %v4363
    %v4365 = vand.u32 %v4364, 4294901760
    %4366 = vmatpush1.msra.mxu0 %v4365
    %4367 = vmatprep.subr.mxu0 0.0
    %v4368 = vand.u32 %v2070, 4294901760
    %v4369 = vsub.f32 %v2070, %v4368
    %v4370 = vand.u32 %v4369, 4294901760
    %4371 = vmatpush1.msra.mxu0 %v4370
    %4372 = vmatprep.subr.mxu0 0.0
    %v4373 = vand.u32 %v2076, 4294901760
    %v4374 = vsub.f32 %v2076, %v4373
    %v4375 = vand.u32 %v4374, 4294901760
    %4376 = vmatpush1.msra.mxu0 %v4375
    %4377 = vmatprep.subr.mxu0 0.0
    %v4378 = vand.u32 %v2082, 4294901760
    %v4379 = vsub.f32 %v2082, %v4378
    %v4380 = vand.u32 %v4379, 4294901760
    %4381 = vmatpush1.msra.mxu0 %v4380
    %4382 = vmatprep.subr.mxu0 0.0
    %v4383 = vand.u32 %v2088, 4294901760
    %v4384 = vsub.f32 %v2088, %v4383
    %v4385 = vand.u32 %v4384, 4294901760
    %4386 = vmatpush1.msra.mxu0 %v4385
    %4387 = vmatprep.subr.mxu0 0.0
    %v4388 = vand.u32 %v2094, 4294901760
    %v4389 = vsub.f32 %v2094, %v4388
    %v4390 = vand.u32 %v4389, 4294901760
    %4391 = vmatpush1.msra.mxu0 %v4390
    %4392 = vmatprep.subr.mxu0 0.0
    %v4393 = vand.u32 %v2100, 4294901760
    %v4394 = vsub.f32 %v2100, %v4393
    %v4395 = vand.u32 %v4394, 4294901760
    %4396 = vmatpush1.msra.mxu0 %v4395
    %4397 = vmatprep.subr.mxu0 0.0
    %v4398 = vand.u32 %v2106, 4294901760
    %v4399 = vsub.f32 %v2106, %v4398
    %v4400 = vand.u32 %v4399, 4294901760
    %4401 = vmatpush1.msra.mxu0 %v4400
    %4402 = vmatprep.subr.mxu0 0.0
    %v4403 = vand.u32 %v2112, 4294901760
    %v4404 = vsub.f32 %v2112, %v4403
    %v4405 = vand.u32 %v4404, 4294901760
    %4406 = vmatpush1.msra.mxu0 %v4405
    %4407 = vmatprep.subr.mxu0 0.0
    %v4408 = vand.u32 %v2118, 4294901760
    %v4409 = vsub.f32 %v2118, %v4408
    %v4410 = vand.u32 %v4409, 4294901760
    %4411 = vmatpush1.msra.mxu0 %v4410
    %4412 = vmatprep.subr.mxu0 0.0
    %v4413 = vand.u32 %v2124, 4294901760
    %v4414 = vsub.f32 %v2124, %v4413
    %v4415 = vand.u32 %v4414, 4294901760
    %4416 = vmatpush1.msra.mxu0 %v4415
    %4417 = vmatprep.subr.mxu0 0.0
    %v4418 = vand.u32 %v2130, 4294901760
    %v4419 = vsub.f32 %v2130, %v4418
    %v4420 = vand.u32 %v4419, 4294901760
    %4421 = vmatpush1.msra.mxu0 %v4420
    %4422 = vmatprep.subr.mxu0 0.0
    %4423 = vmatpush1.msra.mxu0 0.0
    %4424 = vmatprep.subr.mxu0 0.0
    %4425 = vmatpush1.msra.mxu0 0.0
    %4426 = vmatprep.subr.mxu0 0.0
    %4427 = vmatpush1.msra.mxu0 0.0
    %4428 = vmatprep.subr.mxu0 0.0
    %4429 = vmatpush1.msra.mxu0 0.0
    %4430 = vmatprep.subr.mxu0 0.0
    %4431 = vmatpush1.msra.mxu0 0.0
    %4432 = vmatprep.subr.mxu0 0.0
    %4433 = vmatpush1.msra.mxu0 0.0
    %4434 = vmatprep.subr.mxu0 0.0
    %4435 = vmatpush1.msra.mxu0 0.0
    %4436 = vmatprep.subr.mxu0 0.0
    %4437 = vmatpush1.msra.mxu0 0.0
    %v4438 = vand.u32 %v2207, 4294901760
    %4439 = vmatprep.mubr.f32.mxu0 %v4438
    %v4440 = vand.u32 %v2133, 4294901760
    %4441 = vmatmul.mubr.f32.gmra.mrb[0].mxu0 %v4440
    %v4442 = vpop.f32.mrb[0].mxu0
    %v4443 = vadd.f32 %v3914, %v4442
    %v4444 = vpop.f32.mrb[0].mxu0
    %v4445 = vand.u32 %v2210, 4294901760
    %4446 = vmatprep.mubr.f32.mxu0 %v4445
    %v4447 = vand.u32 %v2135, 4294901760
    %4448 = vmatmul.mubr.f32.gmra.mrb[0].mxu0 %v4447
    %v4449 = vpop.f32.mrb[0].mxu0
    %v4450 = vadd.f32 %v3925, %v4449
    %v4451 = vpop.f32.mrb[0].mxu0
    %v4452 = vand.u32 %v2213, 4294901760
    %4453 = vmatprep.mubr.f32.mxu0 %v4452
    %v4454 = vand.u32 %v2137, 4294901760
    %4455 = vmatmul.mubr.f32.gmra.mrb[0].mxu0 %v4454
    %v4456 = vpop.f32.mrb[0].mxu0
    %v4457 = vadd.f32 %v3936, %v4456
    %v4458 = vpop.f32.mrb[0].mxu0
    %v4459 = vand.u32 %v2216, 4294901760
    %4460 = vmatprep.mubr.f32.mxu0 %v4459
    %v4461 = vand.u32 %v2139, 4294901760
    %4462 = vmatmul.mubr.f32.gmra.mrb[0].mxu0 %v4461
    %v4463 = vpop.f32.mrb[0].mxu0
    %v4464 = vadd.f32 %v3947, %v4463
    %v4465 = vpop.f32.mrb[0].mxu0
    %v4466 = vand.u32 %v2219, 4294901760
    %4467 = vmatprep.mubr.f32.mxu0 %v4466
    %v4468 = vand.u32 %v2141, 4294901760
    %4469 = vmatmul.mubr.f32.gmra.mrb[0].mxu0 %v4468
    %v4470 = vpop.f32.mrb[0].mxu0
    %v4471 = vadd.f32 %v3958, %v4470
    %v4472 = vpop.f32.mrb[0].mxu0
    %v4473 = vand.u32 %v2222, 4294901760
    %4474 = vmatprep.mubr.f32.mxu0 %v4473
    %v4475 = vand.u32 %v2143, 4294901760
    %4476 = vmatmul.mubr.f32.gmra.mrb[0].mxu0 %v4475
    %v4477 = vpop.f32.mrb[0].mxu0
    %v4478 = vadd.f32 %v3969, %v4477
    %v4479 = vpop.f32.mrb[0].mxu0
    %v4480 = vand.u32 %v2225, 4294901760
    %4481 = vmatprep.mubr.f32.mxu0 %v4480
    %v4482 = vand.u32 %v2145, 4294901760
    %4483 = vmatmul.mubr.f32.gmra.mrb[0].mxu0 %v4482
    %v4484 = vpop.f32.mrb[0].mxu0
    %v4485 = vadd.f32 %v3980, %v4484
    %v4486 = vpop.f32.mrb[0].mxu0
    %v4487 = vand.u32 %v2228, 4294901760
    %4488 = vmatprep.mubr.f32.mxu0 %v4487
    %v4489 = vand.u32 %v2147, 4294901760
    %4490 = vmatmul.mubr.f32.gmra.mrb[0].mxu0 %v4489
    %v4491 = vpop.f32.mrb[0].mxu0
    %v4492 = vadd.f32 %v3991, %v4491
    %v4493 = vpop.f32.mrb[0].mxu0
    %v4494 = vand.u32 %v2231, 4294901760
    %4495 = vmatprep.mubr.f32.mxu0 %v4494
    %v4496 = vand.u32 %v2149, 4294901760
    %4497 = vmatmul.mubr.f32.gmra.mrb[0].mxu0 %v4496
    %v4498 = vpop.f32.mrb[0].mxu0
    %v4499 = vadd.f32 %v4002, %v4498
    %v4500 = vpop.f32.mrb[0].mxu0
    %v4501 = vand.u32 %v2234, 4294901760
    %4502 = vmatprep.mubr.f32.mxu0 %v4501
    %v4503 = vand.u32 %v2151, 4294901760
    %4504 = vmatmul.mubr.f32.gmra.mrb[0].mxu0 %v4503
    %v4505 = vpop.f32.mrb[0].mxu0
    %v4506 = vadd.f32 %v4013, %v4505
    %v4507 = vpop.f32.mrb[0].mxu0
    %v4508 = vand.u32 %v2237, 4294901760
    %4509 = vmatprep.mubr.f32.mxu0 %v4508
    %v4510 = vand.u32 %v2153, 4294901760
    %4511 = vmatmul.mubr.f32.gmra.mrb[0].mxu0 %v4510
    %v4512 = vpop.f32.mrb[0].mxu0
    %v4513 = vadd.f32 %v4024, %v4512
    %v4514 = vpop.f32.mrb[0].mxu0
    %v4515 = vand.u32 %v2240, 4294901760
    %4516 = vmatprep.mubr.f32.mxu0 %v4515
    %v4517 = vand.u32 %v2155, 4294901760
    %4518 = vmatmul.mubr.f32.gmra.mrb[0].mxu0 %v4517
    %v4519 = vpop.f32.mrb[0].mxu0
    %v4520 = vadd.f32 %v4035, %v4519
    %v4521 = vpop.f32.mrb[0].mxu0
    %v4522 = vand.u32 %v2243, 4294901760
    %4523 = vmatprep.mubr.f32.mxu0 %v4522
    %v4524 = vand.u32 %v2157, 4294901760
    %4525 = vmatmul.mubr.f32.gmra.mrb[0].mxu0 %v4524
    %v4526 = vpop.f32.mrb[0].mxu0
    %v4527 = vadd.f32 %v4046, %v4526
    %v4528 = vpop.f32.mrb[0].mxu0
    %v4529 = vand.u32 %v2246, 4294901760
    %4530 = vmatprep.mubr.f32.mxu0 %v4529
    %v4531 = vand.u32 %v2159, 4294901760
    %4532 = vmatmul.mubr.f32.gmra.mrb[0].mxu0 %v4531
    %v4533 = vpop.f32.mrb[0].mxu0
    %v4534 = vadd.f32 %v4057, %v4533
    %v4535 = vpop.f32.mrb[0].mxu0
    %v4536 = vand.u32 %v2249, 4294901760
    %4537 = vmatprep.mubr.f32.mxu0 %v4536
    %v4538 = vand.u32 %v2161, 4294901760
    %4539 = vmatmul.mubr.f32.gmra.mrb[0].mxu0 %v4538
    %v4540 = vpop.f32.mrb[0].mxu0
    %v4541 = vadd.f32 %v4068, %v4540
    %v4542 = vpop.f32.mrb[0].mxu0
    %v4543 = vand.u32 %v2252, 4294901760
    %4544 = vmatprep.mubr.f32.mxu0 %v4543
    %v4545 = vand.u32 %v2163, 4294901760
    %4546 = vmatmul.mubr.f32.gmra.mrb[0].mxu0 %v4545
    %v4547 = vpop.f32.mrb[0].mxu0
    %v4548 = vadd.f32 %v4079, %v4547
    %v4549 = vpop.f32.mrb[0].mxu0
    %v4550 = vand.u32 %v2255, 4294901760
    %4551 = vmatprep.mubr.f32.mxu0 %v4550
    %v4552 = vand.u32 %v2165, 4294901760
    %4553 = vmatmul.mubr.f32.gmra.mrb[0].mxu0 %v4552
    %v4554 = vpop.f32.mrb[0].mxu0
    %v4555 = vadd.f32 %v4090, %v4554
    %v4556 = vpop.f32.mrb[0].mxu0
    %v4557 = vand.u32 %v2258, 4294901760
    %4558 = vmatprep.mubr.f32.mxu0 %v4557
    %v4559 = vand.u32 %v2167, 4294901760
    %4560 = vmatmul.mubr.f32.gmra.mrb[0].mxu0 %v4559
    %v4561 = vpop.f32.mrb[0].mxu0
    %v4562 = vadd.f32 %v4101, %v4561
    %v4563 = vpop.f32.mrb[0].mxu0
    %v4564 = vand.u32 %v2261, 4294901760
    %4565 = vmatprep.mubr.f32.mxu0 %v4564
    %v4566 = vand.u32 %v2169, 4294901760
    %4567 = vmatmul.mubr.f32.gmra.mrb[0].mxu0 %v4566
    %v4568 = vpop.f32.mrb[0].mxu0
    %v4569 = vadd.f32 %v4112, %v4568
    %v4570 = vpop.f32.mrb[0].mxu0
    %v4571 = vand.u32 %v2264, 4294901760
    %4572 = vmatprep.mubr.f32.mxu0 %v4571
    %v4573 = vand.u32 %v2171, 4294901760
    %4574 = vmatmul.mubr.f32.gmra.mrb[0].mxu0 %v4573
    %v4575 = vpop.f32.mrb[0].mxu0
    %v4576 = vadd.f32 %v4123, %v4575
    %v4577 = vpop.f32.mrb[0].mxu0
    %v4578 = vand.u32 %v2267, 4294901760
    %4579 = vmatprep.mubr.f32.mxu0 %v4578
    %v4580 = vand.u32 %v2173, 4294901760
    %4581 = vmatmul.mubr.f32.gmra.mrb[0].mxu0 %v4580
    %v4582 = vpop.f32.mrb[0].mxu0
    %v4583 = vadd.f32 %v4134, %v4582
    %v4584 = vpop.f32.mrb[0].mxu0
    %v4585 = vand.u32 %v2270, 4294901760
    %4586 = vmatprep.mubr.f32.mxu0 %v4585
    %v4587 = vand.u32 %v2175, 4294901760
    %4588 = vmatmul.mubr.f32.gmra.mrb[0].mxu0 %v4587
    %v4589 = vpop.f32.mrb[0].mxu0
    %v4590 = vadd.f32 %v4145, %v4589
    %v4591 = vpop.f32.mrb[0].mxu0
    %v4592 = vand.u32 %v2273, 4294901760
    %4593 = vmatprep.mubr.f32.mxu0 %v4592
    %v4594 = vand.u32 %v2177, 4294901760
    %4595 = vmatmul.mubr.f32.gmra.mrb[0].mxu0 %v4594
    %v4596 = vpop.f32.mrb[0].mxu0
    %v4597 = vadd.f32 %v4156, %v4596
    %v4598 = vpop.f32.mrb[0].mxu0
    %v4599 = vand.u32 %v2276, 4294901760
    %4600 = vmatprep.mubr.f32.mxu0 %v4599
    %v4601 = vand.u32 %v2179, 4294901760
    %4602 = vmatmul.mubr.f32.gmra.mrb[0].mxu0 %v4601
    %v4603 = vpop.f32.mrb[0].mxu0
    %v4604 = vadd.f32 %v4167, %v4603
    %v4605 = vpop.f32.mrb[0].mxu0
    %v4606 = vand.u32 %v2279, 4294901760
    %4607 = vmatprep.mubr.f32.mxu0 %v4606
    %v4608 = vand.u32 %v2181, 4294901760
    %4609 = vmatmul.mubr.f32.gmra.mrb[0].mxu0 %v4608
    %v4610 = vpop.f32.mrb[0].mxu0
    %v4611 = vadd.f32 %v4178, %v4610
    %v4612 = vpop.f32.mrb[0].mxu0
    %v4613 = vand.u32 %v2282, 4294901760
    %4614 = vmatprep.mubr.f32.mxu0 %v4613
    %v4615 = vand.u32 %v2183, 4294901760
    %4616 = vmatmul.mubr.f32.gmra.mrb[0].mxu0 %v4615
    %v4617 = vpop.f32.mrb[0].mxu0
    %v4618 = vadd.f32 %v4189, %v4617
    %v4619 = vpop.f32.mrb[0].mxu0
    %v4620 = vand.u32 %v2285, 4294901760
    %4621 = vmatprep.mubr.f32.mxu0 %v4620
    %v4622 = vand.u32 %v2185, 4294901760
    %4623 = vmatmul.mubr.f32.gmra.mrb[0].mxu0 %v4622
    %v4624 = vpop.f32.mrb[0].mxu0
    %v4625 = vadd.f32 %v4200, %v4624
    %v4626 = vpop.f32.mrb[0].mxu0
    %v4627 = vand.u32 %v2288, 4294901760
    %4628 = vmatprep.mubr.f32.mxu0 %v4627
    %v4629 = vand.u32 %v2187, 4294901760
    %4630 = vmatmul.mubr.f32.gmra.mrb[0].mxu0 %v4629
    %v4631 = vpop.f32.mrb[0].mxu0
    %v4632 = vadd.f32 %v4211, %v4631
    %v4633 = vpop.f32.mrb[0].mxu0
    %v4634 = vand.u32 %v2291, 4294901760
    %4635 = vmatprep.mubr.f32.mxu0 %v4634
    %v4636 = vand.u32 %v2189, 4294901760
    %4637 = vmatmul.mubr.f32.gmra.mrb[0].mxu0 %v4636
    %v4638 = vpop.f32.mrb[0].mxu0
    %v4639 = vadd.f32 %v4222, %v4638
    %v4640 = vpop.f32.mrb[0].mxu0
    %v4641 = vand.u32 %v2294, 4294901760
    %4642 = vmatprep.mubr.f32.mxu0 %v4641
    %v4643 = vand.u32 %v2191, 4294901760
    %4644 = vmatmul.mubr.f32.gmra.mrb[0].mxu0 %v4643
    %v4645 = vpop.f32.mrb[0].mxu0
    %v4646 = vadd.f32 %v4233, %v4645
    %v4647 = vpop.f32.mrb[0].mxu0
    %v4648 = vand.u32 %v2297, 4294901760
    %4649 = vmatprep.mubr.f32.mxu0 %v4648
    %v4650 = vand.u32 %v2193, 4294901760
    %4651 = vmatmul.mubr.f32.gmra.mrb[0].mxu0 %v4650
    %v4652 = vpop.f32.mrb[0].mxu0
    %v4653 = vadd.f32 %v4244, %v4652
    %v4654 = vpop.f32.mrb[0].mxu0
    %v4655 = vand.u32 %v2300, 4294901760
    %4656 = vmatprep.mubr.f32.mxu0 %v4655
    %v4657 = vand.u32 %v2195, 4294901760
    %4658 = vmatmul.mubr.f32.gmra.mrb[0].mxu0 %v4657
    %v4659 = vpop.f32.mrb[0].mxu0
    %v4660 = vadd.f32 %v4255, %v4659
    %v4661 = vpop.f32.mrb[0].mxu0
    %v4662 = vand.u32 %v2303, 4294901760
    %4663 = vmatprep.mubr.f32.mxu0 %v4662
    %v4664 = vand.u32 %v2197, 4294901760
    %4665 = vmatmul.mubr.f32.gmra.mrb[0].mxu0 %v4664
    %v4666 = vpop.f32.mrb[0].mxu0
    %v4667 = vadd.f32 %v4266, %v4666
    %v4668 = vpop.f32.mrb[0].mxu0
    %v4669 = vand.u32 %v2306, 4294901760
    %4670 = vmatprep.mubr.f32.mxu0 %v4669
    %v4671 = vand.u32 %v2199, 4294901760
    %4672 = vmatmul.mubr.f32.gmra.mrb[0].mxu0 %v4671
    %v4673 = vpop.f32.mrb[0].mxu0
    %v4674 = vadd.f32 %v4277, %v4673
    %v4675 = vpop.f32.mrb[0].mxu0
    %v4676 = vand.u32 %v2309, 4294901760
    %4677 = vmatprep.mubr.f32.mxu0 %v4676
    %v4678 = vand.u32 %v2201, 4294901760
    %4679 = vmatmul.mubr.f32.gmra.mrb[0].mxu0 %v4678
    %v4680 = vpop.f32.mrb[0].mxu0
    %v4681 = vadd.f32 %v4288, %v4680
    %v4682 = vpop.f32.mrb[0].mxu0
    %v4683 = vand.u32 %v2312, 4294901760
    %4684 = vmatprep.mubr.f32.mxu0 %v4683
    %v4685 = vand.u32 %v2203, 4294901760
    %4686 = vmatmul.mubr.f32.gmra.mrb[0].mxu0 %v4685
    %v4687 = vpop.f32.mrb[0].mxu0
    %v4688 = vadd.f32 %v4299, %v4687
    %v4689 = vpop.f32.mrb[0].mxu0
    %4690 = vdwg.mxu0
    %4691 = vmatprep.subr.mxu0 0.0
    %v4692 = vand.u32 %v1992, 4294901760
    %4693 = vmatpush1.msra.mxu0 %v4692
    %4694 = vmatprep.subr.mxu0 0.0
    %v4695 = vand.u32 %v1998, 4294901760
    %4696 = vmatpush1.msra.mxu0 %v4695
    %4697 = vmatprep.subr.mxu0 0.0
    %v4698 = vand.u32 %v2004, 4294901760
    %4699 = vmatpush1.msra.mxu0 %v4698
    %4700 = vmatprep.subr.mxu0 0.0
    %v4701 = vand.u32 %v2010, 4294901760
    %4702 = vmatpush1.msra.mxu0 %v4701
    %4703 = vmatprep.subr.mxu0 0.0
    %v4704 = vand.u32 %v2016, 4294901760
    %4705 = vmatpush1.msra.mxu0 %v4704
    %4706 = vmatprep.subr.mxu0 0.0
    %v4707 = vand.u32 %v2022, 4294901760
    %4708 = vmatpush1.msra.mxu0 %v4707
    %4709 = vmatprep.subr.mxu0 0.0
    %v4710 = vand.u32 %v2028, 4294901760
    %4711 = vmatpush1.msra.mxu0 %v4710
    %4712 = vmatprep.subr.mxu0 0.0
    %v4713 = vand.u32 %v2034, 4294901760
    %4714 = vmatpush1.msra.mxu0 %v4713
    %4715 = vmatprep.subr.mxu0 0.0
    %v4716 = vand.u32 %v2040, 4294901760
    %4717 = vmatpush1.msra.mxu0 %v4716
    %4718 = vmatprep.subr.mxu0 0.0
    %v4719 = vand.u32 %v2046, 4294901760
    %4720 = vmatpush1.msra.mxu0 %v4719
    %4721 = vmatprep.subr.mxu0 0.0
    %v4722 = vand.u32 %v2052, 4294901760
    %4723 = vmatpush1.msra.mxu0 %v4722
    %4724 = vmatprep.subr.mxu0 0.0
    %v4725 = vand.u32 %v2058, 4294901760
    %4726 = vmatpush1.msra.mxu0 %v4725
    %4727 = vmatprep.subr.mxu0 0.0
    %v4728 = vand.u32 %v2064, 4294901760
    %4729 = vmatpush1.msra.mxu0 %v4728
    %4730 = vmatprep.subr.mxu0 0.0
    %v4731 = vand.u32 %v2070, 4294901760
    %4732 = vmatpush1.msra.mxu0 %v4731
    %4733 = vmatprep.subr.mxu0 0.0
    %v4734 = vand.u32 %v2076, 4294901760
    %4735 = vmatpush1.msra.mxu0 %v4734
    %4736 = vmatprep.subr.mxu0 0.0
    %v4737 = vand.u32 %v2082, 4294901760
    %4738 = vmatpush1.msra.mxu0 %v4737
    %4739 = vmatprep.subr.mxu0 0.0
    %v4740 = vand.u32 %v2088, 4294901760
    %4741 = vmatpush1.msra.mxu0 %v4740
    %4742 = vmatprep.subr.mxu0 0.0
    %v4743 = vand.u32 %v2094, 4294901760
    %4744 = vmatpush1.msra.mxu0 %v4743
    %4745 = vmatprep.subr.mxu0 0.0
    %v4746 = vand.u32 %v2100, 4294901760
    %4747 = vmatpush1.msra.mxu0 %v4746
    %4748 = vmatprep.subr.mxu0 0.0
    %v4749 = vand.u32 %v2106, 4294901760
    %4750 = vmatpush1.msra.mxu0 %v4749
    %4751 = vmatprep.subr.mxu0 0.0
    %v4752 = vand.u32 %v2112, 4294901760
    %4753 = vmatpush1.msra.mxu0 %v4752
    %4754 = vmatprep.subr.mxu0 0.0
    %v4755 = vand.u32 %v2118, 4294901760
    %4756 = vmatpush1.msra.mxu0 %v4755
    %4757 = vmatprep.subr.mxu0 0.0
    %v4758 = vand.u32 %v2124, 4294901760
    %4759 = vmatpush1.msra.mxu0 %v4758
    %4760 = vmatprep.subr.mxu0 0.0
    %v4761 = vand.u32 %v2130, 4294901760
    %4762 = vmatpush1.msra.mxu0 %v4761
    %4763 = vmatprep.subr.mxu0 0.0
    %4764 = vmatpush1.msra.mxu0 0.0
    %4765 = vmatprep.subr.mxu0 0.0
    %4766 = vmatpush1.msra.mxu0 0.0
    %4767 = vmatprep.subr.mxu0 0.0
    %4768 = vmatpush1.msra.mxu0 0.0
    %4769 = vmatprep.subr.mxu0 0.0
    %4770 = vmatpush1.msra.mxu0 0.0
    %4771 = vmatprep.subr.mxu0 0.0
    %4772 = vmatpush1.msra.mxu0 0.0
    %4773 = vmatprep.subr.mxu0 0.0
    %4774 = vmatpush1.msra.mxu0 0.0
    %4775 = vmatprep.subr.mxu0 0.0
    %4776 = vmatpush1.msra.mxu0 0.0
    %4777 = vmatprep.subr.mxu0 0.0
    %4778 = vmatpush1.msra.mxu0 0.0
    %v4779 = vand.u32 %v2207, 4294901760
    %4780 = vmatprep.mubr.f32.mxu0 %v4779
    %v4781 = vand.u32 %v2133, 4294901760
    %4782 = vmatmul.mubr.f32.gmra.mrb[0].mxu0 %v4781
    %v4783 = vpop.f32.mrb[0].mxu0
    %v4784 = vadd.f32 %v4443, %v4783
    %v4785 = vpop.f32.mrb[0].mxu0
    %v4786 = vand.u32 %v2210, 4294901760
    %4787 = vmatprep.mubr.f32.mxu0 %v4786
    %v4788 = vand.u32 %v2135, 4294901760
    %4789 = vmatmul.mubr.f32.gmra.mrb[0].mxu0 %v4788
    %v4790 = vpop.f32.mrb[0].mxu0
    %v4791 = vadd.f32 %v4450, %v4790
    %v4792 = vpop.f32.mrb[0].mxu0
    %v4793 = vand.u32 %v2213, 4294901760
    %4794 = vmatprep.mubr.f32.mxu0 %v4793
    %v4795 = vand.u32 %v2137, 4294901760
    %4796 = vmatmul.mubr.f32.gmra.mrb[0].mxu0 %v4795
    %v4797 = vpop.f32.mrb[0].mxu0
    %v4798 = vadd.f32 %v4457, %v4797
    %v4799 = vpop.f32.mrb[0].mxu0
    %v4800 = vand.u32 %v2216, 4294901760
    %4801 = vmatprep.mubr.f32.mxu0 %v4800
    %v4802 = vand.u32 %v2139, 4294901760
    %4803 = vmatmul.mubr.f32.gmra.mrb[0].mxu0 %v4802
    %v4804 = vpop.f32.mrb[0].mxu0
    %v4805 = vadd.f32 %v4464, %v4804
    %v4806 = vpop.f32.mrb[0].mxu0
    %v4807 = vand.u32 %v2219, 4294901760
    %4808 = vmatprep.mubr.f32.mxu0 %v4807
    %v4809 = vand.u32 %v2141, 4294901760
    %4810 = vmatmul.mubr.f32.gmra.mrb[0].mxu0 %v4809
    %v4811 = vpop.f32.mrb[0].mxu0
    %v4812 = vadd.f32 %v4471, %v4811
    %v4813 = vpop.f32.mrb[0].mxu0
    %v4814 = vand.u32 %v2222, 4294901760
    %4815 = vmatprep.mubr.f32.mxu0 %v4814
    %v4816 = vand.u32 %v2143, 4294901760
    %4817 = vmatmul.mubr.f32.gmra.mrb[0].mxu0 %v4816
    %v4818 = vpop.f32.mrb[0].mxu0
    %v4819 = vadd.f32 %v4478, %v4818
    %v4820 = vpop.f32.mrb[0].mxu0
    %v4821 = vand.u32 %v2225, 4294901760
    %4822 = vmatprep.mubr.f32.mxu0 %v4821
    %v4823 = vand.u32 %v2145, 4294901760
    %4824 = vmatmul.mubr.f32.gmra.mrb[0].mxu0 %v4823
    %v4825 = vpop.f32.mrb[0].mxu0
    %v4826 = vadd.f32 %v4485, %v4825
    %v4827 = vpop.f32.mrb[0].mxu0
    %v4828 = vand.u32 %v2228, 4294901760
    %4829 = vmatprep.mubr.f32.mxu0 %v4828
    %v4830 = vand.u32 %v2147, 4294901760
    %4831 = vmatmul.mubr.f32.gmra.mrb[0].mxu0 %v4830
    %v4832 = vpop.f32.mrb[0].mxu0
    %v4833 = vadd.f32 %v4492, %v4832
    %v4834 = vpop.f32.mrb[0].mxu0
    %v4835 = vand.u32 %v2231, 4294901760
    %4836 = vmatprep.mubr.f32.mxu0 %v4835
    %v4837 = vand.u32 %v2149, 4294901760
    %4838 = vmatmul.mubr.f32.gmra.mrb[0].mxu0 %v4837
    %v4839 = vpop.f32.mrb[0].mxu0
    %v4840 = vadd.f32 %v4499, %v4839
    %v4841 = vpop.f32.mrb[0].mxu0
    %v4842 = vand.u32 %v2234, 4294901760
    %4843 = vmatprep.mubr.f32.mxu0 %v4842
    %v4844 = vand.u32 %v2151, 4294901760
    %4845 = vmatmul.mubr.f32.gmra.mrb[0].mxu0 %v4844
    %v4846 = vpop.f32.mrb[0].mxu0
    %v4847 = vadd.f32 %v4506, %v4846
    %v4848 = vpop.f32.mrb[0].mxu0
    %v4849 = vand.u32 %v2237, 4294901760
    %4850 = vmatprep.mubr.f32.mxu0 %v4849
    %v4851 = vand.u32 %v2153, 4294901760
    %4852 = vmatmul.mubr.f32.gmra.mrb[0].mxu0 %v4851
    %v4853 = vpop.f32.mrb[0].mxu0
    %v4854 = vadd.f32 %v4513, %v4853
    %v4855 = vpop.f32.mrb[0].mxu0
    %v4856 = vand.u32 %v2240, 4294901760
    %4857 = vmatprep.mubr.f32.mxu0 %v4856
    %v4858 = vand.u32 %v2155, 4294901760
    %4859 = vmatmul.mubr.f32.gmra.mrb[0].mxu0 %v4858
    %v4860 = vpop.f32.mrb[0].mxu0
    %v4861 = vadd.f32 %v4520, %v4860
    %v4862 = vpop.f32.mrb[0].mxu0
    %v4863 = vand.u32 %v2243, 4294901760
    %4864 = vmatprep.mubr.f32.mxu0 %v4863
    %v4865 = vand.u32 %v2157, 4294901760
    %4866 = vmatmul.mubr.f32.gmra.mrb[0].mxu0 %v4865
    %v4867 = vpop.f32.mrb[0].mxu0
    %v4868 = vadd.f32 %v4527, %v4867
    %v4869 = vpop.f32.mrb[0].mxu0
    %v4870 = vand.u32 %v2246, 4294901760
    %4871 = vmatprep.mubr.f32.mxu0 %v4870
    %v4872 = vand.u32 %v2159, 4294901760
    %4873 = vmatmul.mubr.f32.gmra.mrb[0].mxu0 %v4872
    %v4874 = vpop.f32.mrb[0].mxu0
    %v4875 = vadd.f32 %v4534, %v4874
    %v4876 = vpop.f32.mrb[0].mxu0
    %v4877 = vand.u32 %v2249, 4294901760
    %4878 = vmatprep.mubr.f32.mxu0 %v4877
    %v4879 = vand.u32 %v2161, 4294901760
    %4880 = vmatmul.mubr.f32.gmra.mrb[0].mxu0 %v4879
    %v4881 = vpop.f32.mrb[0].mxu0
    %v4882 = vadd.f32 %v4541, %v4881
    %v4883 = vpop.f32.mrb[0].mxu0
    %v4884 = vand.u32 %v2252, 4294901760
    %4885 = vmatprep.mubr.f32.mxu0 %v4884
    %v4886 = vand.u32 %v2163, 4294901760
    %4887 = vmatmul.mubr.f32.gmra.mrb[0].mxu0 %v4886
    %v4888 = vpop.f32.mrb[0].mxu0
    %v4889 = vadd.f32 %v4548, %v4888
    %v4890 = vpop.f32.mrb[0].mxu0
    %v4891 = vand.u32 %v2255, 4294901760
    %4892 = vmatprep.mubr.f32.mxu0 %v4891
    %v4893 = vand.u32 %v2165, 4294901760
    %4894 = vmatmul.mubr.f32.gmra.mrb[0].mxu0 %v4893
    %v4895 = vpop.f32.mrb[0].mxu0
    %v4896 = vadd.f32 %v4555, %v4895
    %v4897 = vpop.f32.mrb[0].mxu0
    %v4898 = vand.u32 %v2258, 4294901760
    %4899 = vmatprep.mubr.f32.mxu0 %v4898
    %v4900 = vand.u32 %v2167, 4294901760
    %4901 = vmatmul.mubr.f32.gmra.mrb[0].mxu0 %v4900
    %v4902 = vpop.f32.mrb[0].mxu0
    %v4903 = vadd.f32 %v4562, %v4902
    %v4904 = vpop.f32.mrb[0].mxu0
    %v4905 = vand.u32 %v2261, 4294901760
    %4906 = vmatprep.mubr.f32.mxu0 %v4905
    %v4907 = vand.u32 %v2169, 4294901760
    %4908 = vmatmul.mubr.f32.gmra.mrb[0].mxu0 %v4907
    %v4909 = vpop.f32.mrb[0].mxu0
    %v4910 = vadd.f32 %v4569, %v4909
    %v4911 = vpop.f32.mrb[0].mxu0
    %v4912 = vand.u32 %v2264, 4294901760
    %4913 = vmatprep.mubr.f32.mxu0 %v4912
    %v4914 = vand.u32 %v2171, 4294901760
    %4915 = vmatmul.mubr.f32.gmra.mrb[0].mxu0 %v4914
    %v4916 = vpop.f32.mrb[0].mxu0
    %v4917 = vadd.f32 %v4576, %v4916
    %v4918 = vpop.f32.mrb[0].mxu0
    %v4919 = vand.u32 %v2267, 4294901760
    %4920 = vmatprep.mubr.f32.mxu0 %v4919
    %v4921 = vand.u32 %v2173, 4294901760
    %4922 = vmatmul.mubr.f32.gmra.mrb[0].mxu0 %v4921
    %v4923 = vpop.f32.mrb[0].mxu0
    %v4924 = vadd.f32 %v4583, %v4923
    %v4925 = vpop.f32.mrb[0].mxu0
    %v4926 = vand.u32 %v2270, 4294901760
    %4927 = vmatprep.mubr.f32.mxu0 %v4926
    %v4928 = vand.u32 %v2175, 4294901760
    %4929 = vmatmul.mubr.f32.gmra.mrb[0].mxu0 %v4928
    %v4930 = vpop.f32.mrb[0].mxu0
    %v4931 = vadd.f32 %v4590, %v4930
    %v4932 = vpop.f32.mrb[0].mxu0
    %v4933 = vand.u32 %v2273, 4294901760
    %4934 = vmatprep.mubr.f32.mxu0 %v4933
    %v4935 = vand.u32 %v2177, 4294901760
    %4936 = vmatmul.mubr.f32.gmra.mrb[0].mxu0 %v4935
    %v4937 = vpop.f32.mrb[0].mxu0
    %v4938 = vadd.f32 %v4597, %v4937
    %v4939 = vpop.f32.mrb[0].mxu0
    %v4940 = vand.u32 %v2276, 4294901760
    %4941 = vmatprep.mubr.f32.mxu0 %v4940
    %v4942 = vand.u32 %v2179, 4294901760
    %4943 = vmatmul.mubr.f32.gmra.mrb[0].mxu0 %v4942
    %v4944 = vpop.f32.mrb[0].mxu0
    %v4945 = vadd.f32 %v4604, %v4944
    %v4946 = vpop.f32.mrb[0].mxu0
    %v4947 = vand.u32 %v2279, 4294901760
    %4948 = vmatprep.mubr.f32.mxu0 %v4947
    %v4949 = vand.u32 %v2181, 4294901760
    %4950 = vmatmul.mubr.f32.gmra.mrb[0].mxu0 %v4949
    %v4951 = vpop.f32.mrb[0].mxu0
    %v4952 = vadd.f32 %v4611, %v4951
    %v4953 = vpop.f32.mrb[0].mxu0
    %v4954 = vand.u32 %v2282, 4294901760
    %4955 = vmatprep.mubr.f32.mxu0 %v4954
    %v4956 = vand.u32 %v2183, 4294901760
    %4957 = vmatmul.mubr.f32.gmra.mrb[0].mxu0 %v4956
    %v4958 = vpop.f32.mrb[0].mxu0
    %v4959 = vadd.f32 %v4618, %v4958
    %v4960 = vpop.f32.mrb[0].mxu0
    %v4961 = vand.u32 %v2285, 4294901760
    %4962 = vmatprep.mubr.f32.mxu0 %v4961
    %v4963 = vand.u32 %v2185, 4294901760
    %4964 = vmatmul.mubr.f32.gmra.mrb[0].mxu0 %v4963
    %v4965 = vpop.f32.mrb[0].mxu0
    %v4966 = vadd.f32 %v4625, %v4965
    %v4967 = vpop.f32.mrb[0].mxu0
    %v4968 = vand.u32 %v2288, 4294901760
    %4969 = vmatprep.mubr.f32.mxu0 %v4968
    %v4970 = vand.u32 %v2187, 4294901760
    %4971 = vmatmul.mubr.f32.gmra.mrb[0].mxu0 %v4970
    %v4972 = vpop.f32.mrb[0].mxu0
    %v4973 = vadd.f32 %v4632, %v4972
    %v4974 = vpop.f32.mrb[0].mxu0
    %v4975 = vand.u32 %v2291, 4294901760
    %4976 = vmatprep.mubr.f32.mxu0 %v4975
    %v4977 = vand.u32 %v2189, 4294901760
    %4978 = vmatmul.mubr.f32.gmra.mrb[0].mxu0 %v4977
    %v4979 = vpop.f32.mrb[0].mxu0
    %v4980 = vadd.f32 %v4639, %v4979
    %v4981 = vpop.f32.mrb[0].mxu0
    %v4982 = vand.u32 %v2294, 4294901760
    %4983 = vmatprep.mubr.f32.mxu0 %v4982
    %v4984 = vand.u32 %v2191, 4294901760
    %4985 = vmatmul.mubr.f32.gmra.mrb[0].mxu0 %v4984
    %v4986 = vpop.f32.mrb[0].mxu0
    %v4987 = vadd.f32 %v4646, %v4986
    %v4988 = vpop.f32.mrb[0].mxu0
    %v4989 = vand.u32 %v2297, 4294901760
    %4990 = vmatprep.mubr.f32.mxu0 %v4989
    %v4991 = vand.u32 %v2193, 4294901760
    %4992 = vmatmul.mubr.f32.gmra.mrb[0].mxu0 %v4991
    %v4993 = vpop.f32.mrb[0].mxu0
    %v4994 = vadd.f32 %v4653, %v4993
    %v4995 = vpop.f32.mrb[0].mxu0
    %v4996 = vand.u32 %v2300, 4294901760
    %4997 = vmatprep.mubr.f32.mxu0 %v4996
    %v4998 = vand.u32 %v2195, 4294901760
    %4999 = vmatmul.mubr.f32.gmra.mrb[0].mxu0 %v4998
    %v5000 = vpop.f32.mrb[0].mxu0
    %v5001 = vadd.f32 %v4660, %v5000
    %v5002 = vpop.f32.mrb[0].mxu0
    %v5003 = vand.u32 %v2303, 4294901760
    %5004 = vmatprep.mubr.f32.mxu0 %v5003
    %v5005 = vand.u32 %v2197, 4294901760
    %5006 = vmatmul.mubr.f32.gmra.mrb[0].mxu0 %v5005
    %v5007 = vpop.f32.mrb[0].mxu0
    %v5008 = vadd.f32 %v4667, %v5007
    %v5009 = vpop.f32.mrb[0].mxu0
    %v5010 = vand.u32 %v2306, 4294901760
    %5011 = vmatprep.mubr.f32.mxu0 %v5010
    %v5012 = vand.u32 %v2199, 4294901760
    %5013 = vmatmul.mubr.f32.gmra.mrb[0].mxu0 %v5012
    %v5014 = vpop.f32.mrb[0].mxu0
    %v5015 = vadd.f32 %v4674, %v5014
    %v5016 = vpop.f32.mrb[0].mxu0
    %v5017 = vand.u32 %v2309, 4294901760
    %5018 = vmatprep.mubr.f32.mxu0 %v5017
    %v5019 = vand.u32 %v2201, 4294901760
    %5020 = vmatmul.mubr.f32.gmra.mrb[0].mxu0 %v5019
    %v5021 = vpop.f32.mrb[0].mxu0
    %v5022 = vadd.f32 %v4681, %v5021
    %v5023 = vpop.f32.mrb[0].mxu0
    %v5024 = vand.u32 %v2312, 4294901760
    %5025 = vmatprep.mubr.f32.mxu0 %v5024
    %v5026 = vand.u32 %v2203, 4294901760
    %5027 = vmatmul.mubr.f32.gmra.mrb[0].mxu0 %v5026
    %v5028 = vpop.f32.mrb[0].mxu0
    %v5029 = vadd.f32 %v4688, %v5028
    %v5030 = vpop.f32.mrb[0].mxu0
    %5031 = vdwg.mxu0
    %vm5032 = vcmask 244736
    %5033 = vst.msk [vmem:[%s6] sm:$0xff] %vm5032, %v4784
    %5034 = vst.msk [vmem:[%s6 + $0x8] sm:$0xff] %vm5032, %v4791
    %5035 = vst.msk [vmem:[%s6 + $0x10] sm:$0xff] %vm5032, %v4798
    %5036 = vst.msk [vmem:[%s6 + $0x18] sm:$0xff] %vm5032, %v4805
    %5037 = vst.msk [vmem:[%s6 + $0x20] sm:$0xff] %vm5032, %v4812
    %vm5038 = vcmask 243712
    %5039 = vst.msk [vmem:[%s6 + $0x28] sm:$0x7f] %vm5038, %v4819
    %s5040 = scalar_lea.vmem %s6, 48
    %5041 = vst.msk [vmem:[%s5040] sm:$0xff] %vm5032, %v4826
    %5042 = vst.msk [vmem:[%s5040 + $0x8] sm:$0xff] %vm5032, %v4833
    %5043 = vst.msk [vmem:[%s5040 + $0x10] sm:$0xff] %vm5032, %v4840
    %5044 = vst.msk [vmem:[%s5040 + $0x18] sm:$0xff] %vm5032, %v4847
    %5045 = vst.msk [vmem:[%s5040 + $0x20] sm:$0xff] %vm5032, %v4854
    %5046 = vst.msk [vmem:[%s5040 + $0x28] sm:$0x7f] %vm5038, %v4861
    %s5047 = scalar_lea.vmem %s6, 96
    %5048 = vst.msk [vmem:[%s5047] sm:$0xff] %vm5032, %v4868
    %5049 = vst.msk [vmem:[%s5047 + $0x8] sm:$0xff] %vm5032, %v4875
    %5050 = vst.msk [vmem:[%s5047 + $0x10] sm:$0xff] %vm5032, %v4882
    %5051 = vst.msk [vmem:[%s5047 + $0x18] sm:$0xff] %vm5032, %v4889
    %5052 = vst.msk [vmem:[%s5047 + $0x20] sm:$0xff] %vm5032, %v4896
    %5053 = vst.msk [vmem:[%s5047 + $0x28] sm:$0x7f] %vm5038, %v4903
    %s5054 = scalar_lea.vmem %s6, 144
    %5055 = vst.msk [vmem:[%s5054] sm:$0xff] %vm5032, %v4910
    %5056 = vst.msk [vmem:[%s5054 + $0x8] sm:$0xff] %vm5032, %v4917
    %5057 = vst.msk [vmem:[%s5054 + $0x10] sm:$0xff] %vm5032, %v4924
    %5058 = vst.msk [vmem:[%s5054 + $0x18] sm:$0xff] %vm5032, %v4931
    %5059 = vst.msk [vmem:[%s5054 + $0x20] sm:$0xff] %vm5032, %v4938
    %5060 = vst.msk [vmem:[%s5054 + $0x28] sm:$0x7f] %vm5038, %v4945
    %s5061 = scalar_lea.vmem %s6, 192
    %5062 = vst.msk [vmem:[%s5061] sm:$0xff] %vm5032, %v4952
    %5063 = vst.msk [vmem:[%s5061 + $0x8] sm:$0xff] %vm5032, %v4959
    %5064 = vst.msk [vmem:[%s5061 + $0x10] sm:$0xff] %vm5032, %v4966
    %5065 = vst.msk [vmem:[%s5061 + $0x18] sm:$0xff] %vm5032, %v4973
    %5066 = vst.msk [vmem:[%s5061 + $0x20] sm:$0xff] %vm5032, %v4980
    %5067 = vst.msk [vmem:[%s5061 + $0x28] sm:$0x7f] %vm5038, %v4987
    %s5068 = scalar_lea.vmem %s6, 240
    %5069 = vst.msk [vmem:[%s5068] sm:$0xff] %vm5032, %v4994
    %5070 = vst.msk [vmem:[%s5068 + $0x8] sm:$0xff] %vm5032, %v5001
    %5071 = vst.msk [vmem:[%s5068 + $0x10] sm:$0xff] %vm5032, %v5008
    %5072 = vst.msk [vmem:[%s5068 + $0x18] sm:$0xff] %vm5032, %v5015
    %5073 = vst.msk [vmem:[%s5068 + $0x20] sm:$0xff] %vm5032, %v5022
    %5074 = vst.msk [vmem:[%s5068 + $0x28] sm:$0x7f] %vm5038, %v5029
    // Predicated region
    $region34: #{forward.1} parent=1 // pred_check
      _
    $region35: #{forward.1} parent=1 // pred_check_branch
      %5076 = sbr.rel (0) target = $region37
    $region36: #{forward.1} parent=1 // pred_region
      _
    $region37: #{forward.1} parent=1 // pred_fallthru
      _
    // Predicated region
    $region38: #{forward.1} parent=1 // pred_check
      _
    $region39: #{forward.1} parent=1 // pred_check_branch
      %5078 = sbr.rel (0) target = $region41
    $region40: #{forward.1} parent=1 // pred_region
      _
    $region41: #{forward.1} parent=1 // pred_fallthru
      _
    // Predicated region
    $region42: #{forward.1} parent=1 // pred_check
      _
    $region43: #{forward.1} parent=1 // pred_check_branch
      %5080 = sbr.rel (0) target = $region45
    $region44: #{forward.1} parent=1 // pred_region
      _
    $region45: #{forward.1} parent=1 // pred_fallthru
      _
    // Predicated region
    $region46: #{forward.1} parent=1 // pred_check
      _
    $region47: #{forward.1} parent=1 // pred_check_branch
      %5082 = sbr.rel (0) target = $region49
    $region48: #{forward.1} parent=1 // pred_region
      _
    $region49: #{forward.1} parent=1 // pred_fallthru
      _
    %5083 = vsyncpa [#allocation3], 1
    %5084 = vsyncpa [#allocation5], 1

</llo_original>
